<compile_context>
chip_gen: v7x
topology: tpu7x:2x2x1
jax: 0.10.0
libtpu: 0.0.40
codegen_flags: <defaults>
</compile_context>

<pallas_src>
import functools

import jax
import jax.numpy as jnp
from jax.experimental import pallas as pl
from jax.experimental.pallas import tpu as pltpu


# ----------------------------------------------------------------------------
# Fused bidirectional LSTM recurrence kernel
#   grid = (2, n_chunks): axis 0 = direction (0 fwd, 1 bwd, "parallel"),
#                         axis 1 = time chunk ("arbitrary", sequential carry).
# ----------------------------------------------------------------------------
def _bilstm_layer_kernel(len_ref, gx_ref, whh_ref, y_ref, hfin_ref,
                         h_sc, c_sc, *, tc, hidden, n_chunks):
    d = pl.program_id(0)          # direction: 0 = forward, 1 = backward
    c = pl.program_id(1)          # chunk index along the (sequential) grid
    H = hidden
    B = h_sc.shape[0]

    # NOTE: the h/c scratch carry relies on row-major grid order (direction
    # outermost, chunk innermost) so this reset fires exactly when the
    # direction flips on single-TC chips; on v7x the "parallel" direction axis
    # gives each TensorCore its own scratch.  Do not reorder the grid.
    @pl.when(c == 0)
    def _():
        h_sc[...] = jnp.zeros_like(h_sc)
        c_sc[...] = jnp.zeros_like(c_sc)

    # Which absolute time chunk this grid step covers (reversed order for bwd).
    chunk = c + d * (n_chunks - 1 - 2 * c)
    t0 = chunk * tc

    lens = len_ref[...]                                    # (B, 1) int32, hoisted
    whh = whh_ref[0]                                       # (H, 4H), hoisted

    def step_fn(s, carry):
        h_old, c_old = carry
        # in-chunk position: ascending for fwd, descending for bwd
        tt = s + d * (tc - 1 - 2 * s)
        row0 = pl.multiple_of(tt * B, B)

        # precomputed input gates (streamed in by the pipeline) + recurrent dot
        gates = (gx_ref[0, pl.ds(row0, B), :].astype(jnp.float32)
                 + jnp.dot(h_old.astype(whh.dtype), whh,
                           preferred_element_type=jnp.float32))

        i = jax.nn.sigmoid(gates[:, 0 * H:1 * H])
        f = jax.nn.sigmoid(gates[:, 1 * H:2 * H])
        g = jnp.tanh(gates[:, 2 * H:3 * H])
        o = jax.nn.sigmoid(gates[:, 3 * H:4 * H])

        c_new = f * c_old + i * g
        h_new = o * jnp.tanh(c_new)

        # packed-sequence mask: only update state on valid timesteps
        valid = lens > (t0 + tt)                           # (B, 1) bool
        h_keep = jnp.where(valid, h_new, h_old)
        c_keep = jnp.where(valid, c_new, c_old)

        # per-timestep output (zeros at padded positions, like pad_packed_sequence)
        y_ref[tt] = jnp.where(valid, h_new, 0.0)
        return h_keep, c_keep

    # full unroll only while the per-step live set fits vregs; partial otherwise
    unroll = True if (tc <= 16 and H < 512) else min(8, tc)
    h_last, c_last = jax.lax.fori_loop(
        0, tc, step_fn, (h_sc[...], c_sc[...]), unroll=unroll)

    h_sc[...] = h_last
    c_sc[...] = c_last

    # hfin's block index is constant along the chunk axis, so the block stays
    # VMEM-resident until writeback -> writing only on the last chunk is safe.
    @pl.when(c == n_chunks - 1)
    def _():
        hfin_ref[...] = h_last


# ----------------------------------------------------------------------------
# Layer wrapper
# ----------------------------------------------------------------------------
def bidir_lstm_layer(x, lengths_2d, w_ih, w_hh, b, *,
                     time_chunk=None, mxu_dtype=jnp.float32):
    """One bidirectional LSTM layer.

    x:          (T, B, D_in) float32
    lengths_2d: (B, 1) int32
    w_ih:       (2, D_in, 4H)   [dir 0 = fwd, dir 1 = bwd], gate order i,f,g,o
    w_hh:       (2, H, 4H)
    b:          (2, 1, 4H)      combined b_ih + b_hh

    Returns y: (T_pad, B, 2H) with [.., :H]=fwd, [.., H:]=bwd,
            h_fin: (B, 2H) final hiddens [fwd | bwd].
    """
    T, B, D = x.shape
    H = w_hh.shape[1]
    assert B % 8 == 0, "B must be a multiple of 8 (sublane alignment)"
    assert H % 128 == 0, "H must be a multiple of 128 (lane-dense gate slices)"

    if time_chunk is None:
        # fill >=256 rows in the hoisted projection on v6e/v7x (>=128 on v5e),
        # halve grid-step count; cap at T to avoid useless padding.
        time_chunk = max(256 // B, 8)
    tc = max(1, min(time_chunk, T))
    n_chunks = pl.cdiv(T, tc)
    T_pad = n_chunks * tc
    if T_pad != T:
        # padded steps are masked out by the length mask (zeros in y)
        x = jnp.pad(x, ((0, T_pad - T), (0, 0), (0, 0)))

    # ---- input projection hoisted OUT of the recurrence kernel (perf review):
    # one big (T_pad*B, D) @ (D, 4H) matmul per direction, left to XLA; its
    # result streams into the kernel chunk-by-chunk via the auto-pipeline so it
    # is prefetched off the serial recurrence critical path.
    x2d = x.reshape(T_pad * B, D)
    gx = jnp.einsum('nd,kdh->knh', x2d, w_ih) + b          # (2, T_pad*B, 4H) f32
    gx = gx.astype(mxu_dtype)                              # bf16 on v6e/v7x builds
    whh = w_hh.astype(mxu_dtype)

    time_map = lambda dd, cc: cc + dd * (n_chunks - 1 - 2 * cc)

    kern = functools.partial(_bilstm_layer_kernel,
                             tc=tc, hidden=H, n_chunks=n_chunks)

    y, h_fin = pl.pallas_call(
        kern,
        grid=(2, n_chunks),
        in_specs=[
            pl.BlockSpec((B, 1), lambda d, c: (0, 0)),                  # lengths
            pl.BlockSpec((1, tc * B, 4 * H),
                         lambda d, c: (d, time_map(d, c), 0)),          # gx chunk
            pl.BlockSpec((1, H, 4 * H), lambda d, c: (d, 0, 0)),        # W_hh^T
        ],
        out_specs=[
            # fwd writes lane-half 0, bwd writes lane-half 1 of (T, B, 2H)
            pl.BlockSpec((tc, B, H), lambda d, c: (time_map(d, c), 0, d)),
            pl.BlockSpec((B, H), lambda d, c: (0, d)),                  # final h
        ],
        out_shape=[
            jax.ShapeDtypeStruct((T_pad, B, 2 * H), jnp.float32),
            jax.ShapeDtypeStruct((B, 2 * H), jnp.float32),
        ],
        scratch_shapes=[
            pltpu.VMEM((B, H), jnp.float32),            # h carry
            pltpu.VMEM((B, H), jnp.float32),            # c carry
        ],
        compiler_params=pltpu.CompilerParams(
            dimension_semantics=("parallel", "arbitrary")),
    )(lengths_2d, gx, whh)
    return y, h_fin


# ----------------------------------------------------------------------------
# Full forward pass (mirrors RNN.forward)
# ----------------------------------------------------------------------------
def rnn_forward(text, text_length, params, *, time_chunk=None,
                mxu_dtype=jnp.float32):
    # embedding lookup (gather glue left to XLA); dropout = identity (eval)
    x = jnp.take(params["embedding"], text, axis=0)            # (T, B, E)
    lengths_2d = text_length.reshape(-1, 1).astype(jnp.int32)  # (B, 1)

    h_fin = None
    for layer in params["lstm"]:
        # note: x may carry T_pad (>= T) rows after layer 1; extra rows are
        # zero and masked by the lengths, so subsequent layers ignore them.
        x, h_fin = bidir_lstm_layer(x, lengths_2d,
                                    layer["w_ih"], layer["w_hh"], layer["b"],
                                    time_chunk=time_chunk, mxu_dtype=mxu_dtype)
        # inter-layer dropout: identity in eval mode

    # hidden = concat(final fwd hidden, final bwd hidden) already laid out as
    # (B, 2H) by the kernel; dropout = identity.
    hidden = h_fin
    # tiny (B,2H)x(2H,O) matmul left to XLA: a standalone pallas_call here is
    # dominated by launch/DMA overhead.
    return hidden @ params["fc_w_t"] + params["fc_b"]


# ----------------------------------------------------------------------------
# Deterministic parameter init (shapes match the PyTorch module)
# ----------------------------------------------------------------------------
def init_params(key, vocab_size, embedding_dim, hidden_dim, output_dim,
                n_layers, pad_idx):
    keys = iter(jax.random.split(key, 16 * n_layers + 8))
    nxt = lambda: next(keys)

    emb = jax.random.normal(nxt(), (vocab_size, embedding_dim), jnp.float32)
    emb = emb.at[pad_idx].set(0.0)   # padding_idx row is zero

    bound = 1.0 / float(hidden_dim) ** 0.5
    lstm = []
    in_dim = embedding_dim
    for _ in range(n_layers):
        wih, whh, bias = [], [], []
        for _d in range(2):   # 0 = fwd, 1 = bwd
            wih.append(jax.random.uniform(nxt(), (in_dim, 4 * hidden_dim),
                                          jnp.float32, -bound, bound))
            whh.append(jax.random.uniform(nxt(), (hidden_dim, 4 * hidden_dim),
                                          jnp.float32, -bound, bound))
            b_ih = jax.random.uniform(nxt(), (1, 4 * hidden_dim),
                                      jnp.float32, -bound, bound)
            b_hh = jax.random.uniform(nxt(), (1, 4 * hidden_dim),
                                      jnp.float32, -bound, bound)
            bias.append(b_ih + b_hh)   # combined bias, correct distribution
        lstm.append({"w_ih": jnp.stack(wih), "w_hh": jnp.stack(whh),
                     "b": jnp.stack(bias)})
        in_dim = 2 * hidden_dim   # next layer consumes concat(fwd, bwd)

    fb = 1.0 / float(2 * hidden_dim) ** 0.5
    fc_w_t = jax.random.uniform(nxt(), (2 * hidden_dim, output_dim),
                                jnp.float32, -fb, fb)
    fc_b = jax.random.uniform(nxt(), (1, output_dim), jnp.float32, -fb, fb)

    return {"embedding": emb, "lstm": lstm, "fc_w_t": fc_w_t, "fc_b": fc_b}


# ----------------------------------------------------------------------------
if __name__ == "__main__":
    # vreg-friendly small shapes: B multiple of 8 (sublanes), H multiple of 128
    VOCAB, EMB, HID, OUT = 64, 64, 128, 4
    N_LAYERS, PAD_IDX = 2, 0
    T, B = 16, 8

    key = jax.random.PRNGKey(0)
    pkey, dkey = jax.random.split(key)
    params = init_params(pkey, VOCAB, EMB, HID, OUT, N_LAYERS, PAD_IDX)

    # lengths sorted descending (pack_padded_sequence enforce_sorted=True)
    text_length = jnp.array([16, 14, 12, 11, 9, 7, 5, 3], dtype=jnp.int32)
    tokens = jax.random.randint(dkey, (T, B), 1, VOCAB, dtype=jnp.int32)
    t_idx = jnp.arange(T, dtype=jnp.int32)[:, None]
    text = jnp.where(t_idx < text_length[None, :], tokens, PAD_IDX)   # (T, B)

    out = rnn_forward(text, text_length, params)
    out = jax.block_until_ready(out)
    assert out.shape == (B, OUT) and out.dtype == jnp.float32
    print("KERNEL_OK")
</pallas_src>

<mosaic_0001>
module attributes {stable_mosaic.version = 11 : i64} {
  func.func @_bilstm_layer_kernel(%arg0: i32, %arg1: i32, %arg2: memref<8x1xi32, #tpu.memory_space<vmem>>, %arg3: memref<1x128x512xf32, #tpu.memory_space<vmem>>, %arg4: memref<1x128x512xf32, #tpu.memory_space<vmem>>, %arg5: memref<16x8x128xf32, #tpu.memory_space<vmem>>, %arg6: memref<8x128xf32, #tpu.memory_space<vmem>>, %arg7: memref<8x128xf32, #tpu.memory_space<vmem>>, %arg8: memref<8x128xf32, #tpu.memory_space<vmem>>) attributes {dimension_semantics = [#tpu.dimension_semantics<parallel>, #tpu.dimension_semantics<arbitrary>], iteration_bounds = array<i64: 2, 1>, scalar_prefetch = 0 : i64, scratch_operands = 2 : i64, tpu.core_type = #tpu.core_type<tc>, window_params = [{pipeline_mode = #tpu.pipeline_mode<synchronous>, transform_indices = @transform_0, window_bounds = array<i64: 8, 1>}, {transform_indices = @transform_1, window_bounds = array<i64: 1, 128, 512>}, {transform_indices = @transform_2, window_bounds = array<i64: 1, 128, 512>}, {transform_indices = @transform_3, window_bounds = array<i64: 16, 8, 128>}, {transform_indices = @transform_4, window_bounds = array<i64: 8, 128>}]} {
    %c0_i32 = arith.constant 0 : i32
    %0 = arith.cmpi eq, %arg1, %c0_i32 : i32
    %1 = arith.extui %0 : i1 to i32
    %c0_i32_0 = arith.constant 0 : i32
    %2 = arith.cmpi ne, %1, %c0_i32_0 : i32
    scf.if %2 {
      %cst_210 = arith.constant 0.000000e+00 : f32
      %866 = vector.broadcast %cst_210 : f32 to vector<8x128xf32>
      %c0_211 = arith.constant 0 : index
      %c0_212 = arith.constant 0 : index
      %867 = vector.load %arg7[%c0_211, %c0_212] : memref<8x128xf32, #tpu.memory_space<vmem>>, vector<8x128xf32>
      tpu.vector_store %arg7[%c0_211, %c0_212], %866 {strides = array<i32>} : memref<8x128xf32, #tpu.memory_space<vmem>>, vector<8x128xf32>,
      %cst_213 = arith.constant 0.000000e+00 : f32
      %868 = vector.broadcast %cst_213 : f32 to vector<8x128xf32>
      %c0_214 = arith.constant 0 : index
      %c0_215 = arith.constant 0 : index
      %869 = vector.load %arg8[%c0_214, %c0_215] : memref<8x128xf32, #tpu.memory_space<vmem>>, vector<8x128xf32>
      tpu.vector_store %arg8[%c0_214, %c0_215], %868 {strides = array<i32>} : memref<8x128xf32, #tpu.memory_space<vmem>>, vector<8x128xf32>,
    } else {
    }
    %c2_i32 = arith.constant 2 : i32
    %3 = arith.muli %c2_i32, %arg1 : i32
    %c0_i32_1 = arith.constant 0 : i32
    %4 = arith.subi %c0_i32_1, %3 : i32
    %5 = arith.muli %arg0, %4 : i32
    %6 = arith.addi %arg1, %5 : i32
    %c16_i32 = arith.constant 16 : i32
    %7 = arith.muli %6, %c16_i32 : i32
    %c0 = arith.constant 0 : index
    %c0_2 = arith.constant 0 : index
    %8 = vector.load %arg2[%c0, %c0_2] : memref<8x1xi32, #tpu.memory_space<vmem>>, vector<8x1xi32>
    %c0_3 = arith.constant 0 : index
    %c0_4 = arith.constant 0 : index
    %c0_5 = arith.constant 0 : index
    %9 = vector.load %arg4[%c0_3, %c0_4, %c0_5] : memref<1x128x512xf32, #tpu.memory_space<vmem>>, vector<1x128x512xf32>
    %10 = vector.shape_cast %9 : vector<1x128x512xf32> to vector<128x512xf32>
    %c0_6 = arith.constant 0 : index
    %c0_7 = arith.constant 0 : index
    %11 = vector.load %arg7[%c0_6, %c0_7] : memref<8x128xf32, #tpu.memory_space<vmem>>, vector<8x128xf32>
    %c0_8 = arith.constant 0 : index
    %c0_9 = arith.constant 0 : index
    %12 = vector.load %arg8[%c0_8, %c0_9] : memref<8x128xf32, #tpu.memory_space<vmem>>, vector<8x128xf32>
    %c0_i32_10 = arith.constant 0 : i32
    %c2_i32_11 = arith.constant 2 : i32
    %13 = arith.muli %c2_i32_11, %c0_i32_10 : i32
    %c15_i32 = arith.constant 15 : i32
    %14 = arith.subi %c15_i32, %13 : i32
    %15 = arith.muli %arg0, %14 : i32
    %16 = arith.addi %c0_i32_10, %15 : i32
    %c8_i32 = arith.constant 8 : i32
    %17 = arith.muli %16, %c8_i32 : i32
    %18 = tpu.assume_multiple %17, 8 : i32
    %c0_12 = arith.constant 0 : index
    %19 = arith.index_cast %18 : i32 to index
    %c0_13 = arith.constant 0 : index
    %20 = vector.load %arg3[%c0_12, %19, %c0_13] : memref<1x128x512xf32, #tpu.memory_space<vmem>>, vector<1x8x512xf32>
    %21 = vector.shape_cast %20 : vector<1x8x512xf32> to vector<8x512xf32>
    %cst = arith.constant dense<0.000000e+00> : vector<8x512xf32>
    %22 = tpu.matmul %11, %10, %cst {dimension_numbers = #tpu.dot_dimension_numbers<[1], [0], [0], [1], [0, 0, 1, 1], [], []>} : vector<8x128xf32>, vector<128x512xf32>, vector<8x512xf32> -> vector<8x512xf32>
    %23 = arith.addf %21, %22 : vector<8x512xf32>
    %24 = vector.extract_strided_slice %23 {offsets = [0, 0], sizes = [8, 128], strides = [1, 1]} : vector<8x512xf32> to vector<8x128xf32>
    %25 = arith.negf %24 : vector<8x128xf32>
    %26 = math.exp %25 : vector<8x128xf32>
    %cst_14 = arith.constant 1.000000e+00 : f32
    %27 = vector.broadcast %cst_14 : f32 to vector<8x128xf32>
    %28 = arith.addf %27, %26 : vector<8x128xf32>
    %29 = arith.divf %27, %28 : vector<8x128xf32>
    %30 = vector.extract_strided_slice %23 {offsets = [0, 128], sizes = [8, 128], strides = [1, 1]} : vector<8x512xf32> to vector<8x128xf32>
    %31 = arith.negf %30 : vector<8x128xf32>
    %32 = math.exp %31 : vector<8x128xf32>
    %cst_15 = arith.constant 1.000000e+00 : f32
    %33 = vector.broadcast %cst_15 : f32 to vector<8x128xf32>
    %34 = arith.addf %33, %32 : vector<8x128xf32>
    %35 = arith.divf %33, %34 : vector<8x128xf32>
    %36 = vector.extract_strided_slice %23 {offsets = [0, 256], sizes = [8, 128], strides = [1, 1]} : vector<8x512xf32> to vector<8x128xf32>
    %37 = math.tanh %36 : vector<8x128xf32>
    %38 = vector.extract_strided_slice %23 {offsets = [0, 384], sizes = [8, 128], strides = [1, 1]} : vector<8x512xf32> to vector<8x128xf32>
    %39 = arith.negf %38 : vector<8x128xf32>
    %40 = math.exp %39 : vector<8x128xf32>
    %cst_16 = arith.constant 1.000000e+00 : f32
    %41 = vector.broadcast %cst_16 : f32 to vector<8x128xf32>
    %42 = arith.addf %41, %40 : vector<8x128xf32>
    %43 = arith.divf %41, %42 : vector<8x128xf32>
    %44 = arith.mulf %35, %12 : vector<8x128xf32>
    %45 = arith.mulf %29, %37 : vector<8x128xf32>
    %46 = arith.addf %44, %45 : vector<8x128xf32>
    %47 = math.tanh %46 : vector<8x128xf32>
    %48 = arith.mulf %43, %47 : vector<8x128xf32>
    %49 = arith.addi %7, %16 : i32
    %50 = vector.broadcast %49 : i32 to vector<8x1xi32>
    %51 = arith.cmpi sgt, %8, %50 : vector<8x1xi32>
    %52 = vector.shape_cast %51 : vector<8x1xi1> to vector<8x1xi1>
    %53 = vector.broadcast %52 : vector<8x1xi1> to vector<8x128xi1>
    %54 = arith.select %53, %48, %11 : vector<8x128xi1>, vector<8x128xf32>
    %55 = vector.shape_cast %51 : vector<8x1xi1> to vector<8x1xi1>
    %56 = vector.broadcast %55 : vector<8x1xi1> to vector<8x128xi1>
    %57 = arith.select %56, %46, %12 : vector<8x128xi1>, vector<8x128xf32>
    %cst_17 = arith.constant 0.000000e+00 : f32
    %58 = vector.shape_cast %51 : vector<8x1xi1> to vector<8x1xi1>
    %59 = vector.broadcast %58 : vector<8x1xi1> to vector<8x128xi1>
    %60 = vector.broadcast %cst_17 : f32 to vector<8x128xf32>
    %61 = arith.select %59, %48, %60 : vector<8x128xi1>, vector<8x128xf32>
    %62 = arith.index_cast %16 : i32 to index
    %c0_18 = arith.constant 0 : index
    %c0_19 = arith.constant 0 : index
    %63 = vector.load %arg5[%62, %c0_18, %c0_19] : memref<16x8x128xf32, #tpu.memory_space<vmem>>, vector<1x8x128xf32>
    %64 = vector.shape_cast %63 : vector<1x8x128xf32> to vector<8x128xf32>
    %65 = vector.shape_cast %61 : vector<8x128xf32> to vector<1x8x128xf32>
    tpu.vector_store %arg5[%62, %c0_18, %c0_19], %65 {strides = array<i32>} : memref<16x8x128xf32, #tpu.memory_space<vmem>>, vector<1x8x128xf32>,
    %c1_i32 = arith.constant 1 : i32
    %c2_i32_20 = arith.constant 2 : i32
    %66 = arith.muli %c2_i32_20, %c1_i32 : i32
    %c15_i32_21 = arith.constant 15 : i32
    %67 = arith.subi %c15_i32_21, %66 : i32
    %68 = arith.muli %arg0, %67 : i32
    %69 = arith.addi %c1_i32, %68 : i32
    %c8_i32_22 = arith.constant 8 : i32
    %70 = arith.muli %69, %c8_i32_22 : i32
    %71 = tpu.assume_multiple %70, 8 : i32
    %c0_23 = arith.constant 0 : index
    %72 = arith.index_cast %71 : i32 to index
    %c0_24 = arith.constant 0 : index
    %73 = vector.load %arg3[%c0_23, %72, %c0_24] : memref<1x128x512xf32, #tpu.memory_space<vmem>>, vector<1x8x512xf32>
    %74 = vector.shape_cast %73 : vector<1x8x512xf32> to vector<8x512xf32>
    %cst_25 = arith.constant dense<0.000000e+00> : vector<8x512xf32>
    %75 = tpu.matmul %54, %10, %cst_25 {dimension_numbers = #tpu.dot_dimension_numbers<[1], [0], [0], [1], [0, 0, 1, 1], [], []>} : vector<8x128xf32>, vector<128x512xf32>, vector<8x512xf32> -> vector<8x512xf32>
    %76 = arith.addf %74, %75 : vector<8x512xf32>
    %77 = vector.extract_strided_slice %76 {offsets = [0, 0], sizes = [8, 128], strides = [1, 1]} : vector<8x512xf32> to vector<8x128xf32>
    %78 = arith.negf %77 : vector<8x128xf32>
    %79 = math.exp %78 : vector<8x128xf32>
    %cst_26 = arith.constant 1.000000e+00 : f32
    %80 = vector.broadcast %cst_26 : f32 to vector<8x128xf32>
    %81 = arith.addf %80, %79 : vector<8x128xf32>
    %82 = arith.divf %80, %81 : vector<8x128xf32>
    %83 = vector.extract_strided_slice %76 {offsets = [0, 128], sizes = [8, 128], strides = [1, 1]} : vector<8x512xf32> to vector<8x128xf32>
    %84 = arith.negf %83 : vector<8x128xf32>
    %85 = math.exp %84 : vector<8x128xf32>
    %cst_27 = arith.constant 1.000000e+00 : f32
    %86 = vector.broadcast %cst_27 : f32 to vector<8x128xf32>
    %87 = arith.addf %86, %85 : vector<8x128xf32>
    %88 = arith.divf %86, %87 : vector<8x128xf32>
    %89 = vector.extract_strided_slice %76 {offsets = [0, 256], sizes = [8, 128], strides = [1, 1]} : vector<8x512xf32> to vector<8x128xf32>
    %90 = math.tanh %89 : vector<8x128xf32>
    %91 = vector.extract_strided_slice %76 {offsets = [0, 384], sizes = [8, 128], strides = [1, 1]} : vector<8x512xf32> to vector<8x128xf32>
    %92 = arith.negf %91 : vector<8x128xf32>
    %93 = math.exp %92 : vector<8x128xf32>
    %cst_28 = arith.constant 1.000000e+00 : f32
    %94 = vector.broadcast %cst_28 : f32 to vector<8x128xf32>
    %95 = arith.addf %94, %93 : vector<8x128xf32>
    %96 = arith.divf %94, %95 : vector<8x128xf32>
    %97 = arith.mulf %88, %57 : vector<8x128xf32>
    %98 = arith.mulf %82, %90 : vector<8x128xf32>
    %99 = arith.addf %97, %98 : vector<8x128xf32>
    %100 = math.tanh %99 : vector<8x128xf32>
    %101 = arith.mulf %96, %100 : vector<8x128xf32>
    %102 = arith.addi %7, %69 : i32
    %103 = vector.broadcast %102 : i32 to vector<8x1xi32>
    %104 = arith.cmpi sgt, %8, %103 : vector<8x1xi32>
    %105 = vector.shape_cast %104 : vector<8x1xi1> to vector<8x1xi1>
    %106 = vector.broadcast %105 : vector<8x1xi1> to vector<8x128xi1>
    %107 = arith.select %106, %101, %54 : vector<8x128xi1>, vector<8x128xf32>
    %108 = vector.shape_cast %104 : vector<8x1xi1> to vector<8x1xi1>
    %109 = vector.broadcast %108 : vector<8x1xi1> to vector<8x128xi1>
    %110 = arith.select %109, %99, %57 : vector<8x128xi1>, vector<8x128xf32>
    %cst_29 = arith.constant 0.000000e+00 : f32
    %111 = vector.shape_cast %104 : vector<8x1xi1> to vector<8x1xi1>
    %112 = vector.broadcast %111 : vector<8x1xi1> to vector<8x128xi1>
    %113 = vector.broadcast %cst_29 : f32 to vector<8x128xf32>
    %114 = arith.select %112, %101, %113 : vector<8x128xi1>, vector<8x128xf32>
    %115 = arith.index_cast %69 : i32 to index
    %c0_30 = arith.constant 0 : index
    %c0_31 = arith.constant 0 : index
    %116 = vector.load %arg5[%115, %c0_30, %c0_31] : memref<16x8x128xf32, #tpu.memory_space<vmem>>, vector<1x8x128xf32>
    %117 = vector.shape_cast %116 : vector<1x8x128xf32> to vector<8x128xf32>
    %118 = vector.shape_cast %114 : vector<8x128xf32> to vector<1x8x128xf32>
    tpu.vector_store %arg5[%115, %c0_30, %c0_31], %118 {strides = array<i32>} : memref<16x8x128xf32, #tpu.memory_space<vmem>>, vector<1x8x128xf32>,
    %c2_i32_32 = arith.constant 2 : i32
    %c2_i32_33 = arith.constant 2 : i32
    %119 = arith.muli %c2_i32_33, %c2_i32_32 : i32
    %c15_i32_34 = arith.constant 15 : i32
    %120 = arith.subi %c15_i32_34, %119 : i32
    %121 = arith.muli %arg0, %120 : i32
    %122 = arith.addi %c2_i32_32, %121 : i32
    %c8_i32_35 = arith.constant 8 : i32
    %123 = arith.muli %122, %c8_i32_35 : i32
    %124 = tpu.assume_multiple %123, 8 : i32
    %c0_36 = arith.constant 0 : index
    %125 = arith.index_cast %124 : i32 to index
    %c0_37 = arith.constant 0 : index
    %126 = vector.load %arg3[%c0_36, %125, %c0_37] : memref<1x128x512xf32, #tpu.memory_space<vmem>>, vector<1x8x512xf32>
    %127 = vector.shape_cast %126 : vector<1x8x512xf32> to vector<8x512xf32>
    %cst_38 = arith.constant dense<0.000000e+00> : vector<8x512xf32>
    %128 = tpu.matmul %107, %10, %cst_38 {dimension_numbers = #tpu.dot_dimension_numbers<[1], [0], [0], [1], [0, 0, 1, 1], [], []>} : vector<8x128xf32>, vector<128x512xf32>, vector<8x512xf32> -> vector<8x512xf32>
    %129 = arith.addf %127, %128 : vector<8x512xf32>
    %130 = vector.extract_strided_slice %129 {offsets = [0, 0], sizes = [8, 128], strides = [1, 1]} : vector<8x512xf32> to vector<8x128xf32>
    %131 = arith.negf %130 : vector<8x128xf32>
    %132 = math.exp %131 : vector<8x128xf32>
    %cst_39 = arith.constant 1.000000e+00 : f32
    %133 = vector.broadcast %cst_39 : f32 to vector<8x128xf32>
    %134 = arith.addf %133, %132 : vector<8x128xf32>
    %135 = arith.divf %133, %134 : vector<8x128xf32>
    %136 = vector.extract_strided_slice %129 {offsets = [0, 128], sizes = [8, 128], strides = [1, 1]} : vector<8x512xf32> to vector<8x128xf32>
    %137 = arith.negf %136 : vector<8x128xf32>
    %138 = math.exp %137 : vector<8x128xf32>
    %cst_40 = arith.constant 1.000000e+00 : f32
    %139 = vector.broadcast %cst_40 : f32 to vector<8x128xf32>
    %140 = arith.addf %139, %138 : vector<8x128xf32>
    %141 = arith.divf %139, %140 : vector<8x128xf32>
    %142 = vector.extract_strided_slice %129 {offsets = [0, 256], sizes = [8, 128], strides = [1, 1]} : vector<8x512xf32> to vector<8x128xf32>
    %143 = math.tanh %142 : vector<8x128xf32>
    %144 = vector.extract_strided_slice %129 {offsets = [0, 384], sizes = [8, 128], strides = [1, 1]} : vector<8x512xf32> to vector<8x128xf32>
    %145 = arith.negf %144 : vector<8x128xf32>
    %146 = math.exp %145 : vector<8x128xf32>
    %cst_41 = arith.constant 1.000000e+00 : f32
    %147 = vector.broadcast %cst_41 : f32 to vector<8x128xf32>
    %148 = arith.addf %147, %146 : vector<8x128xf32>
    %149 = arith.divf %147, %148 : vector<8x128xf32>
    %150 = arith.mulf %141, %110 : vector<8x128xf32>
    %151 = arith.mulf %135, %143 : vector<8x128xf32>
    %152 = arith.addf %150, %151 : vector<8x128xf32>
    %153 = math.tanh %152 : vector<8x128xf32>
    %154 = arith.mulf %149, %153 : vector<8x128xf32>
    %155 = arith.addi %7, %122 : i32
    %156 = vector.broadcast %155 : i32 to vector<8x1xi32>
    %157 = arith.cmpi sgt, %8, %156 : vector<8x1xi32>
    %158 = vector.shape_cast %157 : vector<8x1xi1> to vector<8x1xi1>
    %159 = vector.broadcast %158 : vector<8x1xi1> to vector<8x128xi1>
    %160 = arith.select %159, %154, %107 : vector<8x128xi1>, vector<8x128xf32>
    %161 = vector.shape_cast %157 : vector<8x1xi1> to vector<8x1xi1>
    %162 = vector.broadcast %161 : vector<8x1xi1> to vector<8x128xi1>
    %163 = arith.select %162, %152, %110 : vector<8x128xi1>, vector<8x128xf32>
    %cst_42 = arith.constant 0.000000e+00 : f32
    %164 = vector.shape_cast %157 : vector<8x1xi1> to vector<8x1xi1>
    %165 = vector.broadcast %164 : vector<8x1xi1> to vector<8x128xi1>
    %166 = vector.broadcast %cst_42 : f32 to vector<8x128xf32>
    %167 = arith.select %165, %154, %166 : vector<8x128xi1>, vector<8x128xf32>
    %168 = arith.index_cast %122 : i32 to index
    %c0_43 = arith.constant 0 : index
    %c0_44 = arith.constant 0 : index
    %169 = vector.load %arg5[%168, %c0_43, %c0_44] : memref<16x8x128xf32, #tpu.memory_space<vmem>>, vector<1x8x128xf32>
    %170 = vector.shape_cast %169 : vector<1x8x128xf32> to vector<8x128xf32>
    %171 = vector.shape_cast %167 : vector<8x128xf32> to vector<1x8x128xf32>
    tpu.vector_store %arg5[%168, %c0_43, %c0_44], %171 {strides = array<i32>} : memref<16x8x128xf32, #tpu.memory_space<vmem>>, vector<1x8x128xf32>,
    %c3_i32 = arith.constant 3 : i32
    %c2_i32_45 = arith.constant 2 : i32
    %172 = arith.muli %c2_i32_45, %c3_i32 : i32
    %c15_i32_46 = arith.constant 15 : i32
    %173 = arith.subi %c15_i32_46, %172 : i32
    %174 = arith.muli %arg0, %173 : i32
    %175 = arith.addi %c3_i32, %174 : i32
    %c8_i32_47 = arith.constant 8 : i32
    %176 = arith.muli %175, %c8_i32_47 : i32
    %177 = tpu.assume_multiple %176, 8 : i32
    %c0_48 = arith.constant 0 : index
    %178 = arith.index_cast %177 : i32 to index
    %c0_49 = arith.constant 0 : index
    %179 = vector.load %arg3[%c0_48, %178, %c0_49] : memref<1x128x512xf32, #tpu.memory_space<vmem>>, vector<1x8x512xf32>
    %180 = vector.shape_cast %179 : vector<1x8x512xf32> to vector<8x512xf32>
    %cst_50 = arith.constant dense<0.000000e+00> : vector<8x512xf32>
    %181 = tpu.matmul %160, %10, %cst_50 {dimension_numbers = #tpu.dot_dimension_numbers<[1], [0], [0], [1], [0, 0, 1, 1], [], []>} : vector<8x128xf32>, vector<128x512xf32>, vector<8x512xf32> -> vector<8x512xf32>
    %182 = arith.addf %180, %181 : vector<8x512xf32>
    %183 = vector.extract_strided_slice %182 {offsets = [0, 0], sizes = [8, 128], strides = [1, 1]} : vector<8x512xf32> to vector<8x128xf32>
    %184 = arith.negf %183 : vector<8x128xf32>
    %185 = math.exp %184 : vector<8x128xf32>
    %cst_51 = arith.constant 1.000000e+00 : f32
    %186 = vector.broadcast %cst_51 : f32 to vector<8x128xf32>
    %187 = arith.addf %186, %185 : vector<8x128xf32>
    %188 = arith.divf %186, %187 : vector<8x128xf32>
    %189 = vector.extract_strided_slice %182 {offsets = [0, 128], sizes = [8, 128], strides = [1, 1]} : vector<8x512xf32> to vector<8x128xf32>
    %190 = arith.negf %189 : vector<8x128xf32>
    %191 = math.exp %190 : vector<8x128xf32>
    %cst_52 = arith.constant 1.000000e+00 : f32
    %192 = vector.broadcast %cst_52 : f32 to vector<8x128xf32>
    %193 = arith.addf %192, %191 : vector<8x128xf32>
    %194 = arith.divf %192, %193 : vector<8x128xf32>
    %195 = vector.extract_strided_slice %182 {offsets = [0, 256], sizes = [8, 128], strides = [1, 1]} : vector<8x512xf32> to vector<8x128xf32>
    %196 = math.tanh %195 : vector<8x128xf32>
    %197 = vector.extract_strided_slice %182 {offsets = [0, 384], sizes = [8, 128], strides = [1, 1]} : vector<8x512xf32> to vector<8x128xf32>
    %198 = arith.negf %197 : vector<8x128xf32>
    %199 = math.exp %198 : vector<8x128xf32>
    %cst_53 = arith.constant 1.000000e+00 : f32
    %200 = vector.broadcast %cst_53 : f32 to vector<8x128xf32>
    %201 = arith.addf %200, %199 : vector<8x128xf32>
    %202 = arith.divf %200, %201 : vector<8x128xf32>
    %203 = arith.mulf %194, %163 : vector<8x128xf32>
    %204 = arith.mulf %188, %196 : vector<8x128xf32>
    %205 = arith.addf %203, %204 : vector<8x128xf32>
    %206 = math.tanh %205 : vector<8x128xf32>
    %207 = arith.mulf %202, %206 : vector<8x128xf32>
    %208 = arith.addi %7, %175 : i32
    %209 = vector.broadcast %208 : i32 to vector<8x1xi32>
    %210 = arith.cmpi sgt, %8, %209 : vector<8x1xi32>
    %211 = vector.shape_cast %210 : vector<8x1xi1> to vector<8x1xi1>
    %212 = vector.broadcast %211 : vector<8x1xi1> to vector<8x128xi1>
    %213 = arith.select %212, %207, %160 : vector<8x128xi1>, vector<8x128xf32>
    %214 = vector.shape_cast %210 : vector<8x1xi1> to vector<8x1xi1>
    %215 = vector.broadcast %214 : vector<8x1xi1> to vector<8x128xi1>
    %216 = arith.select %215, %205, %163 : vector<8x128xi1>, vector<8x128xf32>
    %cst_54 = arith.constant 0.000000e+00 : f32
    %217 = vector.shape_cast %210 : vector<8x1xi1> to vector<8x1xi1>
    %218 = vector.broadcast %217 : vector<8x1xi1> to vector<8x128xi1>
    %219 = vector.broadcast %cst_54 : f32 to vector<8x128xf32>
    %220 = arith.select %218, %207, %219 : vector<8x128xi1>, vector<8x128xf32>
    %221 = arith.index_cast %175 : i32 to index
    %c0_55 = arith.constant 0 : index
    %c0_56 = arith.constant 0 : index
    %222 = vector.load %arg5[%221, %c0_55, %c0_56] : memref<16x8x128xf32, #tpu.memory_space<vmem>>, vector<1x8x128xf32>
    %223 = vector.shape_cast %222 : vector<1x8x128xf32> to vector<8x128xf32>
    %224 = vector.shape_cast %220 : vector<8x128xf32> to vector<1x8x128xf32>
    tpu.vector_store %arg5[%221, %c0_55, %c0_56], %224 {strides = array<i32>} : memref<16x8x128xf32, #tpu.memory_space<vmem>>, vector<1x8x128xf32>,
    %c4_i32 = arith.constant 4 : i32
    %c2_i32_57 = arith.constant 2 : i32
    %225 = arith.muli %c2_i32_57, %c4_i32 : i32
    %c15_i32_58 = arith.constant 15 : i32
    %226 = arith.subi %c15_i32_58, %225 : i32
    %227 = arith.muli %arg0, %226 : i32
    %228 = arith.addi %c4_i32, %227 : i32
    %c8_i32_59 = arith.constant 8 : i32
    %229 = arith.muli %228, %c8_i32_59 : i32
    %230 = tpu.assume_multiple %229, 8 : i32
    %c0_60 = arith.constant 0 : index
    %231 = arith.index_cast %230 : i32 to index
    %c0_61 = arith.constant 0 : index
    %232 = vector.load %arg3[%c0_60, %231, %c0_61] : memref<1x128x512xf32, #tpu.memory_space<vmem>>, vector<1x8x512xf32>
    %233 = vector.shape_cast %232 : vector<1x8x512xf32> to vector<8x512xf32>
    %cst_62 = arith.constant dense<0.000000e+00> : vector<8x512xf32>
    %234 = tpu.matmul %213, %10, %cst_62 {dimension_numbers = #tpu.dot_dimension_numbers<[1], [0], [0], [1], [0, 0, 1, 1], [], []>} : vector<8x128xf32>, vector<128x512xf32>, vector<8x512xf32> -> vector<8x512xf32>
    %235 = arith.addf %233, %234 : vector<8x512xf32>
    %236 = vector.extract_strided_slice %235 {offsets = [0, 0], sizes = [8, 128], strides = [1, 1]} : vector<8x512xf32> to vector<8x128xf32>
    %237 = arith.negf %236 : vector<8x128xf32>
    %238 = math.exp %237 : vector<8x128xf32>
    %cst_63 = arith.constant 1.000000e+00 : f32
    %239 = vector.broadcast %cst_63 : f32 to vector<8x128xf32>
    %240 = arith.addf %239, %238 : vector<8x128xf32>
    %241 = arith.divf %239, %240 : vector<8x128xf32>
    %242 = vector.extract_strided_slice %235 {offsets = [0, 128], sizes = [8, 128], strides = [1, 1]} : vector<8x512xf32> to vector<8x128xf32>
    %243 = arith.negf %242 : vector<8x128xf32>
    %244 = math.exp %243 : vector<8x128xf32>
    %cst_64 = arith.constant 1.000000e+00 : f32
    %245 = vector.broadcast %cst_64 : f32 to vector<8x128xf32>
    %246 = arith.addf %245, %244 : vector<8x128xf32>
    %247 = arith.divf %245, %246 : vector<8x128xf32>
    %248 = vector.extract_strided_slice %235 {offsets = [0, 256], sizes = [8, 128], strides = [1, 1]} : vector<8x512xf32> to vector<8x128xf32>
    %249 = math.tanh %248 : vector<8x128xf32>
    %250 = vector.extract_strided_slice %235 {offsets = [0, 384], sizes = [8, 128], strides = [1, 1]} : vector<8x512xf32> to vector<8x128xf32>
    %251 = arith.negf %250 : vector<8x128xf32>
    %252 = math.exp %251 : vector<8x128xf32>
    %cst_65 = arith.constant 1.000000e+00 : f32
    %253 = vector.broadcast %cst_65 : f32 to vector<8x128xf32>
    %254 = arith.addf %253, %252 : vector<8x128xf32>
    %255 = arith.divf %253, %254 : vector<8x128xf32>
    %256 = arith.mulf %247, %216 : vector<8x128xf32>
    %257 = arith.mulf %241, %249 : vector<8x128xf32>
    %258 = arith.addf %256, %257 : vector<8x128xf32>
    %259 = math.tanh %258 : vector<8x128xf32>
    %260 = arith.mulf %255, %259 : vector<8x128xf32>
    %261 = arith.addi %7, %228 : i32
    %262 = vector.broadcast %261 : i32 to vector<8x1xi32>
    %263 = arith.cmpi sgt, %8, %262 : vector<8x1xi32>
    %264 = vector.shape_cast %263 : vector<8x1xi1> to vector<8x1xi1>
    %265 = vector.broadcast %264 : vector<8x1xi1> to vector<8x128xi1>
    %266 = arith.select %265, %260, %213 : vector<8x128xi1>, vector<8x128xf32>
    %267 = vector.shape_cast %263 : vector<8x1xi1> to vector<8x1xi1>
    %268 = vector.broadcast %267 : vector<8x1xi1> to vector<8x128xi1>
    %269 = arith.select %268, %258, %216 : vector<8x128xi1>, vector<8x128xf32>
    %cst_66 = arith.constant 0.000000e+00 : f32
    %270 = vector.shape_cast %263 : vector<8x1xi1> to vector<8x1xi1>
    %271 = vector.broadcast %270 : vector<8x1xi1> to vector<8x128xi1>
    %272 = vector.broadcast %cst_66 : f32 to vector<8x128xf32>
    %273 = arith.select %271, %260, %272 : vector<8x128xi1>, vector<8x128xf32>
    %274 = arith.index_cast %228 : i32 to index
    %c0_67 = arith.constant 0 : index
    %c0_68 = arith.constant 0 : index
    %275 = vector.load %arg5[%274, %c0_67, %c0_68] : memref<16x8x128xf32, #tpu.memory_space<vmem>>, vector<1x8x128xf32>
    %276 = vector.shape_cast %275 : vector<1x8x128xf32> to vector<8x128xf32>
    %277 = vector.shape_cast %273 : vector<8x128xf32> to vector<1x8x128xf32>
    tpu.vector_store %arg5[%274, %c0_67, %c0_68], %277 {strides = array<i32>} : memref<16x8x128xf32, #tpu.memory_space<vmem>>, vector<1x8x128xf32>,
    %c5_i32 = arith.constant 5 : i32
    %c2_i32_69 = arith.constant 2 : i32
    %278 = arith.muli %c2_i32_69, %c5_i32 : i32
    %c15_i32_70 = arith.constant 15 : i32
    %279 = arith.subi %c15_i32_70, %278 : i32
    %280 = arith.muli %arg0, %279 : i32
    %281 = arith.addi %c5_i32, %280 : i32
    %c8_i32_71 = arith.constant 8 : i32
    %282 = arith.muli %281, %c8_i32_71 : i32
    %283 = tpu.assume_multiple %282, 8 : i32
    %c0_72 = arith.constant 0 : index
    %284 = arith.index_cast %283 : i32 to index
    %c0_73 = arith.constant 0 : index
    %285 = vector.load %arg3[%c0_72, %284, %c0_73] : memref<1x128x512xf32, #tpu.memory_space<vmem>>, vector<1x8x512xf32>
    %286 = vector.shape_cast %285 : vector<1x8x512xf32> to vector<8x512xf32>
    %cst_74 = arith.constant dense<0.000000e+00> : vector<8x512xf32>
    %287 = tpu.matmul %266, %10, %cst_74 {dimension_numbers = #tpu.dot_dimension_numbers<[1], [0], [0], [1], [0, 0, 1, 1], [], []>} : vector<8x128xf32>, vector<128x512xf32>, vector<8x512xf32> -> vector<8x512xf32>
    %288 = arith.addf %286, %287 : vector<8x512xf32>
    %289 = vector.extract_strided_slice %288 {offsets = [0, 0], sizes = [8, 128], strides = [1, 1]} : vector<8x512xf32> to vector<8x128xf32>
    %290 = arith.negf %289 : vector<8x128xf32>
    %291 = math.exp %290 : vector<8x128xf32>
    %cst_75 = arith.constant 1.000000e+00 : f32
    %292 = vector.broadcast %cst_75 : f32 to vector<8x128xf32>
    %293 = arith.addf %292, %291 : vector<8x128xf32>
    %294 = arith.divf %292, %293 : vector<8x128xf32>
    %295 = vector.extract_strided_slice %288 {offsets = [0, 128], sizes = [8, 128], strides = [1, 1]} : vector<8x512xf32> to vector<8x128xf32>
    %296 = arith.negf %295 : vector<8x128xf32>
    %297 = math.exp %296 : vector<8x128xf32>
    %cst_76 = arith.constant 1.000000e+00 : f32
    %298 = vector.broadcast %cst_76 : f32 to vector<8x128xf32>
    %299 = arith.addf %298, %297 : vector<8x128xf32>
    %300 = arith.divf %298, %299 : vector<8x128xf32>
    %301 = vector.extract_strided_slice %288 {offsets = [0, 256], sizes = [8, 128], strides = [1, 1]} : vector<8x512xf32> to vector<8x128xf32>
    %302 = math.tanh %301 : vector<8x128xf32>
    %303 = vector.extract_strided_slice %288 {offsets = [0, 384], sizes = [8, 128], strides = [1, 1]} : vector<8x512xf32> to vector<8x128xf32>
    %304 = arith.negf %303 : vector<8x128xf32>
    %305 = math.exp %304 : vector<8x128xf32>
    %cst_77 = arith.constant 1.000000e+00 : f32
    %306 = vector.broadcast %cst_77 : f32 to vector<8x128xf32>
    %307 = arith.addf %306, %305 : vector<8x128xf32>
    %308 = arith.divf %306, %307 : vector<8x128xf32>
    %309 = arith.mulf %300, %269 : vector<8x128xf32>
    %310 = arith.mulf %294, %302 : vector<8x128xf32>
    %311 = arith.addf %309, %310 : vector<8x128xf32>
    %312 = math.tanh %311 : vector<8x128xf32>
    %313 = arith.mulf %308, %312 : vector<8x128xf32>
    %314 = arith.addi %7, %281 : i32
    %315 = vector.broadcast %314 : i32 to vector<8x1xi32>
    %316 = arith.cmpi sgt, %8, %315 : vector<8x1xi32>
    %317 = vector.shape_cast %316 : vector<8x1xi1> to vector<8x1xi1>
    %318 = vector.broadcast %317 : vector<8x1xi1> to vector<8x128xi1>
    %319 = arith.select %318, %313, %266 : vector<8x128xi1>, vector<8x128xf32>
    %320 = vector.shape_cast %316 : vector<8x1xi1> to vector<8x1xi1>
    %321 = vector.broadcast %320 : vector<8x1xi1> to vector<8x128xi1>
    %322 = arith.select %321, %311, %269 : vector<8x128xi1>, vector<8x128xf32>
    %cst_78 = arith.constant 0.000000e+00 : f32
    %323 = vector.shape_cast %316 : vector<8x1xi1> to vector<8x1xi1>
    %324 = vector.broadcast %323 : vector<8x1xi1> to vector<8x128xi1>
    %325 = vector.broadcast %cst_78 : f32 to vector<8x128xf32>
    %326 = arith.select %324, %313, %325 : vector<8x128xi1>, vector<8x128xf32>
    %327 = arith.index_cast %281 : i32 to index
    %c0_79 = arith.constant 0 : index
    %c0_80 = arith.constant 0 : index
    %328 = vector.load %arg5[%327, %c0_79, %c0_80] : memref<16x8x128xf32, #tpu.memory_space<vmem>>, vector<1x8x128xf32>
    %329 = vector.shape_cast %328 : vector<1x8x128xf32> to vector<8x128xf32>
    %330 = vector.shape_cast %326 : vector<8x128xf32> to vector<1x8x128xf32>
    tpu.vector_store %arg5[%327, %c0_79, %c0_80], %330 {strides = array<i32>} : memref<16x8x128xf32, #tpu.memory_space<vmem>>, vector<1x8x128xf32>,
    %c6_i32 = arith.constant 6 : i32
    %c2_i32_81 = arith.constant 2 : i32
    %331 = arith.muli %c2_i32_81, %c6_i32 : i32
    %c15_i32_82 = arith.constant 15 : i32
    %332 = arith.subi %c15_i32_82, %331 : i32
    %333 = arith.muli %arg0, %332 : i32
    %334 = arith.addi %c6_i32, %333 : i32
    %c8_i32_83 = arith.constant 8 : i32
    %335 = arith.muli %334, %c8_i32_83 : i32
    %336 = tpu.assume_multiple %335, 8 : i32
    %c0_84 = arith.constant 0 : index
    %337 = arith.index_cast %336 : i32 to index
    %c0_85 = arith.constant 0 : index
    %338 = vector.load %arg3[%c0_84, %337, %c0_85] : memref<1x128x512xf32, #tpu.memory_space<vmem>>, vector<1x8x512xf32>
    %339 = vector.shape_cast %338 : vector<1x8x512xf32> to vector<8x512xf32>
    %cst_86 = arith.constant dense<0.000000e+00> : vector<8x512xf32>
    %340 = tpu.matmul %319, %10, %cst_86 {dimension_numbers = #tpu.dot_dimension_numbers<[1], [0], [0], [1], [0, 0, 1, 1], [], []>} : vector<8x128xf32>, vector<128x512xf32>, vector<8x512xf32> -> vector<8x512xf32>
    %341 = arith.addf %339, %340 : vector<8x512xf32>
    %342 = vector.extract_strided_slice %341 {offsets = [0, 0], sizes = [8, 128], strides = [1, 1]} : vector<8x512xf32> to vector<8x128xf32>
    %343 = arith.negf %342 : vector<8x128xf32>
    %344 = math.exp %343 : vector<8x128xf32>
    %cst_87 = arith.constant 1.000000e+00 : f32
    %345 = vector.broadcast %cst_87 : f32 to vector<8x128xf32>
    %346 = arith.addf %345, %344 : vector<8x128xf32>
    %347 = arith.divf %345, %346 : vector<8x128xf32>
    %348 = vector.extract_strided_slice %341 {offsets = [0, 128], sizes = [8, 128], strides = [1, 1]} : vector<8x512xf32> to vector<8x128xf32>
    %349 = arith.negf %348 : vector<8x128xf32>
    %350 = math.exp %349 : vector<8x128xf32>
    %cst_88 = arith.constant 1.000000e+00 : f32
    %351 = vector.broadcast %cst_88 : f32 to vector<8x128xf32>
    %352 = arith.addf %351, %350 : vector<8x128xf32>
    %353 = arith.divf %351, %352 : vector<8x128xf32>
    %354 = vector.extract_strided_slice %341 {offsets = [0, 256], sizes = [8, 128], strides = [1, 1]} : vector<8x512xf32> to vector<8x128xf32>
    %355 = math.tanh %354 : vector<8x128xf32>
    %356 = vector.extract_strided_slice %341 {offsets = [0, 384], sizes = [8, 128], strides = [1, 1]} : vector<8x512xf32> to vector<8x128xf32>
    %357 = arith.negf %356 : vector<8x128xf32>
    %358 = math.exp %357 : vector<8x128xf32>
    %cst_89 = arith.constant 1.000000e+00 : f32
    %359 = vector.broadcast %cst_89 : f32 to vector<8x128xf32>
    %360 = arith.addf %359, %358 : vector<8x128xf32>
    %361 = arith.divf %359, %360 : vector<8x128xf32>
    %362 = arith.mulf %353, %322 : vector<8x128xf32>
    %363 = arith.mulf %347, %355 : vector<8x128xf32>
    %364 = arith.addf %362, %363 : vector<8x128xf32>
    %365 = math.tanh %364 : vector<8x128xf32>
    %366 = arith.mulf %361, %365 : vector<8x128xf32>
    %367 = arith.addi %7, %334 : i32
    %368 = vector.broadcast %367 : i32 to vector<8x1xi32>
    %369 = arith.cmpi sgt, %8, %368 : vector<8x1xi32>
    %370 = vector.shape_cast %369 : vector<8x1xi1> to vector<8x1xi1>
    %371 = vector.broadcast %370 : vector<8x1xi1> to vector<8x128xi1>
    %372 = arith.select %371, %366, %319 : vector<8x128xi1>, vector<8x128xf32>
    %373 = vector.shape_cast %369 : vector<8x1xi1> to vector<8x1xi1>
    %374 = vector.broadcast %373 : vector<8x1xi1> to vector<8x128xi1>
    %375 = arith.select %374, %364, %322 : vector<8x128xi1>, vector<8x128xf32>
    %cst_90 = arith.constant 0.000000e+00 : f32
    %376 = vector.shape_cast %369 : vector<8x1xi1> to vector<8x1xi1>
    %377 = vector.broadcast %376 : vector<8x1xi1> to vector<8x128xi1>
    %378 = vector.broadcast %cst_90 : f32 to vector<8x128xf32>
    %379 = arith.select %377, %366, %378 : vector<8x128xi1>, vector<8x128xf32>
    %380 = arith.index_cast %334 : i32 to index
    %c0_91 = arith.constant 0 : index
    %c0_92 = arith.constant 0 : index
    %381 = vector.load %arg5[%380, %c0_91, %c0_92] : memref<16x8x128xf32, #tpu.memory_space<vmem>>, vector<1x8x128xf32>
    %382 = vector.shape_cast %381 : vector<1x8x128xf32> to vector<8x128xf32>
    %383 = vector.shape_cast %379 : vector<8x128xf32> to vector<1x8x128xf32>
    tpu.vector_store %arg5[%380, %c0_91, %c0_92], %383 {strides = array<i32>} : memref<16x8x128xf32, #tpu.memory_space<vmem>>, vector<1x8x128xf32>,
    %c7_i32 = arith.constant 7 : i32
    %c2_i32_93 = arith.constant 2 : i32
    %384 = arith.muli %c2_i32_93, %c7_i32 : i32
    %c15_i32_94 = arith.constant 15 : i32
    %385 = arith.subi %c15_i32_94, %384 : i32
    %386 = arith.muli %arg0, %385 : i32
    %387 = arith.addi %c7_i32, %386 : i32
    %c8_i32_95 = arith.constant 8 : i32
    %388 = arith.muli %387, %c8_i32_95 : i32
    %389 = tpu.assume_multiple %388, 8 : i32
    %c0_96 = arith.constant 0 : index
    %390 = arith.index_cast %389 : i32 to index
    %c0_97 = arith.constant 0 : index
    %391 = vector.load %arg3[%c0_96, %390, %c0_97] : memref<1x128x512xf32, #tpu.memory_space<vmem>>, vector<1x8x512xf32>
    %392 = vector.shape_cast %391 : vector<1x8x512xf32> to vector<8x512xf32>
    %cst_98 = arith.constant dense<0.000000e+00> : vector<8x512xf32>
    %393 = tpu.matmul %372, %10, %cst_98 {dimension_numbers = #tpu.dot_dimension_numbers<[1], [0], [0], [1], [0, 0, 1, 1], [], []>} : vector<8x128xf32>, vector<128x512xf32>, vector<8x512xf32> -> vector<8x512xf32>
    %394 = arith.addf %392, %393 : vector<8x512xf32>
    %395 = vector.extract_strided_slice %394 {offsets = [0, 0], sizes = [8, 128], strides = [1, 1]} : vector<8x512xf32> to vector<8x128xf32>
    %396 = arith.negf %395 : vector<8x128xf32>
    %397 = math.exp %396 : vector<8x128xf32>
    %cst_99 = arith.constant 1.000000e+00 : f32
    %398 = vector.broadcast %cst_99 : f32 to vector<8x128xf32>
    %399 = arith.addf %398, %397 : vector<8x128xf32>
    %400 = arith.divf %398, %399 : vector<8x128xf32>
    %401 = vector.extract_strided_slice %394 {offsets = [0, 128], sizes = [8, 128], strides = [1, 1]} : vector<8x512xf32> to vector<8x128xf32>
    %402 = arith.negf %401 : vector<8x128xf32>
    %403 = math.exp %402 : vector<8x128xf32>
    %cst_100 = arith.constant 1.000000e+00 : f32
    %404 = vector.broadcast %cst_100 : f32 to vector<8x128xf32>
    %405 = arith.addf %404, %403 : vector<8x128xf32>
    %406 = arith.divf %404, %405 : vector<8x128xf32>
    %407 = vector.extract_strided_slice %394 {offsets = [0, 256], sizes = [8, 128], strides = [1, 1]} : vector<8x512xf32> to vector<8x128xf32>
    %408 = math.tanh %407 : vector<8x128xf32>
    %409 = vector.extract_strided_slice %394 {offsets = [0, 384], sizes = [8, 128], strides = [1, 1]} : vector<8x512xf32> to vector<8x128xf32>
    %410 = arith.negf %409 : vector<8x128xf32>
    %411 = math.exp %410 : vector<8x128xf32>
    %cst_101 = arith.constant 1.000000e+00 : f32
    %412 = vector.broadcast %cst_101 : f32 to vector<8x128xf32>
    %413 = arith.addf %412, %411 : vector<8x128xf32>
    %414 = arith.divf %412, %413 : vector<8x128xf32>
    %415 = arith.mulf %406, %375 : vector<8x128xf32>
    %416 = arith.mulf %400, %408 : vector<8x128xf32>
    %417 = arith.addf %415, %416 : vector<8x128xf32>
    %418 = math.tanh %417 : vector<8x128xf32>
    %419 = arith.mulf %414, %418 : vector<8x128xf32>
    %420 = arith.addi %7, %387 : i32
    %421 = vector.broadcast %420 : i32 to vector<8x1xi32>
    %422 = arith.cmpi sgt, %8, %421 : vector<8x1xi32>
    %423 = vector.shape_cast %422 : vector<8x1xi1> to vector<8x1xi1>
    %424 = vector.broadcast %423 : vector<8x1xi1> to vector<8x128xi1>
    %425 = arith.select %424, %419, %372 : vector<8x128xi1>, vector<8x128xf32>
    %426 = vector.shape_cast %422 : vector<8x1xi1> to vector<8x1xi1>
    %427 = vector.broadcast %426 : vector<8x1xi1> to vector<8x128xi1>
    %428 = arith.select %427, %417, %375 : vector<8x128xi1>, vector<8x128xf32>
    %cst_102 = arith.constant 0.000000e+00 : f32
    %429 = vector.shape_cast %422 : vector<8x1xi1> to vector<8x1xi1>
    %430 = vector.broadcast %429 : vector<8x1xi1> to vector<8x128xi1>
    %431 = vector.broadcast %cst_102 : f32 to vector<8x128xf32>
    %432 = arith.select %430, %419, %431 : vector<8x128xi1>, vector<8x128xf32>
    %433 = arith.index_cast %387 : i32 to index
    %c0_103 = arith.constant 0 : index
    %c0_104 = arith.constant 0 : index
    %434 = vector.load %arg5[%433, %c0_103, %c0_104] : memref<16x8x128xf32, #tpu.memory_space<vmem>>, vector<1x8x128xf32>
    %435 = vector.shape_cast %434 : vector<1x8x128xf32> to vector<8x128xf32>
    %436 = vector.shape_cast %432 : vector<8x128xf32> to vector<1x8x128xf32>
    tpu.vector_store %arg5[%433, %c0_103, %c0_104], %436 {strides = array<i32>} : memref<16x8x128xf32, #tpu.memory_space<vmem>>, vector<1x8x128xf32>,
    %c8_i32_105 = arith.constant 8 : i32
    %c2_i32_106 = arith.constant 2 : i32
    %437 = arith.muli %c2_i32_106, %c8_i32_105 : i32
    %c15_i32_107 = arith.constant 15 : i32
    %438 = arith.subi %c15_i32_107, %437 : i32
    %439 = arith.muli %arg0, %438 : i32
    %440 = arith.addi %c8_i32_105, %439 : i32
    %c8_i32_108 = arith.constant 8 : i32
    %441 = arith.muli %440, %c8_i32_108 : i32
    %442 = tpu.assume_multiple %441, 8 : i32
    %c0_109 = arith.constant 0 : index
    %443 = arith.index_cast %442 : i32 to index
    %c0_110 = arith.constant 0 : index
    %444 = vector.load %arg3[%c0_109, %443, %c0_110] : memref<1x128x512xf32, #tpu.memory_space<vmem>>, vector<1x8x512xf32>
    %445 = vector.shape_cast %444 : vector<1x8x512xf32> to vector<8x512xf32>
    %cst_111 = arith.constant dense<0.000000e+00> : vector<8x512xf32>
    %446 = tpu.matmul %425, %10, %cst_111 {dimension_numbers = #tpu.dot_dimension_numbers<[1], [0], [0], [1], [0, 0, 1, 1], [], []>} : vector<8x128xf32>, vector<128x512xf32>, vector<8x512xf32> -> vector<8x512xf32>
    %447 = arith.addf %445, %446 : vector<8x512xf32>
    %448 = vector.extract_strided_slice %447 {offsets = [0, 0], sizes = [8, 128], strides = [1, 1]} : vector<8x512xf32> to vector<8x128xf32>
    %449 = arith.negf %448 : vector<8x128xf32>
    %450 = math.exp %449 : vector<8x128xf32>
    %cst_112 = arith.constant 1.000000e+00 : f32
    %451 = vector.broadcast %cst_112 : f32 to vector<8x128xf32>
    %452 = arith.addf %451, %450 : vector<8x128xf32>
    %453 = arith.divf %451, %452 : vector<8x128xf32>
    %454 = vector.extract_strided_slice %447 {offsets = [0, 128], sizes = [8, 128], strides = [1, 1]} : vector<8x512xf32> to vector<8x128xf32>
    %455 = arith.negf %454 : vector<8x128xf32>
    %456 = math.exp %455 : vector<8x128xf32>
    %cst_113 = arith.constant 1.000000e+00 : f32
    %457 = vector.broadcast %cst_113 : f32 to vector<8x128xf32>
    %458 = arith.addf %457, %456 : vector<8x128xf32>
    %459 = arith.divf %457, %458 : vector<8x128xf32>
    %460 = vector.extract_strided_slice %447 {offsets = [0, 256], sizes = [8, 128], strides = [1, 1]} : vector<8x512xf32> to vector<8x128xf32>
    %461 = math.tanh %460 : vector<8x128xf32>
    %462 = vector.extract_strided_slice %447 {offsets = [0, 384], sizes = [8, 128], strides = [1, 1]} : vector<8x512xf32> to vector<8x128xf32>
    %463 = arith.negf %462 : vector<8x128xf32>
    %464 = math.exp %463 : vector<8x128xf32>
    %cst_114 = arith.constant 1.000000e+00 : f32
    %465 = vector.broadcast %cst_114 : f32 to vector<8x128xf32>
    %466 = arith.addf %465, %464 : vector<8x128xf32>
    %467 = arith.divf %465, %466 : vector<8x128xf32>
    %468 = arith.mulf %459, %428 : vector<8x128xf32>
    %469 = arith.mulf %453, %461 : vector<8x128xf32>
    %470 = arith.addf %468, %469 : vector<8x128xf32>
    %471 = math.tanh %470 : vector<8x128xf32>
    %472 = arith.mulf %467, %471 : vector<8x128xf32>
    %473 = arith.addi %7, %440 : i32
    %474 = vector.broadcast %473 : i32 to vector<8x1xi32>
    %475 = arith.cmpi sgt, %8, %474 : vector<8x1xi32>
    %476 = vector.shape_cast %475 : vector<8x1xi1> to vector<8x1xi1>
    %477 = vector.broadcast %476 : vector<8x1xi1> to vector<8x128xi1>
    %478 = arith.select %477, %472, %425 : vector<8x128xi1>, vector<8x128xf32>
    %479 = vector.shape_cast %475 : vector<8x1xi1> to vector<8x1xi1>
    %480 = vector.broadcast %479 : vector<8x1xi1> to vector<8x128xi1>
    %481 = arith.select %480, %470, %428 : vector<8x128xi1>, vector<8x128xf32>
    %cst_115 = arith.constant 0.000000e+00 : f32
    %482 = vector.shape_cast %475 : vector<8x1xi1> to vector<8x1xi1>
    %483 = vector.broadcast %482 : vector<8x1xi1> to vector<8x128xi1>
    %484 = vector.broadcast %cst_115 : f32 to vector<8x128xf32>
    %485 = arith.select %483, %472, %484 : vector<8x128xi1>, vector<8x128xf32>
    %486 = arith.index_cast %440 : i32 to index
    %c0_116 = arith.constant 0 : index
    %c0_117 = arith.constant 0 : index
    %487 = vector.load %arg5[%486, %c0_116, %c0_117] : memref<16x8x128xf32, #tpu.memory_space<vmem>>, vector<1x8x128xf32>
    %488 = vector.shape_cast %487 : vector<1x8x128xf32> to vector<8x128xf32>
    %489 = vector.shape_cast %485 : vector<8x128xf32> to vector<1x8x128xf32>
    tpu.vector_store %arg5[%486, %c0_116, %c0_117], %489 {strides = array<i32>} : memref<16x8x128xf32, #tpu.memory_space<vmem>>, vector<1x8x128xf32>,
    %c9_i32 = arith.constant 9 : i32
    %c2_i32_118 = arith.constant 2 : i32
    %490 = arith.muli %c2_i32_118, %c9_i32 : i32
    %c15_i32_119 = arith.constant 15 : i32
    %491 = arith.subi %c15_i32_119, %490 : i32
    %492 = arith.muli %arg0, %491 : i32
    %493 = arith.addi %c9_i32, %492 : i32
    %c8_i32_120 = arith.constant 8 : i32
    %494 = arith.muli %493, %c8_i32_120 : i32
    %495 = tpu.assume_multiple %494, 8 : i32
    %c0_121 = arith.constant 0 : index
    %496 = arith.index_cast %495 : i32 to index
    %c0_122 = arith.constant 0 : index
    %497 = vector.load %arg3[%c0_121, %496, %c0_122] : memref<1x128x512xf32, #tpu.memory_space<vmem>>, vector<1x8x512xf32>
    %498 = vector.shape_cast %497 : vector<1x8x512xf32> to vector<8x512xf32>
    %cst_123 = arith.constant dense<0.000000e+00> : vector<8x512xf32>
    %499 = tpu.matmul %478, %10, %cst_123 {dimension_numbers = #tpu.dot_dimension_numbers<[1], [0], [0], [1], [0, 0, 1, 1], [], []>} : vector<8x128xf32>, vector<128x512xf32>, vector<8x512xf32> -> vector<8x512xf32>
    %500 = arith.addf %498, %499 : vector<8x512xf32>
    %501 = vector.extract_strided_slice %500 {offsets = [0, 0], sizes = [8, 128], strides = [1, 1]} : vector<8x512xf32> to vector<8x128xf32>
    %502 = arith.negf %501 : vector<8x128xf32>
    %503 = math.exp %502 : vector<8x128xf32>
    %cst_124 = arith.constant 1.000000e+00 : f32
    %504 = vector.broadcast %cst_124 : f32 to vector<8x128xf32>
    %505 = arith.addf %504, %503 : vector<8x128xf32>
    %506 = arith.divf %504, %505 : vector<8x128xf32>
    %507 = vector.extract_strided_slice %500 {offsets = [0, 128], sizes = [8, 128], strides = [1, 1]} : vector<8x512xf32> to vector<8x128xf32>
    %508 = arith.negf %507 : vector<8x128xf32>
    %509 = math.exp %508 : vector<8x128xf32>
    %cst_125 = arith.constant 1.000000e+00 : f32
    %510 = vector.broadcast %cst_125 : f32 to vector<8x128xf32>
    %511 = arith.addf %510, %509 : vector<8x128xf32>
    %512 = arith.divf %510, %511 : vector<8x128xf32>
    %513 = vector.extract_strided_slice %500 {offsets = [0, 256], sizes = [8, 128], strides = [1, 1]} : vector<8x512xf32> to vector<8x128xf32>
    %514 = math.tanh %513 : vector<8x128xf32>
    %515 = vector.extract_strided_slice %500 {offsets = [0, 384], sizes = [8, 128], strides = [1, 1]} : vector<8x512xf32> to vector<8x128xf32>
    %516 = arith.negf %515 : vector<8x128xf32>
    %517 = math.exp %516 : vector<8x128xf32>
    %cst_126 = arith.constant 1.000000e+00 : f32
    %518 = vector.broadcast %cst_126 : f32 to vector<8x128xf32>
    %519 = arith.addf %518, %517 : vector<8x128xf32>
    %520 = arith.divf %518, %519 : vector<8x128xf32>
    %521 = arith.mulf %512, %481 : vector<8x128xf32>
    %522 = arith.mulf %506, %514 : vector<8x128xf32>
    %523 = arith.addf %521, %522 : vector<8x128xf32>
    %524 = math.tanh %523 : vector<8x128xf32>
    %525 = arith.mulf %520, %524 : vector<8x128xf32>
    %526 = arith.addi %7, %493 : i32
    %527 = vector.broadcast %526 : i32 to vector<8x1xi32>
    %528 = arith.cmpi sgt, %8, %527 : vector<8x1xi32>
    %529 = vector.shape_cast %528 : vector<8x1xi1> to vector<8x1xi1>
    %530 = vector.broadcast %529 : vector<8x1xi1> to vector<8x128xi1>
    %531 = arith.select %530, %525, %478 : vector<8x128xi1>, vector<8x128xf32>
    %532 = vector.shape_cast %528 : vector<8x1xi1> to vector<8x1xi1>
    %533 = vector.broadcast %532 : vector<8x1xi1> to vector<8x128xi1>
    %534 = arith.select %533, %523, %481 : vector<8x128xi1>, vector<8x128xf32>
    %cst_127 = arith.constant 0.000000e+00 : f32
    %535 = vector.shape_cast %528 : vector<8x1xi1> to vector<8x1xi1>
    %536 = vector.broadcast %535 : vector<8x1xi1> to vector<8x128xi1>
    %537 = vector.broadcast %cst_127 : f32 to vector<8x128xf32>
    %538 = arith.select %536, %525, %537 : vector<8x128xi1>, vector<8x128xf32>
    %539 = arith.index_cast %493 : i32 to index
    %c0_128 = arith.constant 0 : index
    %c0_129 = arith.constant 0 : index
    %540 = vector.load %arg5[%539, %c0_128, %c0_129] : memref<16x8x128xf32, #tpu.memory_space<vmem>>, vector<1x8x128xf32>
    %541 = vector.shape_cast %540 : vector<1x8x128xf32> to vector<8x128xf32>
    %542 = vector.shape_cast %538 : vector<8x128xf32> to vector<1x8x128xf32>
    tpu.vector_store %arg5[%539, %c0_128, %c0_129], %542 {strides = array<i32>} : memref<16x8x128xf32, #tpu.memory_space<vmem>>, vector<1x8x128xf32>,
    %c10_i32 = arith.constant 10 : i32
    %c2_i32_130 = arith.constant 2 : i32
    %543 = arith.muli %c2_i32_130, %c10_i32 : i32
    %c15_i32_131 = arith.constant 15 : i32
    %544 = arith.subi %c15_i32_131, %543 : i32
    %545 = arith.muli %arg0, %544 : i32
    %546 = arith.addi %c10_i32, %545 : i32
    %c8_i32_132 = arith.constant 8 : i32
    %547 = arith.muli %546, %c8_i32_132 : i32
    %548 = tpu.assume_multiple %547, 8 : i32
    %c0_133 = arith.constant 0 : index
    %549 = arith.index_cast %548 : i32 to index
    %c0_134 = arith.constant 0 : index
    %550 = vector.load %arg3[%c0_133, %549, %c0_134] : memref<1x128x512xf32, #tpu.memory_space<vmem>>, vector<1x8x512xf32>
    %551 = vector.shape_cast %550 : vector<1x8x512xf32> to vector<8x512xf32>
    %cst_135 = arith.constant dense<0.000000e+00> : vector<8x512xf32>
    %552 = tpu.matmul %531, %10, %cst_135 {dimension_numbers = #tpu.dot_dimension_numbers<[1], [0], [0], [1], [0, 0, 1, 1], [], []>} : vector<8x128xf32>, vector<128x512xf32>, vector<8x512xf32> -> vector<8x512xf32>
    %553 = arith.addf %551, %552 : vector<8x512xf32>
    %554 = vector.extract_strided_slice %553 {offsets = [0, 0], sizes = [8, 128], strides = [1, 1]} : vector<8x512xf32> to vector<8x128xf32>
    %555 = arith.negf %554 : vector<8x128xf32>
    %556 = math.exp %555 : vector<8x128xf32>
    %cst_136 = arith.constant 1.000000e+00 : f32
    %557 = vector.broadcast %cst_136 : f32 to vector<8x128xf32>
    %558 = arith.addf %557, %556 : vector<8x128xf32>
    %559 = arith.divf %557, %558 : vector<8x128xf32>
    %560 = vector.extract_strided_slice %553 {offsets = [0, 128], sizes = [8, 128], strides = [1, 1]} : vector<8x512xf32> to vector<8x128xf32>
    %561 = arith.negf %560 : vector<8x128xf32>
    %562 = math.exp %561 : vector<8x128xf32>
    %cst_137 = arith.constant 1.000000e+00 : f32
    %563 = vector.broadcast %cst_137 : f32 to vector<8x128xf32>
    %564 = arith.addf %563, %562 : vector<8x128xf32>
    %565 = arith.divf %563, %564 : vector<8x128xf32>
    %566 = vector.extract_strided_slice %553 {offsets = [0, 256], sizes = [8, 128], strides = [1, 1]} : vector<8x512xf32> to vector<8x128xf32>
    %567 = math.tanh %566 : vector<8x128xf32>
    %568 = vector.extract_strided_slice %553 {offsets = [0, 384], sizes = [8, 128], strides = [1, 1]} : vector<8x512xf32> to vector<8x128xf32>
    %569 = arith.negf %568 : vector<8x128xf32>
    %570 = math.exp %569 : vector<8x128xf32>
    %cst_138 = arith.constant 1.000000e+00 : f32
    %571 = vector.broadcast %cst_138 : f32 to vector<8x128xf32>
    %572 = arith.addf %571, %570 : vector<8x128xf32>
    %573 = arith.divf %571, %572 : vector<8x128xf32>
    %574 = arith.mulf %565, %534 : vector<8x128xf32>
    %575 = arith.mulf %559, %567 : vector<8x128xf32>
    %576 = arith.addf %574, %575 : vector<8x128xf32>
    %577 = math.tanh %576 : vector<8x128xf32>
    %578 = arith.mulf %573, %577 : vector<8x128xf32>
    %579 = arith.addi %7, %546 : i32
    %580 = vector.broadcast %579 : i32 to vector<8x1xi32>
    %581 = arith.cmpi sgt, %8, %580 : vector<8x1xi32>
    %582 = vector.shape_cast %581 : vector<8x1xi1> to vector<8x1xi1>
    %583 = vector.broadcast %582 : vector<8x1xi1> to vector<8x128xi1>
    %584 = arith.select %583, %578, %531 : vector<8x128xi1>, vector<8x128xf32>
    %585 = vector.shape_cast %581 : vector<8x1xi1> to vector<8x1xi1>
    %586 = vector.broadcast %585 : vector<8x1xi1> to vector<8x128xi1>
    %587 = arith.select %586, %576, %534 : vector<8x128xi1>, vector<8x128xf32>
    %cst_139 = arith.constant 0.000000e+00 : f32
    %588 = vector.shape_cast %581 : vector<8x1xi1> to vector<8x1xi1>
    %589 = vector.broadcast %588 : vector<8x1xi1> to vector<8x128xi1>
    %590 = vector.broadcast %cst_139 : f32 to vector<8x128xf32>
    %591 = arith.select %589, %578, %590 : vector<8x128xi1>, vector<8x128xf32>
    %592 = arith.index_cast %546 : i32 to index
    %c0_140 = arith.constant 0 : index
    %c0_141 = arith.constant 0 : index
    %593 = vector.load %arg5[%592, %c0_140, %c0_141] : memref<16x8x128xf32, #tpu.memory_space<vmem>>, vector<1x8x128xf32>
    %594 = vector.shape_cast %593 : vector<1x8x128xf32> to vector<8x128xf32>
    %595 = vector.shape_cast %591 : vector<8x128xf32> to vector<1x8x128xf32>
    tpu.vector_store %arg5[%592, %c0_140, %c0_141], %595 {strides = array<i32>} : memref<16x8x128xf32, #tpu.memory_space<vmem>>, vector<1x8x128xf32>,
    %c11_i32 = arith.constant 11 : i32
    %c2_i32_142 = arith.constant 2 : i32
    %596 = arith.muli %c2_i32_142, %c11_i32 : i32
    %c15_i32_143 = arith.constant 15 : i32
    %597 = arith.subi %c15_i32_143, %596 : i32
    %598 = arith.muli %arg0, %597 : i32
    %599 = arith.addi %c11_i32, %598 : i32
    %c8_i32_144 = arith.constant 8 : i32
    %600 = arith.muli %599, %c8_i32_144 : i32
    %601 = tpu.assume_multiple %600, 8 : i32
    %c0_145 = arith.constant 0 : index
    %602 = arith.index_cast %601 : i32 to index
    %c0_146 = arith.constant 0 : index
    %603 = vector.load %arg3[%c0_145, %602, %c0_146] : memref<1x128x512xf32, #tpu.memory_space<vmem>>, vector<1x8x512xf32>
    %604 = vector.shape_cast %603 : vector<1x8x512xf32> to vector<8x512xf32>
    %cst_147 = arith.constant dense<0.000000e+00> : vector<8x512xf32>
    %605 = tpu.matmul %584, %10, %cst_147 {dimension_numbers = #tpu.dot_dimension_numbers<[1], [0], [0], [1], [0, 0, 1, 1], [], []>} : vector<8x128xf32>, vector<128x512xf32>, vector<8x512xf32> -> vector<8x512xf32>
    %606 = arith.addf %604, %605 : vector<8x512xf32>
    %607 = vector.extract_strided_slice %606 {offsets = [0, 0], sizes = [8, 128], strides = [1, 1]} : vector<8x512xf32> to vector<8x128xf32>
    %608 = arith.negf %607 : vector<8x128xf32>
    %609 = math.exp %608 : vector<8x128xf32>
    %cst_148 = arith.constant 1.000000e+00 : f32
    %610 = vector.broadcast %cst_148 : f32 to vector<8x128xf32>
    %611 = arith.addf %610, %609 : vector<8x128xf32>
    %612 = arith.divf %610, %611 : vector<8x128xf32>
    %613 = vector.extract_strided_slice %606 {offsets = [0, 128], sizes = [8, 128], strides = [1, 1]} : vector<8x512xf32> to vector<8x128xf32>
    %614 = arith.negf %613 : vector<8x128xf32>
    %615 = math.exp %614 : vector<8x128xf32>
    %cst_149 = arith.constant 1.000000e+00 : f32
    %616 = vector.broadcast %cst_149 : f32 to vector<8x128xf32>
    %617 = arith.addf %616, %615 : vector<8x128xf32>
    %618 = arith.divf %616, %617 : vector<8x128xf32>
    %619 = vector.extract_strided_slice %606 {offsets = [0, 256], sizes = [8, 128], strides = [1, 1]} : vector<8x512xf32> to vector<8x128xf32>
    %620 = math.tanh %619 : vector<8x128xf32>
    %621 = vector.extract_strided_slice %606 {offsets = [0, 384], sizes = [8, 128], strides = [1, 1]} : vector<8x512xf32> to vector<8x128xf32>
    %622 = arith.negf %621 : vector<8x128xf32>
    %623 = math.exp %622 : vector<8x128xf32>
    %cst_150 = arith.constant 1.000000e+00 : f32
    %624 = vector.broadcast %cst_150 : f32 to vector<8x128xf32>
    %625 = arith.addf %624, %623 : vector<8x128xf32>
    %626 = arith.divf %624, %625 : vector<8x128xf32>
    %627 = arith.mulf %618, %587 : vector<8x128xf32>
    %628 = arith.mulf %612, %620 : vector<8x128xf32>
    %629 = arith.addf %627, %628 : vector<8x128xf32>
    %630 = math.tanh %629 : vector<8x128xf32>
    %631 = arith.mulf %626, %630 : vector<8x128xf32>
    %632 = arith.addi %7, %599 : i32
    %633 = vector.broadcast %632 : i32 to vector<8x1xi32>
    %634 = arith.cmpi sgt, %8, %633 : vector<8x1xi32>
    %635 = vector.shape_cast %634 : vector<8x1xi1> to vector<8x1xi1>
    %636 = vector.broadcast %635 : vector<8x1xi1> to vector<8x128xi1>
    %637 = arith.select %636, %631, %584 : vector<8x128xi1>, vector<8x128xf32>
    %638 = vector.shape_cast %634 : vector<8x1xi1> to vector<8x1xi1>
    %639 = vector.broadcast %638 : vector<8x1xi1> to vector<8x128xi1>
    %640 = arith.select %639, %629, %587 : vector<8x128xi1>, vector<8x128xf32>
    %cst_151 = arith.constant 0.000000e+00 : f32
    %641 = vector.shape_cast %634 : vector<8x1xi1> to vector<8x1xi1>
    %642 = vector.broadcast %641 : vector<8x1xi1> to vector<8x128xi1>
    %643 = vector.broadcast %cst_151 : f32 to vector<8x128xf32>
    %644 = arith.select %642, %631, %643 : vector<8x128xi1>, vector<8x128xf32>
    %645 = arith.index_cast %599 : i32 to index
    %c0_152 = arith.constant 0 : index
    %c0_153 = arith.constant 0 : index
    %646 = vector.load %arg5[%645, %c0_152, %c0_153] : memref<16x8x128xf32, #tpu.memory_space<vmem>>, vector<1x8x128xf32>
    %647 = vector.shape_cast %646 : vector<1x8x128xf32> to vector<8x128xf32>
    %648 = vector.shape_cast %644 : vector<8x128xf32> to vector<1x8x128xf32>
    tpu.vector_store %arg5[%645, %c0_152, %c0_153], %648 {strides = array<i32>} : memref<16x8x128xf32, #tpu.memory_space<vmem>>, vector<1x8x128xf32>,
    %c12_i32 = arith.constant 12 : i32
    %c2_i32_154 = arith.constant 2 : i32
    %649 = arith.muli %c2_i32_154, %c12_i32 : i32
    %c15_i32_155 = arith.constant 15 : i32
    %650 = arith.subi %c15_i32_155, %649 : i32
    %651 = arith.muli %arg0, %650 : i32
    %652 = arith.addi %c12_i32, %651 : i32
    %c8_i32_156 = arith.constant 8 : i32
    %653 = arith.muli %652, %c8_i32_156 : i32
    %654 = tpu.assume_multiple %653, 8 : i32
    %c0_157 = arith.constant 0 : index
    %655 = arith.index_cast %654 : i32 to index
    %c0_158 = arith.constant 0 : index
    %656 = vector.load %arg3[%c0_157, %655, %c0_158] : memref<1x128x512xf32, #tpu.memory_space<vmem>>, vector<1x8x512xf32>
    %657 = vector.shape_cast %656 : vector<1x8x512xf32> to vector<8x512xf32>
    %cst_159 = arith.constant dense<0.000000e+00> : vector<8x512xf32>
    %658 = tpu.matmul %637, %10, %cst_159 {dimension_numbers = #tpu.dot_dimension_numbers<[1], [0], [0], [1], [0, 0, 1, 1], [], []>} : vector<8x128xf32>, vector<128x512xf32>, vector<8x512xf32> -> vector<8x512xf32>
    %659 = arith.addf %657, %658 : vector<8x512xf32>
    %660 = vector.extract_strided_slice %659 {offsets = [0, 0], sizes = [8, 128], strides = [1, 1]} : vector<8x512xf32> to vector<8x128xf32>
    %661 = arith.negf %660 : vector<8x128xf32>
    %662 = math.exp %661 : vector<8x128xf32>
    %cst_160 = arith.constant 1.000000e+00 : f32
    %663 = vector.broadcast %cst_160 : f32 to vector<8x128xf32>
    %664 = arith.addf %663, %662 : vector<8x128xf32>
    %665 = arith.divf %663, %664 : vector<8x128xf32>
    %666 = vector.extract_strided_slice %659 {offsets = [0, 128], sizes = [8, 128], strides = [1, 1]} : vector<8x512xf32> to vector<8x128xf32>
    %667 = arith.negf %666 : vector<8x128xf32>
    %668 = math.exp %667 : vector<8x128xf32>
    %cst_161 = arith.constant 1.000000e+00 : f32
    %669 = vector.broadcast %cst_161 : f32 to vector<8x128xf32>
    %670 = arith.addf %669, %668 : vector<8x128xf32>
    %671 = arith.divf %669, %670 : vector<8x128xf32>
    %672 = vector.extract_strided_slice %659 {offsets = [0, 256], sizes = [8, 128], strides = [1, 1]} : vector<8x512xf32> to vector<8x128xf32>
    %673 = math.tanh %672 : vector<8x128xf32>
    %674 = vector.extract_strided_slice %659 {offsets = [0, 384], sizes = [8, 128], strides = [1, 1]} : vector<8x512xf32> to vector<8x128xf32>
    %675 = arith.negf %674 : vector<8x128xf32>
    %676 = math.exp %675 : vector<8x128xf32>
    %cst_162 = arith.constant 1.000000e+00 : f32
    %677 = vector.broadcast %cst_162 : f32 to vector<8x128xf32>
    %678 = arith.addf %677, %676 : vector<8x128xf32>
    %679 = arith.divf %677, %678 : vector<8x128xf32>
    %680 = arith.mulf %671, %640 : vector<8x128xf32>
    %681 = arith.mulf %665, %673 : vector<8x128xf32>
    %682 = arith.addf %680, %681 : vector<8x128xf32>
    %683 = math.tanh %682 : vector<8x128xf32>
    %684 = arith.mulf %679, %683 : vector<8x128xf32>
    %685 = arith.addi %7, %652 : i32
    %686 = vector.broadcast %685 : i32 to vector<8x1xi32>
    %687 = arith.cmpi sgt, %8, %686 : vector<8x1xi32>
    %688 = vector.shape_cast %687 : vector<8x1xi1> to vector<8x1xi1>
    %689 = vector.broadcast %688 : vector<8x1xi1> to vector<8x128xi1>
    %690 = arith.select %689, %684, %637 : vector<8x128xi1>, vector<8x128xf32>
    %691 = vector.shape_cast %687 : vector<8x1xi1> to vector<8x1xi1>
    %692 = vector.broadcast %691 : vector<8x1xi1> to vector<8x128xi1>
    %693 = arith.select %692, %682, %640 : vector<8x128xi1>, vector<8x128xf32>
    %cst_163 = arith.constant 0.000000e+00 : f32
    %694 = vector.shape_cast %687 : vector<8x1xi1> to vector<8x1xi1>
    %695 = vector.broadcast %694 : vector<8x1xi1> to vector<8x128xi1>
    %696 = vector.broadcast %cst_163 : f32 to vector<8x128xf32>
    %697 = arith.select %695, %684, %696 : vector<8x128xi1>, vector<8x128xf32>
    %698 = arith.index_cast %652 : i32 to index
    %c0_164 = arith.constant 0 : index
    %c0_165 = arith.constant 0 : index
    %699 = vector.load %arg5[%698, %c0_164, %c0_165] : memref<16x8x128xf32, #tpu.memory_space<vmem>>, vector<1x8x128xf32>
    %700 = vector.shape_cast %699 : vector<1x8x128xf32> to vector<8x128xf32>
    %701 = vector.shape_cast %697 : vector<8x128xf32> to vector<1x8x128xf32>
    tpu.vector_store %arg5[%698, %c0_164, %c0_165], %701 {strides = array<i32>} : memref<16x8x128xf32, #tpu.memory_space<vmem>>, vector<1x8x128xf32>,
    %c13_i32 = arith.constant 13 : i32
    %c2_i32_166 = arith.constant 2 : i32
    %702 = arith.muli %c2_i32_166, %c13_i32 : i32
    %c15_i32_167 = arith.constant 15 : i32
    %703 = arith.subi %c15_i32_167, %702 : i32
    %704 = arith.muli %arg0, %703 : i32
    %705 = arith.addi %c13_i32, %704 : i32
    %c8_i32_168 = arith.constant 8 : i32
    %706 = arith.muli %705, %c8_i32_168 : i32
    %707 = tpu.assume_multiple %706, 8 : i32
    %c0_169 = arith.constant 0 : index
    %708 = arith.index_cast %707 : i32 to index
    %c0_170 = arith.constant 0 : index
    %709 = vector.load %arg3[%c0_169, %708, %c0_170] : memref<1x128x512xf32, #tpu.memory_space<vmem>>, vector<1x8x512xf32>
    %710 = vector.shape_cast %709 : vector<1x8x512xf32> to vector<8x512xf32>
    %cst_171 = arith.constant dense<0.000000e+00> : vector<8x512xf32>
    %711 = tpu.matmul %690, %10, %cst_171 {dimension_numbers = #tpu.dot_dimension_numbers<[1], [0], [0], [1], [0, 0, 1, 1], [], []>} : vector<8x128xf32>, vector<128x512xf32>, vector<8x512xf32> -> vector<8x512xf32>
    %712 = arith.addf %710, %711 : vector<8x512xf32>
    %713 = vector.extract_strided_slice %712 {offsets = [0, 0], sizes = [8, 128], strides = [1, 1]} : vector<8x512xf32> to vector<8x128xf32>
    %714 = arith.negf %713 : vector<8x128xf32>
    %715 = math.exp %714 : vector<8x128xf32>
    %cst_172 = arith.constant 1.000000e+00 : f32
    %716 = vector.broadcast %cst_172 : f32 to vector<8x128xf32>
    %717 = arith.addf %716, %715 : vector<8x128xf32>
    %718 = arith.divf %716, %717 : vector<8x128xf32>
    %719 = vector.extract_strided_slice %712 {offsets = [0, 128], sizes = [8, 128], strides = [1, 1]} : vector<8x512xf32> to vector<8x128xf32>
    %720 = arith.negf %719 : vector<8x128xf32>
    %721 = math.exp %720 : vector<8x128xf32>
    %cst_173 = arith.constant 1.000000e+00 : f32
    %722 = vector.broadcast %cst_173 : f32 to vector<8x128xf32>
    %723 = arith.addf %722, %721 : vector<8x128xf32>
    %724 = arith.divf %722, %723 : vector<8x128xf32>
    %725 = vector.extract_strided_slice %712 {offsets = [0, 256], sizes = [8, 128], strides = [1, 1]} : vector<8x512xf32> to vector<8x128xf32>
    %726 = math.tanh %725 : vector<8x128xf32>
    %727 = vector.extract_strided_slice %712 {offsets = [0, 384], sizes = [8, 128], strides = [1, 1]} : vector<8x512xf32> to vector<8x128xf32>
    %728 = arith.negf %727 : vector<8x128xf32>
    %729 = math.exp %728 : vector<8x128xf32>
    %cst_174 = arith.constant 1.000000e+00 : f32
    %730 = vector.broadcast %cst_174 : f32 to vector<8x128xf32>
    %731 = arith.addf %730, %729 : vector<8x128xf32>
    %732 = arith.divf %730, %731 : vector<8x128xf32>
    %733 = arith.mulf %724, %693 : vector<8x128xf32>
    %734 = arith.mulf %718, %726 : vector<8x128xf32>
    %735 = arith.addf %733, %734 : vector<8x128xf32>
    %736 = math.tanh %735 : vector<8x128xf32>
    %737 = arith.mulf %732, %736 : vector<8x128xf32>
    %738 = arith.addi %7, %705 : i32
    %739 = vector.broadcast %738 : i32 to vector<8x1xi32>
    %740 = arith.cmpi sgt, %8, %739 : vector<8x1xi32>
    %741 = vector.shape_cast %740 : vector<8x1xi1> to vector<8x1xi1>
    %742 = vector.broadcast %741 : vector<8x1xi1> to vector<8x128xi1>
    %743 = arith.select %742, %737, %690 : vector<8x128xi1>, vector<8x128xf32>
    %744 = vector.shape_cast %740 : vector<8x1xi1> to vector<8x1xi1>
    %745 = vector.broadcast %744 : vector<8x1xi1> to vector<8x128xi1>
    %746 = arith.select %745, %735, %693 : vector<8x128xi1>, vector<8x128xf32>
    %cst_175 = arith.constant 0.000000e+00 : f32
    %747 = vector.shape_cast %740 : vector<8x1xi1> to vector<8x1xi1>
    %748 = vector.broadcast %747 : vector<8x1xi1> to vector<8x128xi1>
    %749 = vector.broadcast %cst_175 : f32 to vector<8x128xf32>
    %750 = arith.select %748, %737, %749 : vector<8x128xi1>, vector<8x128xf32>
    %751 = arith.index_cast %705 : i32 to index
    %c0_176 = arith.constant 0 : index
    %c0_177 = arith.constant 0 : index
    %752 = vector.load %arg5[%751, %c0_176, %c0_177] : memref<16x8x128xf32, #tpu.memory_space<vmem>>, vector<1x8x128xf32>
    %753 = vector.shape_cast %752 : vector<1x8x128xf32> to vector<8x128xf32>
    %754 = vector.shape_cast %750 : vector<8x128xf32> to vector<1x8x128xf32>
    tpu.vector_store %arg5[%751, %c0_176, %c0_177], %754 {strides = array<i32>} : memref<16x8x128xf32, #tpu.memory_space<vmem>>, vector<1x8x128xf32>,
    %c14_i32 = arith.constant 14 : i32
    %c2_i32_178 = arith.constant 2 : i32
    %755 = arith.muli %c2_i32_178, %c14_i32 : i32
    %c15_i32_179 = arith.constant 15 : i32
    %756 = arith.subi %c15_i32_179, %755 : i32
    %757 = arith.muli %arg0, %756 : i32
    %758 = arith.addi %c14_i32, %757 : i32
    %c8_i32_180 = arith.constant 8 : i32
    %759 = arith.muli %758, %c8_i32_180 : i32
    %760 = tpu.assume_multiple %759, 8 : i32
    %c0_181 = arith.constant 0 : index
    %761 = arith.index_cast %760 : i32 to index
    %c0_182 = arith.constant 0 : index
    %762 = vector.load %arg3[%c0_181, %761, %c0_182] : memref<1x128x512xf32, #tpu.memory_space<vmem>>, vector<1x8x512xf32>
    %763 = vector.shape_cast %762 : vector<1x8x512xf32> to vector<8x512xf32>
    %cst_183 = arith.constant dense<0.000000e+00> : vector<8x512xf32>
    %764 = tpu.matmul %743, %10, %cst_183 {dimension_numbers = #tpu.dot_dimension_numbers<[1], [0], [0], [1], [0, 0, 1, 1], [], []>} : vector<8x128xf32>, vector<128x512xf32>, vector<8x512xf32> -> vector<8x512xf32>
    %765 = arith.addf %763, %764 : vector<8x512xf32>
    %766 = vector.extract_strided_slice %765 {offsets = [0, 0], sizes = [8, 128], strides = [1, 1]} : vector<8x512xf32> to vector<8x128xf32>
    %767 = arith.negf %766 : vector<8x128xf32>
    %768 = math.exp %767 : vector<8x128xf32>
    %cst_184 = arith.constant 1.000000e+00 : f32
    %769 = vector.broadcast %cst_184 : f32 to vector<8x128xf32>
    %770 = arith.addf %769, %768 : vector<8x128xf32>
    %771 = arith.divf %769, %770 : vector<8x128xf32>
    %772 = vector.extract_strided_slice %765 {offsets = [0, 128], sizes = [8, 128], strides = [1, 1]} : vector<8x512xf32> to vector<8x128xf32>
    %773 = arith.negf %772 : vector<8x128xf32>
    %774 = math.exp %773 : vector<8x128xf32>
    %cst_185 = arith.constant 1.000000e+00 : f32
    %775 = vector.broadcast %cst_185 : f32 to vector<8x128xf32>
    %776 = arith.addf %775, %774 : vector<8x128xf32>
    %777 = arith.divf %775, %776 : vector<8x128xf32>
    %778 = vector.extract_strided_slice %765 {offsets = [0, 256], sizes = [8, 128], strides = [1, 1]} : vector<8x512xf32> to vector<8x128xf32>
    %779 = math.tanh %778 : vector<8x128xf32>
    %780 = vector.extract_strided_slice %765 {offsets = [0, 384], sizes = [8, 128], strides = [1, 1]} : vector<8x512xf32> to vector<8x128xf32>
    %781 = arith.negf %780 : vector<8x128xf32>
    %782 = math.exp %781 : vector<8x128xf32>
    %cst_186 = arith.constant 1.000000e+00 : f32
    %783 = vector.broadcast %cst_186 : f32 to vector<8x128xf32>
    %784 = arith.addf %783, %782 : vector<8x128xf32>
    %785 = arith.divf %783, %784 : vector<8x128xf32>
    %786 = arith.mulf %777, %746 : vector<8x128xf32>
    %787 = arith.mulf %771, %779 : vector<8x128xf32>
    %788 = arith.addf %786, %787 : vector<8x128xf32>
    %789 = math.tanh %788 : vector<8x128xf32>
    %790 = arith.mulf %785, %789 : vector<8x128xf32>
    %791 = arith.addi %7, %758 : i32
    %792 = vector.broadcast %791 : i32 to vector<8x1xi32>
    %793 = arith.cmpi sgt, %8, %792 : vector<8x1xi32>
    %794 = vector.shape_cast %793 : vector<8x1xi1> to vector<8x1xi1>
    %795 = vector.broadcast %794 : vector<8x1xi1> to vector<8x128xi1>
    %796 = arith.select %795, %790, %743 : vector<8x128xi1>, vector<8x128xf32>
    %797 = vector.shape_cast %793 : vector<8x1xi1> to vector<8x1xi1>
    %798 = vector.broadcast %797 : vector<8x1xi1> to vector<8x128xi1>
    %799 = arith.select %798, %788, %746 : vector<8x128xi1>, vector<8x128xf32>
    %cst_187 = arith.constant 0.000000e+00 : f32
    %800 = vector.shape_cast %793 : vector<8x1xi1> to vector<8x1xi1>
    %801 = vector.broadcast %800 : vector<8x1xi1> to vector<8x128xi1>
    %802 = vector.broadcast %cst_187 : f32 to vector<8x128xf32>
    %803 = arith.select %801, %790, %802 : vector<8x128xi1>, vector<8x128xf32>
    %804 = arith.index_cast %758 : i32 to index
    %c0_188 = arith.constant 0 : index
    %c0_189 = arith.constant 0 : index
    %805 = vector.load %arg5[%804, %c0_188, %c0_189] : memref<16x8x128xf32, #tpu.memory_space<vmem>>, vector<1x8x128xf32>
    %806 = vector.shape_cast %805 : vector<1x8x128xf32> to vector<8x128xf32>
    %807 = vector.shape_cast %803 : vector<8x128xf32> to vector<1x8x128xf32>
    tpu.vector_store %arg5[%804, %c0_188, %c0_189], %807 {strides = array<i32>} : memref<16x8x128xf32, #tpu.memory_space<vmem>>, vector<1x8x128xf32>,
    %c15_i32_190 = arith.constant 15 : i32
    %c2_i32_191 = arith.constant 2 : i32
    %808 = arith.muli %c2_i32_191, %c15_i32_190 : i32
    %c15_i32_192 = arith.constant 15 : i32
    %809 = arith.subi %c15_i32_192, %808 : i32
    %810 = arith.muli %arg0, %809 : i32
    %811 = arith.addi %c15_i32_190, %810 : i32
    %c8_i32_193 = arith.constant 8 : i32
    %812 = arith.muli %811, %c8_i32_193 : i32
    %813 = tpu.assume_multiple %812, 8 : i32
    %c0_194 = arith.constant 0 : index
    %814 = arith.index_cast %813 : i32 to index
    %c0_195 = arith.constant 0 : index
    %815 = vector.load %arg3[%c0_194, %814, %c0_195] : memref<1x128x512xf32, #tpu.memory_space<vmem>>, vector<1x8x512xf32>
    %816 = vector.shape_cast %815 : vector<1x8x512xf32> to vector<8x512xf32>
    %cst_196 = arith.constant dense<0.000000e+00> : vector<8x512xf32>
    %817 = tpu.matmul %796, %10, %cst_196 {dimension_numbers = #tpu.dot_dimension_numbers<[1], [0], [0], [1], [0, 0, 1, 1], [], []>} : vector<8x128xf32>, vector<128x512xf32>, vector<8x512xf32> -> vector<8x512xf32>
    %818 = arith.addf %816, %817 : vector<8x512xf32>
    %819 = vector.extract_strided_slice %818 {offsets = [0, 0], sizes = [8, 128], strides = [1, 1]} : vector<8x512xf32> to vector<8x128xf32>
    %820 = arith.negf %819 : vector<8x128xf32>
    %821 = math.exp %820 : vector<8x128xf32>
    %cst_197 = arith.constant 1.000000e+00 : f32
    %822 = vector.broadcast %cst_197 : f32 to vector<8x128xf32>
    %823 = arith.addf %822, %821 : vector<8x128xf32>
    %824 = arith.divf %822, %823 : vector<8x128xf32>
    %825 = vector.extract_strided_slice %818 {offsets = [0, 128], sizes = [8, 128], strides = [1, 1]} : vector<8x512xf32> to vector<8x128xf32>
    %826 = arith.negf %825 : vector<8x128xf32>
    %827 = math.exp %826 : vector<8x128xf32>
    %cst_198 = arith.constant 1.000000e+00 : f32
    %828 = vector.broadcast %cst_198 : f32 to vector<8x128xf32>
    %829 = arith.addf %828, %827 : vector<8x128xf32>
    %830 = arith.divf %828, %829 : vector<8x128xf32>
    %831 = vector.extract_strided_slice %818 {offsets = [0, 256], sizes = [8, 128], strides = [1, 1]} : vector<8x512xf32> to vector<8x128xf32>
    %832 = math.tanh %831 : vector<8x128xf32>
    %833 = vector.extract_strided_slice %818 {offsets = [0, 384], sizes = [8, 128], strides = [1, 1]} : vector<8x512xf32> to vector<8x128xf32>
    %834 = arith.negf %833 : vector<8x128xf32>
    %835 = math.exp %834 : vector<8x128xf32>
    %cst_199 = arith.constant 1.000000e+00 : f32
    %836 = vector.broadcast %cst_199 : f32 to vector<8x128xf32>
    %837 = arith.addf %836, %835 : vector<8x128xf32>
    %838 = arith.divf %836, %837 : vector<8x128xf32>
    %839 = arith.mulf %830, %799 : vector<8x128xf32>
    %840 = arith.mulf %824, %832 : vector<8x128xf32>
    %841 = arith.addf %839, %840 : vector<8x128xf32>
    %842 = math.tanh %841 : vector<8x128xf32>
    %843 = arith.mulf %838, %842 : vector<8x128xf32>
    %844 = arith.addi %7, %811 : i32
    %845 = vector.broadcast %844 : i32 to vector<8x1xi32>
    %846 = arith.cmpi sgt, %8, %845 : vector<8x1xi32>
    %847 = vector.shape_cast %846 : vector<8x1xi1> to vector<8x1xi1>
    %848 = vector.broadcast %847 : vector<8x1xi1> to vector<8x128xi1>
    %849 = arith.select %848, %843, %796 : vector<8x128xi1>, vector<8x128xf32>
    %850 = vector.shape_cast %846 : vector<8x1xi1> to vector<8x1xi1>
    %851 = vector.broadcast %850 : vector<8x1xi1> to vector<8x128xi1>
    %852 = arith.select %851, %841, %799 : vector<8x128xi1>, vector<8x128xf32>
    %cst_200 = arith.constant 0.000000e+00 : f32
    %853 = vector.shape_cast %846 : vector<8x1xi1> to vector<8x1xi1>
    %854 = vector.broadcast %853 : vector<8x1xi1> to vector<8x128xi1>
    %855 = vector.broadcast %cst_200 : f32 to vector<8x128xf32>
    %856 = arith.select %854, %843, %855 : vector<8x128xi1>, vector<8x128xf32>
    %857 = arith.index_cast %811 : i32 to index
    %c0_201 = arith.constant 0 : index
    %c0_202 = arith.constant 0 : index
    %858 = vector.load %arg5[%857, %c0_201, %c0_202] : memref<16x8x128xf32, #tpu.memory_space<vmem>>, vector<1x8x128xf32>
    %859 = vector.shape_cast %858 : vector<1x8x128xf32> to vector<8x128xf32>
    %860 = vector.shape_cast %856 : vector<8x128xf32> to vector<1x8x128xf32>
    tpu.vector_store %arg5[%857, %c0_201, %c0_202], %860 {strides = array<i32>} : memref<16x8x128xf32, #tpu.memory_space<vmem>>, vector<1x8x128xf32>,
    %c16_i32_203 = arith.constant 16 : i32
    %c0_204 = arith.constant 0 : index
    %c0_205 = arith.constant 0 : index
    %861 = vector.load %arg7[%c0_204, %c0_205] : memref<8x128xf32, #tpu.memory_space<vmem>>, vector<8x128xf32>
    tpu.vector_store %arg7[%c0_204, %c0_205], %849 {strides = array<i32>} : memref<8x128xf32, #tpu.memory_space<vmem>>, vector<8x128xf32>,
    %c0_206 = arith.constant 0 : index
    %c0_207 = arith.constant 0 : index
    %862 = vector.load %arg8[%c0_206, %c0_207] : memref<8x128xf32, #tpu.memory_space<vmem>>, vector<8x128xf32>
    tpu.vector_store %arg8[%c0_206, %c0_207], %852 {strides = array<i32>} : memref<8x128xf32, #tpu.memory_space<vmem>>, vector<8x128xf32>,
    %c0_i32_208 = arith.constant 0 : i32
    %863 = arith.cmpi eq, %arg1, %c0_i32_208 : i32
    %864 = arith.extui %863 : i1 to i32
    %c0_i32_209 = arith.constant 0 : i32
    %865 = arith.cmpi ne, %864, %c0_i32_209 : i32
    scf.if %865 {
      %c0_210 = arith.constant 0 : index
      %c0_211 = arith.constant 0 : index
      %866 = vector.load %arg6[%c0_210, %c0_211] : memref<8x128xf32, #tpu.memory_space<vmem>>, vector<8x128xf32>
      tpu.vector_store %arg6[%c0_210, %c0_211], %849 {strides = array<i32>} : memref<8x128xf32, #tpu.memory_space<vmem>>, vector<8x128xf32>,
    } else {
    }
    return
  }
  func.func @transform_0(%arg0: i32, %arg1: i32) -> (i32, i32) {
    %c0_i32 = arith.constant 0 : i32
    %c0_i32_0 = arith.constant 0 : i32
    %c0_i32_1 = arith.constant 0 : i32
    return %c0_i32, %c0_i32_0 : i32, i32
  }
  func.func @transform_1(%arg0: i32, %arg1: i32) -> (i32, i32, i32) {
    %c2_i32 = arith.constant 2 : i32
    %0 = arith.muli %c2_i32, %arg1 : i32
    %c0_i32 = arith.constant 0 : i32
    %1 = arith.subi %c0_i32, %0 : i32
    %2 = arith.muli %arg0, %1 : i32
    %3 = arith.addi %arg1, %2 : i32
    %c0_i32_0 = arith.constant 0 : i32
    %c0_i32_1 = arith.constant 0 : i32
    return %arg0, %3, %c0_i32_0 : i32, i32, i32
  }
  func.func @transform_2(%arg0: i32, %arg1: i32) -> (i32, i32, i32) {
    %c0_i32 = arith.constant 0 : i32
    %c0_i32_0 = arith.constant 0 : i32
    %c0_i32_1 = arith.constant 0 : i32
    return %arg0, %c0_i32, %c0_i32_0 : i32, i32, i32
  }
  func.func @transform_3(%arg0: i32, %arg1: i32) -> (i32, i32, i32) {
    %c2_i32 = arith.constant 2 : i32
    %0 = arith.muli %c2_i32, %arg1 : i32
    %c0_i32 = arith.constant 0 : i32
    %1 = arith.subi %c0_i32, %0 : i32
    %2 = arith.muli %arg0, %1 : i32
    %3 = arith.addi %arg1, %2 : i32
    %c0_i32_0 = arith.constant 0 : i32
    %c0_i32_1 = arith.constant 0 : i32
    return %3, %c0_i32_0, %arg0 : i32, i32, i32
  }
  func.func @transform_4(%arg0: i32, %arg1: i32) -> (i32, i32) {
    %c0_i32 = arith.constant 0 : i32
    %c0_i32_0 = arith.constant 0 : i32
    return %c0_i32, %arg0 : i32, i32
  }
}

</mosaic_0001>

<llo_original>
// kernel: tpu_custom_call.1
$region0: #{tpu_custom_call.1}
  #allocation0 [shape = 'u32[]', space=smem, size = 0x4, offset = 0x4, fixed_abs, tag = 'smem constant byte address 0x4 - core index']
  #allocation1 [shape = 'u32[144,128]{1,0:T(1,128)}', space=vmem, size = 0x12000, scoped, tag = 'internal scratch']
  #allocation2 [shape = 'f32[8,128]{1,0:T(8,128)}', space=vmem, size = 0x1000, scoped, tag = 'scratch operand']
  #allocation3 [shape = 'f32[8,128]{1,0:T(8,128)}', space=vmem, size = 0x1000, scoped, tag = 'scratch operand']
  %s0 = inlined_call_operand.vmem [shape: s32[8,1], index: 0, kind: input, shape index: {}]
  %s1 = inlined_call_operand.hbm [shape: f32[2,128,512], index: 1, kind: input, shape index: {}]
  %s2 = inlined_call_operand.hbm [shape: f32[2,128,512], index: 2, kind: input, shape index: {}]
  %s3 = inlined_call_operand.hbm [shape: f32[16,8,256], index: 3, kind: output, shape index: {0}]
  %s4 = inlined_call_operand.hbm [shape: f32[8,256], index: 4, kind: output, shape index: {1}]
  %5 = xla_tuple %s3, %s4
  %s6 = sld [smem:[#allocation0]]
  $region69: #{tpu_custom_call.1} parent=0
    _
  %s8 = ssub.s32 1, %s6
  %s9 = scalar_select 0, %s8, %s6
  $region1: #{tpu_custom_call.1} parent=0
    #allocation4 [shape = 'u8[524288]{0}', space=vmem, size = 0x80000, scoped, tag = 'input window, operand 1']
    #allocation5 [shape = 's32[2]{0}', space=sflag, size = 0x8, scoped, tag = 'scoped memory for tpu_custom_call.1']
    #allocation6 [shape = 's32[2]{0}', space=sflag, size = 0x8, scoped, tag = 'scoped memory for tpu_custom_call.1']
    #allocation7 [shape = 'u8[524288]{0}', space=vmem, size = 0x80000, scoped, tag = 'input window, operand 2']
    #allocation8 [shape = 's32[2]{0}', space=sflag, size = 0x8, scoped, tag = 'scoped memory for tpu_custom_call.1']
    #allocation9 [shape = 'u8[131072]{0}', space=vmem, size = 0x20000, scoped, tag = 'output window, operand 0']
    #allocation10 [shape = 'u8[8192]{0}', space=vmem, size = 0x2000, scoped, tag = 'output window, operand 1']
    #allocation11 [shape = 's32[2]{0}', space=sflag, size = 0x8, scoped, tag = 'scoped memory for tpu_custom_call.1']
    %10 = vsyncpa [#allocation5], 0
    %s11 = scalar_lea.sflag [#allocation5], 1
    %12 = vsyncpa %s11, 0
    %13 = vsyncpa [#allocation8], 0
    %s14 = scalar_lea.sflag [#allocation8], 1
    %15 = vsyncpa %s14, 0
    %16 = vsyncpa [#allocation6], 0
    %s17 = scalar_lea.sflag [#allocation6], 1
    %18 = vsyncpa %s17, 0
    %19 = vsyncpa [#allocation11], 0
    %s20 = scalar_lea.sflag [#allocation11], 1
    %21 = vsyncpa %s20, 0
    loop: start=0, step=1, limit=4
    $region2: #{tpu_custom_call.1} parent=1 // loop_pre_header
      _
    $region3: #{tpu_custom_call.1} parent=1 // loop_header
      %s23 = sphi 0, %s27
      %p24 = scmp.ge.s32.totalorder %s23, 4
      %s30 = sphi 0, %s42
      %s31 = sphi 0, %s38
      %s32 = sphi 0, %s30
      %s33 = sphi 0, %s31
      %s34 = sphi 0, %s32
      %s35 = sphi 0, %s33
      %s43 = sphi 0, %s43
      %s45 = sphi 0, %s43
      %s46 = sphi 0, %s45
      %s60 = sphi 0, %s46
      %s76 = sphi 0, %s78
      %s79 = sphi 0, %s76
      %s80 = sphi 0, %s79
      %s96 = sphi 0, %s80
      %s102 = sphi 0, %s104
      %s105 = sphi 0, %s102
      %s106 = sphi 0, %s105
      %s122 = sphi 0, %s106
      %s138 = sphi 0, %s140
      %s141 = sphi 0, %s138
      %s142 = sphi 0, %s141
      %s158 = sphi 0, %s142
      %s164 = sphi 0, %s166
      %s167 = sphi 0, %s164
      %s168 = sphi 0, %s167
      %s184 = sphi 0, %s168
    $region4: #{tpu_custom_call.1} parent=1 // loop_header_branch
      %26 = sbr.rel (%p24) target = $region8
    $region5: #{tpu_custom_call.1} parent=1 // loop_body
      %s28 = ssub.s32 %s23, 1
      %s29 = ssub.s32 %s23, 2
      %s36 = sadd.s32 1, %s31
      %p37 = scmp.ge.s32.totalorder %s36, 1
      %s38 = scalar_select %p37, 0, %s36
      %s39 = sadd.s32 1, %s30
      %s40 = scalar_select %p37, %s39, %s30
      %p41 = scmp.ge.s32.totalorder %s40, 2
      %s42 = scalar_select %p41, 0, %s40
      %s44 = sadd.s32 %s43, 1
      %p47 = scmp.eq.s32.totalorder %s23, 1
      %p48 = scmp.ne.s32.totalorder %s43, %s45
      %p49 = scmp.eq.s32.totalorder %s23, 0
      %p50 = por %p48, %p49
      %p51 = scmp.ne.s32.totalorder %s43, %s45
      %p52 = scmp.eq.s32.totalorder %s28, 1
      %p53 = por %p51, %p52
      %p54 = scmp.ne.s32.totalorder %s45, %s46
      %p55 = scmp.eq.s32.totalorder %s28, 0
      %p56 = por %p54, %p55
      %p57 = scmp.ne.s32.totalorder %s45, %s46
      %p58 = scmp.eq.s32.totalorder %s29, 1
      %p59 = por %p57, %p58
      %p61 = scmp.ne.s32.totalorder %s46, %s60
      %p62 = scmp.eq.s32.totalorder %s29, 0
      %p63 = por %p61, %p62
      %s64 = smul.u32 %s31, 2
      %s65 = ssub.s32 0, %s64
      %s66 = smul.u32 %s30, %s65
      %s67 = sadd.s32 %s31, %s66
      %s68 = smul.u32 %s38, 2
      %s69 = ssub.s32 0, %s68
      %s70 = smul.u32 %s42, %s69
      %s71 = sadd.s32 %s38, %s70
      %s72 = ssub.s32 %s30, %s42
      %s73 = ssub.s32 %s67, %s71
      %s74 = sor.u32 %s72, %s73
      %p75 = scmp.eq.s32.totalorder %s74, 0
      %s77 = sadd.s32 %s76, 1
      %s78 = scalar_select %p75, %s76, %s77
      %p81 = pneg %p75
      %p82 = scmp.eq.s32.totalorder %s23, 1
      %p83 = por %p81, %p82
      %p84 = scmp.ne.s32.totalorder %s76, %s79
      %p85 = scmp.eq.s32.totalorder %s23, 0
      %p86 = por %p84, %p85
      %p87 = scmp.ne.s32.totalorder %s76, %s79
      %p88 = scmp.eq.s32.totalorder %s28, 1
      %p89 = por %p87, %p88
      %p90 = scmp.ne.s32.totalorder %s79, %s80
      %p91 = scmp.eq.s32.totalorder %s28, 0
      %p92 = por %p90, %p91
      %p93 = scmp.ne.s32.totalorder %s79, %s80
      %p94 = scmp.eq.s32.totalorder %s29, 1
      %p95 = por %p93, %p94
      %p97 = scmp.ne.s32.totalorder %s80, %s96
      %p98 = scmp.eq.s32.totalorder %s29, 0
      %p99 = por %p97, %p98
      %s100 = ssub.s32 %s30, %s42
      %p101 = scmp.eq.s32.totalorder %s100, 0
      %s103 = sadd.s32 %s102, 1
      %s104 = scalar_select %p101, %s102, %s103
      %p107 = pneg %p101
      %p108 = scmp.eq.s32.totalorder %s23, 1
      %p109 = por %p107, %p108
      %p110 = scmp.ne.s32.totalorder %s102, %s105
      %p111 = scmp.eq.s32.totalorder %s23, 0
      %p112 = por %p110, %p111
      %p113 = scmp.ne.s32.totalorder %s102, %s105
      %p114 = scmp.eq.s32.totalorder %s28, 1
      %p115 = por %p113, %p114
      %p116 = scmp.ne.s32.totalorder %s105, %s106
      %p117 = scmp.eq.s32.totalorder %s28, 0
      %p118 = por %p116, %p117
      %p119 = scmp.ne.s32.totalorder %s105, %s106
      %p120 = scmp.eq.s32.totalorder %s29, 1
      %p121 = por %p119, %p120
      %p123 = scmp.ne.s32.totalorder %s106, %s122
      %p124 = scmp.eq.s32.totalorder %s29, 0
      %p125 = por %p123, %p124
      %s126 = smul.u32 %s31, 2
      %s127 = ssub.s32 0, %s126
      %s128 = smul.u32 %s30, %s127
      %s129 = sadd.s32 %s31, %s128
      %s130 = smul.u32 %s38, 2
      %s131 = ssub.s32 0, %s130
      %s132 = smul.u32 %s42, %s131
      %s133 = sadd.s32 %s38, %s132
      %s134 = ssub.s32 %s129, %s133
      %s135 = ssub.s32 %s30, %s42
      %s136 = sor.u32 %s134, %s135
      %p137 = scmp.eq.s32.totalorder %s136, 0
      %s139 = sadd.s32 %s138, 1
      %s140 = scalar_select %p137, %s138, %s139
      %p143 = pneg %p137
      %p144 = scmp.eq.s32.totalorder %s23, 1
      %p145 = por %p143, %p144
      %p146 = scmp.ne.s32.totalorder %s138, %s141
      %p147 = scmp.eq.s32.totalorder %s23, 0
      %p148 = por %p146, %p147
      %p149 = scmp.ne.s32.totalorder %s138, %s141
      %p150 = scmp.eq.s32.totalorder %s28, 1
      %p151 = por %p149, %p150
      %p152 = scmp.ne.s32.totalorder %s141, %s142
      %p153 = scmp.eq.s32.totalorder %s28, 0
      %p154 = por %p152, %p153
      %p155 = scmp.ne.s32.totalorder %s141, %s142
      %p156 = scmp.eq.s32.totalorder %s29, 1
      %p157 = por %p155, %p156
      %p159 = scmp.ne.s32.totalorder %s142, %s158
      %p160 = scmp.eq.s32.totalorder %s29, 0
      %p161 = por %p159, %p160
      %s162 = ssub.s32 %s30, %s42
      %p163 = scmp.eq.s32.totalorder %s162, 0
      %s165 = sadd.s32 %s164, 1
      %s166 = scalar_select %p163, %s164, %s165
      %p169 = pneg %p163
      %p170 = scmp.eq.s32.totalorder %s23, 1
      %p171 = por %p169, %p170
      %p172 = scmp.ne.s32.totalorder %s164, %s167
      %p173 = scmp.eq.s32.totalorder %s23, 0
      %p174 = por %p172, %p173
      %p175 = scmp.ne.s32.totalorder %s164, %s167
      %p176 = scmp.eq.s32.totalorder %s28, 1
      %p177 = por %p175, %p176
      %p178 = scmp.ne.s32.totalorder %s167, %s168
      %p179 = scmp.eq.s32.totalorder %s28, 0
      %p180 = por %p178, %p179
      %p181 = scmp.ne.s32.totalorder %s167, %s168
      %p182 = scmp.eq.s32.totalorder %s29, 1
      %p183 = por %p181, %p182
      %p185 = scmp.ne.s32.totalorder %s168, %s184
      %p186 = scmp.eq.s32.totalorder %s29, 0
      %p187 = por %p185, %p186
      %p188 = scmp.le.s32.totalorder 1, %s23
      %p189 = scmp.lt.s32.totalorder %s23, 3
      %p190 = pnand %p188, %p189
      %p191 = pneg %p190
      // Predicated region
      $region9: #{tpu_custom_call.1} parent=5 // pred_check
        _
      $region10: #{tpu_custom_call.1} parent=5 // pred_check_branch
        %193 = sbr.rel (%p190) target = $region12
      $region11: #{tpu_custom_call.1} parent=5 // pred_region
        %s194 = ssub.s32 %s23, 1
        // Predicated region
        $region13: #{tpu_custom_call.1} parent=11 // pred_check
          %p195 = pneg %p56
        $region14: #{tpu_custom_call.1} parent=11 // pred_check_branch
          %197 = sbr.rel (%p195) target = $region16
        $region15: #{tpu_custom_call.1} parent=11 // pred_region
          _
        $region16: #{tpu_custom_call.1} parent=11 // pred_fallthru
          _
      $region12: #{tpu_custom_call.1} parent=5 // pred_fallthru
        _
      %p198 = scmp.lt.s32.totalorder %s23, 2
      // Predicated region
      $region17: #{tpu_custom_call.1} parent=5 // pred_check
        %p199 = pneg %p198
      $region18: #{tpu_custom_call.1} parent=5 // pred_check_branch
        %201 = sbr.rel (%p199) target = $region20
      $region19: #{tpu_custom_call.1} parent=5 // pred_region
        // Predicated region
        $region21: #{tpu_custom_call.1} parent=19 // pred_check
          %p202 = pneg %p86
        $region22: #{tpu_custom_call.1} parent=19 // pred_check_branch
          %204 = sbr.rel (%p202) target = $region24
        $region23: #{tpu_custom_call.1} parent=19 // pred_region
          %s205 = sand.u32 %s76, 1
          %s206 = scalar_lea.sflag [#allocation5], %s205
          %s207 = sand.u32 %s76, 1
          %s208 = smul.addr %s207, 512
          %s209 = scalar_lea.vmem [#allocation4], %s208
          %s210 = smul.u32 %s31, 2
          %s211 = ssub.s32 0, %s210
          %s212 = smul.u32 %s30, %s211
          %s213 = sadd.s32 %s31, %s212
          %s214 = smul.u32 16, %s213
          %s216 = ssub.s32 8192, 8192
          %217 = vsyncadd %s206, %s216
          %s218 = smul.addr %s214, 4
          %s219 = smul.addr %s30, 64
          %s220 = sadd.s32 %s218, %s219
          %s221 = smul.addr %s220, 128
          %s222 = scalar_lea.hbm %s1, %s221
          %s223 = sshll.u32 %s209, 4
          %s224 = int_to_ptr.vmem [resolvable:$true] %s223
          %229 = dma.hbm_to_vmem [thread:$0]  %s222, 8192, %s224, %s206, 512, 512, 32
        $region24: #{tpu_custom_call.1} parent=19 // pred_fallthru
          _
        // Predicated region
        $region25: #{tpu_custom_call.1} parent=19 // pred_check
          %p230 = pneg %p112
        $region26: #{tpu_custom_call.1} parent=19 // pred_check_branch
          %232 = sbr.rel (%p230) target = $region28
        $region27: #{tpu_custom_call.1} parent=19 // pred_region
          %s233 = sand.u32 %s102, 1
          %s234 = scalar_lea.sflag [#allocation8], %s233
          %s235 = sand.u32 %s102, 1
          %s236 = smul.addr %s235, 512
          %s237 = scalar_lea.vmem [#allocation7], %s236
          %s239 = ssub.s32 8192, 8192
          %240 = vsyncadd %s234, %s239
          %s241 = smul.addr %s30, 64
          %s242 = smul.addr %s241, 128
          %s243 = scalar_lea.hbm %s2, %s242
          %s244 = sshll.u32 %s237, 4
          %s245 = int_to_ptr.vmem [resolvable:$true] %s244
          %250 = dma.hbm_to_vmem [thread:$0]  %s243, 8192, %s245, %s234, 512, 512, 32
        $region28: #{tpu_custom_call.1} parent=19 // pred_fallthru
          _
      $region20: #{tpu_custom_call.1} parent=5 // pred_fallthru
        _
      %p251 = scmp.le.s32.totalorder 1, %s23
      %p252 = scmp.lt.s32.totalorder %s23, 3
      %p253 = pnand %p251, %p252
      %p254 = pneg %p253
      // Predicated region
      $region29: #{tpu_custom_call.1} parent=5 // pred_check
        _
      $region30: #{tpu_custom_call.1} parent=5 // pred_check_branch
        %256 = sbr.rel (%p253) target = $region32
      $region31: #{tpu_custom_call.1} parent=5 // pred_region
        %s257 = ssub.s32 %s23, 1
        %s258 = sand.u32 %s79, 1
        %s259 = scalar_lea.sflag [#allocation5], %s258
        %s260 = sand.u32 %s79, 1
        %s261 = smul.addr %s260, 512
        %s262 = scalar_lea.vmem [#allocation4], %s261
        // Predicated region
        $region33: #{tpu_custom_call.1} parent=31 // pred_check
          %p263 = pneg %p92
        $region34: #{tpu_custom_call.1} parent=31 // pred_check_branch
          %265 = sbr.rel (%p263) target = $region36
        $region35: #{tpu_custom_call.1} parent=31 // pred_region
          %266 = dma.done %s259, 8192
        $region36: #{tpu_custom_call.1} parent=31 // pred_fallthru
          _
        %s267 = sand.u32 %s105, 1
        %s268 = scalar_lea.sflag [#allocation8], %s267
        %s269 = sand.u32 %s105, 1
        %s270 = smul.addr %s269, 512
        %s271 = scalar_lea.vmem [#allocation7], %s270
        // Predicated region
        $region37: #{tpu_custom_call.1} parent=31 // pred_check
          %p272 = pneg %p118
        $region38: #{tpu_custom_call.1} parent=31 // pred_check_branch
          %274 = sbr.rel (%p272) target = $region40
        $region39: #{tpu_custom_call.1} parent=31 // pred_region
          %275 = dma.done %s268, 8192
        $region40: #{tpu_custom_call.1} parent=31 // pred_fallthru
          _
        %p276 = pneg %p56
        %p277 = pneg %p53
        %s278 = sand.u32 %s79, 1
        %s279 = scalar_lea.sflag [#allocation5], %s278
        %s280 = sand.u32 %s79, 1
        %s281 = smul.addr %s280, 512
        %s282 = scalar_lea.vmem [#allocation4], %s281
        %p283 = pneg %p92
        %p284 = pneg %p89
        %s285 = sand.u32 %s105, 1
        %s286 = scalar_lea.sflag [#allocation8], %s285
        %s287 = sand.u32 %s105, 1
        %s288 = smul.addr %s287, 512
        %s289 = scalar_lea.vmem [#allocation7], %s288
        %p290 = pneg %p118
        %p291 = pneg %p115
        %p292 = pneg %p154
        %p293 = pneg %p151
        %s294 = sand.u32 %s141, 1
        %s295 = scalar_lea.sflag [#allocation6], %s294
        %s296 = sand.u32 %s141, 1
        %s297 = smul.addr %s296, 128
        %s298 = scalar_lea.vmem [#allocation9], %s297
        %p299 = pneg %p180
        %p300 = pneg %p177
        %s301 = sand.u32 %s167, 1
        %s302 = scalar_lea.sflag [#allocation11], %s301
        %s303 = sand.u32 %s167, 1
        %s304 = smul.addr %s303, 8
        %s305 = scalar_lea.vmem [#allocation10], %s304
        %s306 = smul.u32 %s33, 2
        %s307 = ssub.s32 0, %s306
        %s308 = smul.u32 %s32, %s307
        %s309 = sadd.s32 %s33, %s308
        %s310 = smul.u32 16, %s309
        %s311 = smul.u32 %s33, 2
        %s312 = ssub.s32 0, %s311
        %s313 = smul.u32 %s32, %s312
        %s314 = sadd.s32 %s33, %s313
        %s315 = smul.u32 16, %s314
        %p316 = scmp.eq.s32.totalorder %s33, 0
        // Predicated region
        $region41: #{tpu_custom_call.1} parent=31 // pred_check
          %p317 = pneg %p316
        $region42: #{tpu_custom_call.1} parent=31 // pred_check_branch
          %319 = sbr.rel (%p317) target = $region44
        $region43: #{tpu_custom_call.1} parent=31 // pred_region
          %320 = vst [vmem:[#allocation2] sm:$0xff] 0.0
          %321 = vst [vmem:[#allocation3] sm:$0xff] 0.0
        $region44: #{tpu_custom_call.1} parent=31 // pred_fallthru
          _
        %s322 = smul.u32 %s33, 2
        %s323 = ssub.s32 0, %s322
        %s324 = smul.u32 %s32, %s323
        %s325 = sadd.s32 %s33, %s324
        %s326 = smul.u32 %s325, 16
        %v327 = vld [vmem:[%s0] sm:$0xff]
        %v328 = vld [vmem:[%s271] sm:$0xff]
        %v329 = vld [vmem:[%s271 + $0x8] sm:$0xff]
        %v330 = vld [vmem:[%s271 + $0x10] sm:$0xff]
        %v331 = vld [vmem:[%s271 + $0x18] sm:$0xff]
        %v332 = vld [vmem:[%s271 + $0x20] sm:$0xff]
        %v333 = vld [vmem:[%s271 + $0x28] sm:$0xff]
        %v334 = vld [vmem:[%s271 + $0x30] sm:$0xff]
        %v335 = vld [vmem:[%s271 + $0x38] sm:$0xff]
        %v336 = vld [vmem:[%s271 + $0x40] sm:$0xff]
        %v337 = vld [vmem:[%s271 + $0x48] sm:$0xff]
        %v338 = vld [vmem:[%s271 + $0x50] sm:$0xff]
        %v339 = vld [vmem:[%s271 + $0x58] sm:$0xff]
        %v340 = vld [vmem:[%s271 + $0x60] sm:$0xff]
        %v341 = vld [vmem:[%s271 + $0x68] sm:$0xff]
        %v342 = vld [vmem:[%s271 + $0x70] sm:$0xff]
        %v343 = vld [vmem:[%s271 + $0x78] sm:$0xff]
        %v344 = vld [vmem:[%s271 + $0x80] sm:$0xff]
        %v345 = vld [vmem:[%s271 + $0x88] sm:$0xff]
        %v346 = vld [vmem:[%s271 + $0x90] sm:$0xff]
        %v347 = vld [vmem:[%s271 + $0x98] sm:$0xff]
        %v348 = vld [vmem:[%s271 + $0xa0] sm:$0xff]
        %v349 = vld [vmem:[%s271 + $0xa8] sm:$0xff]
        %v350 = vld [vmem:[%s271 + $0xb0] sm:$0xff]
        %v351 = vld [vmem:[%s271 + $0xb8] sm:$0xff]
        %v352 = vld [vmem:[%s271 + $0xc0] sm:$0xff]
        %v353 = vld [vmem:[%s271 + $0xc8] sm:$0xff]
        %v354 = vld [vmem:[%s271 + $0xd0] sm:$0xff]
        %v355 = vld [vmem:[%s271 + $0xd8] sm:$0xff]
        %v356 = vld [vmem:[%s271 + $0xe0] sm:$0xff]
        %v357 = vld [vmem:[%s271 + $0xe8] sm:$0xff]
        %v358 = vld [vmem:[%s271 + $0xf0] sm:$0xff]
        %v359 = vld [vmem:[%s271 + $0xf8] sm:$0xff]
        %v360 = vld [vmem:[%s271 + $0x100] sm:$0xff]
        %v361 = vld [vmem:[%s271 + $0x108] sm:$0xff]
        %v362 = vld [vmem:[%s271 + $0x110] sm:$0xff]
        %v363 = vld [vmem:[%s271 + $0x118] sm:$0xff]
        %v364 = vld [vmem:[%s271 + $0x120] sm:$0xff]
        %v365 = vld [vmem:[%s271 + $0x128] sm:$0xff]
        %v366 = vld [vmem:[%s271 + $0x130] sm:$0xff]
        %v367 = vld [vmem:[%s271 + $0x138] sm:$0xff]
        %v368 = vld [vmem:[%s271 + $0x140] sm:$0xff]
        %v369 = vld [vmem:[%s271 + $0x148] sm:$0xff]
        %v370 = vld [vmem:[%s271 + $0x150] sm:$0xff]
        %v371 = vld [vmem:[%s271 + $0x158] sm:$0xff]
        %v372 = vld [vmem:[%s271 + $0x160] sm:$0xff]
        %v373 = vld [vmem:[%s271 + $0x168] sm:$0xff]
        %v374 = vld [vmem:[%s271 + $0x170] sm:$0xff]
        %v375 = vld [vmem:[%s271 + $0x178] sm:$0xff]
        %v376 = vld [vmem:[%s271 + $0x180] sm:$0xff]
        %v377 = vld [vmem:[%s271 + $0x188] sm:$0xff]
        %v378 = vld [vmem:[%s271 + $0x190] sm:$0xff]
        %v379 = vld [vmem:[%s271 + $0x198] sm:$0xff]
        %v380 = vld [vmem:[%s271 + $0x1a0] sm:$0xff]
        %v381 = vld [vmem:[%s271 + $0x1a8] sm:$0xff]
        %v382 = vld [vmem:[%s271 + $0x1b0] sm:$0xff]
        %v383 = vld [vmem:[%s271 + $0x1b8] sm:$0xff]
        %v384 = vld [vmem:[%s271 + $0x1c0] sm:$0xff]
        %v385 = vld [vmem:[%s271 + $0x1c8] sm:$0xff]
        %v386 = vld [vmem:[%s271 + $0x1d0] sm:$0xff]
        %v387 = vld [vmem:[%s271 + $0x1d8] sm:$0xff]
        %v388 = vld [vmem:[%s271 + $0x1e0] sm:$0xff]
        %v389 = vld [vmem:[%s271 + $0x1e8] sm:$0xff]
        %v390 = vld [vmem:[%s271 + $0x1f0] sm:$0xff]
        %v391 = vld [vmem:[%s271 + $0x1f8] sm:$0xff]
        %v392 = vld [vmem:[#allocation2] sm:$0xff]
        %v393 = vld [vmem:[#allocation3] sm:$0xff]
        %s394 = smul.u32 %s32, 15
        %s395 = smul.u32 %s32, 120
        %s396 = sshra.s32 %s395, 3
        %s397 = sand.u32 %s395, 7
        %s398 = smul.u32 %s396, 4
        %s399 = smul.addr %s398, 8
        %s400 = scalar_lea.vmem %s262, %s399 [#allocation4]
        %v401 = vld [vmem:[%s400] sm:$0xff]
        %v402 = vld [vmem:[%s400 + $0x8] sm:$0xff]
        %v403 = vld [vmem:[%s400 + $0x10] sm:$0xff]
        %v404 = vld [vmem:[%s400 + $0x18] sm:$0xff]
        %405 = vmatprep.subr.mxu0 %v329
        %406 = vmatpush1.msra.mxu0 %v328
        %407 = vmatprep.subr.mxu0 %v333
        %408 = vmatpush1.msra.mxu0 %v332
        %409 = vmatprep.subr.mxu0 %v337
        %410 = vmatpush1.msra.mxu0 %v336
        %411 = vmatprep.subr.mxu0 %v341
        %412 = vmatpush1.msra.mxu0 %v340
        %413 = vmatprep.subr.mxu0 %v345
        %414 = vmatpush1.msra.mxu0 %v344
        %415 = vmatprep.subr.mxu0 %v349
        %416 = vmatpush1.msra.mxu0 %v348
        %417 = vmatprep.subr.mxu0 %v353
        %418 = vmatpush1.msra.mxu0 %v352
        %419 = vmatprep.subr.mxu0 %v357
        %420 = vmatpush1.msra.mxu0 %v356
        %421 = vmatprep.subr.mxu0 %v361
        %422 = vmatpush1.msra.mxu0 %v360
        %423 = vmatprep.subr.mxu0 %v365
        %424 = vmatpush1.msra.mxu0 %v364
        %425 = vmatprep.subr.mxu0 %v369
        %426 = vmatpush1.msra.mxu0 %v368
        %427 = vmatprep.subr.mxu0 %v373
        %428 = vmatpush1.msra.mxu0 %v372
        %429 = vmatprep.subr.mxu0 %v377
        %430 = vmatpush1.msra.mxu0 %v376
        %431 = vmatprep.subr.mxu0 %v381
        %432 = vmatpush1.msra.mxu0 %v380
        %433 = vmatprep.subr.mxu0 %v385
        %434 = vmatpush1.msra.mxu0 %v384
        %435 = vmatprep.subr.mxu0 %v389
        %436 = vmatpush1.msra.mxu0 %v388
        %437 = vmatprep.subr.mxu0 0.0
        %438 = vmatpush1.msra.mxu0 0.0
        %439 = vmatprep.subr.mxu0 0.0
        %440 = vmatpush1.msra.mxu0 0.0
        %441 = vmatprep.subr.mxu0 0.0
        %442 = vmatpush1.msra.mxu0 0.0
        %443 = vmatprep.subr.mxu0 0.0
        %444 = vmatpush1.msra.mxu0 0.0
        %445 = vmatprep.subr.mxu0 0.0
        %446 = vmatpush1.msra.mxu0 0.0
        %447 = vmatprep.subr.mxu0 0.0
        %448 = vmatpush1.msra.mxu0 0.0
        %449 = vmatprep.subr.mxu0 0.0
        %450 = vmatpush1.msra.mxu0 0.0
        %451 = vmatprep.subr.mxu0 0.0
        %452 = vmatpush1.msra.mxu0 0.0
        %453 = vmatprep.subr.mxu0 0.0
        %454 = vmatpush1.msra.mxu0 0.0
        %455 = vmatprep.subr.mxu0 0.0
        %456 = vmatpush1.msra.mxu0 0.0
        %457 = vmatprep.subr.mxu0 0.0
        %458 = vmatpush1.msra.mxu0 0.0
        %459 = vmatprep.subr.mxu0 0.0
        %460 = vmatpush1.msra.mxu0 0.0
        %461 = vmatprep.subr.mxu0 0.0
        %462 = vmatpush1.msra.mxu0 0.0
        %463 = vmatprep.subr.mxu0 0.0
        %464 = vmatpush1.msra.mxu0 0.0
        %465 = vmatprep.subr.mxu0 0.0
        %466 = vmatpush1.msra.mxu0 0.0
        %467 = vmatprep.subr.mxu0 0.0
        %468 = vmatpush1.msra.mxu0 0.0
        %469 = vmatprep.mubr.f32.mxu0 0.0
        %470 = vmatmul.mubr.f32.gmra.mrb[0].mxu0 %v392
        %v471 = vpop.f32.mrb[0].mxu0
        %v472 = vadd.f32 0.0, %v471
        %v473 = vpop.f32.mrb[0].mxu0
        %v474 = vadd.f32 0.0, %v473
        %475 = vdwg.mxu0
        %476 = vmatprep.subr.mxu0 %v331
        %477 = vmatpush1.msra.mxu0 %v330
        %478 = vmatprep.subr.mxu0 %v335
        %479 = vmatpush1.msra.mxu0 %v334
        %480 = vmatprep.subr.mxu0 %v339
        %481 = vmatpush1.msra.mxu0 %v338
        %482 = vmatprep.subr.mxu0 %v343
        %483 = vmatpush1.msra.mxu0 %v342
        %484 = vmatprep.subr.mxu0 %v347
        %485 = vmatpush1.msra.mxu0 %v346
        %486 = vmatprep.subr.mxu0 %v351
        %487 = vmatpush1.msra.mxu0 %v350
        %488 = vmatprep.subr.mxu0 %v355
        %489 = vmatpush1.msra.mxu0 %v354
        %490 = vmatprep.subr.mxu0 %v359
        %491 = vmatpush1.msra.mxu0 %v358
        %492 = vmatprep.subr.mxu0 %v363
        %493 = vmatpush1.msra.mxu0 %v362
        %494 = vmatprep.subr.mxu0 %v367
        %495 = vmatpush1.msra.mxu0 %v366
        %496 = vmatprep.subr.mxu0 %v371
        %497 = vmatpush1.msra.mxu0 %v370
        %498 = vmatprep.subr.mxu0 %v375
        %499 = vmatpush1.msra.mxu0 %v374
        %500 = vmatprep.subr.mxu0 %v379
        %501 = vmatpush1.msra.mxu0 %v378
        %502 = vmatprep.subr.mxu0 %v383
        %503 = vmatpush1.msra.mxu0 %v382
        %504 = vmatprep.subr.mxu0 %v387
        %505 = vmatpush1.msra.mxu0 %v386
        %506 = vmatprep.subr.mxu0 %v391
        %507 = vmatpush1.msra.mxu0 %v390
        %508 = vmatprep.subr.mxu0 0.0
        %509 = vmatpush1.msra.mxu0 0.0
        %510 = vmatprep.subr.mxu0 0.0
        %511 = vmatpush1.msra.mxu0 0.0
        %512 = vmatprep.subr.mxu0 0.0
        %513 = vmatpush1.msra.mxu0 0.0
        %514 = vmatprep.subr.mxu0 0.0
        %515 = vmatpush1.msra.mxu0 0.0
        %516 = vmatprep.subr.mxu0 0.0
        %517 = vmatpush1.msra.mxu0 0.0
        %518 = vmatprep.subr.mxu0 0.0
        %519 = vmatpush1.msra.mxu0 0.0
        %520 = vmatprep.subr.mxu0 0.0
        %521 = vmatpush1.msra.mxu0 0.0
        %522 = vmatprep.subr.mxu0 0.0
        %523 = vmatpush1.msra.mxu0 0.0
        %524 = vmatprep.subr.mxu0 0.0
        %525 = vmatpush1.msra.mxu0 0.0
        %526 = vmatprep.subr.mxu0 0.0
        %527 = vmatpush1.msra.mxu0 0.0
        %528 = vmatprep.subr.mxu0 0.0
        %529 = vmatpush1.msra.mxu0 0.0
        %530 = vmatprep.subr.mxu0 0.0
        %531 = vmatpush1.msra.mxu0 0.0
        %532 = vmatprep.subr.mxu0 0.0
        %533 = vmatpush1.msra.mxu0 0.0
        %534 = vmatprep.subr.mxu0 0.0
        %535 = vmatpush1.msra.mxu0 0.0
        %536 = vmatprep.subr.mxu0 0.0
        %537 = vmatpush1.msra.mxu0 0.0
        %538 = vmatprep.subr.mxu0 0.0
        %539 = vmatpush1.msra.mxu0 0.0
        %540 = vmatprep.mubr.f32.mxu0 0.0
        %541 = vmatmul.mubr.f32.gmra.mrb[0].mxu0 %v392
        %v542 = vpop.f32.mrb[0].mxu0
        %v543 = vadd.f32 0.0, %v542
        %v544 = vpop.f32.mrb[0].mxu0
        %v545 = vadd.f32 0.0, %v544
        %546 = vdwg.mxu0
        %v547 = vadd.f32 %v401, %v472
        %v548 = vadd.f32 %v402, %v474
        %v549 = vadd.f32 %v403, %v543
        %v550 = vadd.f32 %v404, %v545
        %v551 = vxor.u32 %v547, 2147483648
        %v552 = vmul.f32 %v551, 1.442695
        %v553 = vpow.pop %v552
        %v554 = vadd.f32 %v553, 1.0
        %v555 = vrcp.pop %v554
        %v556 = vmul.f32 1.0, %v555
        %v557 = vxor.u32 %v548, 2147483648
        %v558 = vmul.f32 %v557, 1.442695
        %v559 = vpow.pop %v558
        %v560 = vadd.f32 %v559, 1.0
        %v561 = vrcp.pop %v560
        %v562 = vmul.f32 1.0, %v561
        %v563 = vtanh.pop %v549
        %v564 = vxor.u32 %v550, 2147483648
        %v565 = vmul.f32 %v564, 1.442695
        %v566 = vpow.pop %v565
        %v567 = vadd.f32 %v566, 1.0
        %v568 = vrcp.pop %v567
        %v569 = vmul.f32 1.0, %v568
        %v570 = vmul.f32 %v562, %v393
        %v571 = vmul.f32 %v556, %v563
        %v572 = vadd.f32 %v570, %v571
        %v573 = vtanh.pop %v572
        %v574 = vmul.f32 %v569, %v573
        %s575 = sadd.s32 %s326, %s394
        %v576 = vstv %s575
        %vm577 = vcmp.gt.s32.totalorder %v327, %v576
        %v578 = vsel %vm577, 1, 0
        %579 = vset.pattern.permute.xlu0 0
        %580 = vperm.xlu0 %579, %v578
        %v581 = vpop.permute.xlu0 %580
        %vm582 = vcmp.eq.s32.totalorder %v581, 1
        %v583 = vsel %vm582, %v574, %v392
        %v584 = vsel %vm582, %v572, %v393
        %v585 = vsel %vm582, %v574, 0.0
        %s586 = smul.u32 %s394, 8
        %s587 = scalar_lea.vmem %s298, %s586 [#allocation9]
        %588 = vst [vmem:[%s587] sm:$0xff] %v585
        %s589 = smul.u32 %s32, 13
        %s590 = sadd.s32 %s589, 1
        %s591 = smul.u32 %s590, 8
        %s592 = sshra.s32 %s591, 3
        %s593 = sand.u32 %s591, 7
        %s594 = smul.u32 %s592, 4
        %s595 = smul.addr %s594, 8
        %s596 = scalar_lea.vmem %s262, %s595 [#allocation4]
        %v597 = vld [vmem:[%s596] sm:$0xff]
        %v598 = vld [vmem:[%s596 + $0x8] sm:$0xff]
        %v599 = vld [vmem:[%s596 + $0x10] sm:$0xff]
        %v600 = vld [vmem:[%s596 + $0x18] sm:$0xff]
        %601 = vmatprep.subr.mxu0 %v329
        %602 = vmatpush1.msra.mxu0 %v328
        %603 = vmatprep.subr.mxu0 %v333
        %604 = vmatpush1.msra.mxu0 %v332
        %605 = vmatprep.subr.mxu0 %v337
        %606 = vmatpush1.msra.mxu0 %v336
        %607 = vmatprep.subr.mxu0 %v341
        %608 = vmatpush1.msra.mxu0 %v340
        %609 = vmatprep.subr.mxu0 %v345
        %610 = vmatpush1.msra.mxu0 %v344
        %611 = vmatprep.subr.mxu0 %v349
        %612 = vmatpush1.msra.mxu0 %v348
        %613 = vmatprep.subr.mxu0 %v353
        %614 = vmatpush1.msra.mxu0 %v352
        %615 = vmatprep.subr.mxu0 %v357
        %616 = vmatpush1.msra.mxu0 %v356
        %617 = vmatprep.subr.mxu0 %v361
        %618 = vmatpush1.msra.mxu0 %v360
        %619 = vmatprep.subr.mxu0 %v365
        %620 = vmatpush1.msra.mxu0 %v364
        %621 = vmatprep.subr.mxu0 %v369
        %622 = vmatpush1.msra.mxu0 %v368
        %623 = vmatprep.subr.mxu0 %v373
        %624 = vmatpush1.msra.mxu0 %v372
        %625 = vmatprep.subr.mxu0 %v377
        %626 = vmatpush1.msra.mxu0 %v376
        %627 = vmatprep.subr.mxu0 %v381
        %628 = vmatpush1.msra.mxu0 %v380
        %629 = vmatprep.subr.mxu0 %v385
        %630 = vmatpush1.msra.mxu0 %v384
        %631 = vmatprep.subr.mxu0 %v389
        %632 = vmatpush1.msra.mxu0 %v388
        %633 = vmatprep.subr.mxu0 0.0
        %634 = vmatpush1.msra.mxu0 0.0
        %635 = vmatprep.subr.mxu0 0.0
        %636 = vmatpush1.msra.mxu0 0.0
        %637 = vmatprep.subr.mxu0 0.0
        %638 = vmatpush1.msra.mxu0 0.0
        %639 = vmatprep.subr.mxu0 0.0
        %640 = vmatpush1.msra.mxu0 0.0
        %641 = vmatprep.subr.mxu0 0.0
        %642 = vmatpush1.msra.mxu0 0.0
        %643 = vmatprep.subr.mxu0 0.0
        %644 = vmatpush1.msra.mxu0 0.0
        %645 = vmatprep.subr.mxu0 0.0
        %646 = vmatpush1.msra.mxu0 0.0
        %647 = vmatprep.subr.mxu0 0.0
        %648 = vmatpush1.msra.mxu0 0.0
        %649 = vmatprep.subr.mxu0 0.0
        %650 = vmatpush1.msra.mxu0 0.0
        %651 = vmatprep.subr.mxu0 0.0
        %652 = vmatpush1.msra.mxu0 0.0
        %653 = vmatprep.subr.mxu0 0.0
        %654 = vmatpush1.msra.mxu0 0.0
        %655 = vmatprep.subr.mxu0 0.0
        %656 = vmatpush1.msra.mxu0 0.0
        %657 = vmatprep.subr.mxu0 0.0
        %658 = vmatpush1.msra.mxu0 0.0
        %659 = vmatprep.subr.mxu0 0.0
        %660 = vmatpush1.msra.mxu0 0.0
        %661 = vmatprep.subr.mxu0 0.0
        %662 = vmatpush1.msra.mxu0 0.0
        %663 = vmatprep.subr.mxu0 0.0
        %664 = vmatpush1.msra.mxu0 0.0
        %665 = vmatprep.mubr.f32.mxu0 0.0
        %666 = vmatmul.mubr.f32.gmra.mrb[0].mxu0 %v583
        %v667 = vpop.f32.mrb[0].mxu0
        %v668 = vadd.f32 0.0, %v667
        %v669 = vpop.f32.mrb[0].mxu0
        %v670 = vadd.f32 0.0, %v669
        %671 = vdwg.mxu0
        %672 = vmatprep.subr.mxu0 %v331
        %673 = vmatpush1.msra.mxu0 %v330
        %674 = vmatprep.subr.mxu0 %v335
        %675 = vmatpush1.msra.mxu0 %v334
        %676 = vmatprep.subr.mxu0 %v339
        %677 = vmatpush1.msra.mxu0 %v338
        %678 = vmatprep.subr.mxu0 %v343
        %679 = vmatpush1.msra.mxu0 %v342
        %680 = vmatprep.subr.mxu0 %v347
        %681 = vmatpush1.msra.mxu0 %v346
        %682 = vmatprep.subr.mxu0 %v351
        %683 = vmatpush1.msra.mxu0 %v350
        %684 = vmatprep.subr.mxu0 %v355
        %685 = vmatpush1.msra.mxu0 %v354
        %686 = vmatprep.subr.mxu0 %v359
        %687 = vmatpush1.msra.mxu0 %v358
        %688 = vmatprep.subr.mxu0 %v363
        %689 = vmatpush1.msra.mxu0 %v362
        %690 = vmatprep.subr.mxu0 %v367
        %691 = vmatpush1.msra.mxu0 %v366
        %692 = vmatprep.subr.mxu0 %v371
        %693 = vmatpush1.msra.mxu0 %v370
        %694 = vmatprep.subr.mxu0 %v375
        %695 = vmatpush1.msra.mxu0 %v374
        %696 = vmatprep.subr.mxu0 %v379
        %697 = vmatpush1.msra.mxu0 %v378
        %698 = vmatprep.subr.mxu0 %v383
        %699 = vmatpush1.msra.mxu0 %v382
        %700 = vmatprep.subr.mxu0 %v387
        %701 = vmatpush1.msra.mxu0 %v386
        %702 = vmatprep.subr.mxu0 %v391
        %703 = vmatpush1.msra.mxu0 %v390
        %704 = vmatprep.subr.mxu0 0.0
        %705 = vmatpush1.msra.mxu0 0.0
        %706 = vmatprep.subr.mxu0 0.0
        %707 = vmatpush1.msra.mxu0 0.0
        %708 = vmatprep.subr.mxu0 0.0
        %709 = vmatpush1.msra.mxu0 0.0
        %710 = vmatprep.subr.mxu0 0.0
        %711 = vmatpush1.msra.mxu0 0.0
        %712 = vmatprep.subr.mxu0 0.0
        %713 = vmatpush1.msra.mxu0 0.0
        %714 = vmatprep.subr.mxu0 0.0
        %715 = vmatpush1.msra.mxu0 0.0
        %716 = vmatprep.subr.mxu0 0.0
        %717 = vmatpush1.msra.mxu0 0.0
        %718 = vmatprep.subr.mxu0 0.0
        %719 = vmatpush1.msra.mxu0 0.0
        %720 = vmatprep.subr.mxu0 0.0
        %721 = vmatpush1.msra.mxu0 0.0
        %722 = vmatprep.subr.mxu0 0.0
        %723 = vmatpush1.msra.mxu0 0.0
        %724 = vmatprep.subr.mxu0 0.0
        %725 = vmatpush1.msra.mxu0 0.0
        %726 = vmatprep.subr.mxu0 0.0
        %727 = vmatpush1.msra.mxu0 0.0
        %728 = vmatprep.subr.mxu0 0.0
        %729 = vmatpush1.msra.mxu0 0.0
        %730 = vmatprep.subr.mxu0 0.0
        %731 = vmatpush1.msra.mxu0 0.0
        %732 = vmatprep.subr.mxu0 0.0
        %733 = vmatpush1.msra.mxu0 0.0
        %734 = vmatprep.subr.mxu0 0.0
        %735 = vmatpush1.msra.mxu0 0.0
        %736 = vmatprep.mubr.f32.mxu0 0.0
        %737 = vmatmul.mubr.f32.gmra.mrb[0].mxu0 %v583
        %v738 = vpop.f32.mrb[0].mxu0
        %v739 = vadd.f32 0.0, %v738
        %v740 = vpop.f32.mrb[0].mxu0
        %v741 = vadd.f32 0.0, %v740
        %742 = vdwg.mxu0
        %v743 = vadd.f32 %v597, %v668
        %v744 = vadd.f32 %v598, %v670
        %v745 = vadd.f32 %v599, %v739
        %v746 = vadd.f32 %v600, %v741
        %v747 = vxor.u32 %v743, 2147483648
        %v748 = vmul.f32 %v747, 1.442695
        %v749 = vpow.pop %v748
        %v750 = vadd.f32 %v749, 1.0
        %v751 = vrcp.pop %v750
        %v752 = vmul.f32 1.0, %v751
        %v753 = vxor.u32 %v744, 2147483648
        %v754 = vmul.f32 %v753, 1.442695
        %v755 = vpow.pop %v754
        %v756 = vadd.f32 %v755, 1.0
        %v757 = vrcp.pop %v756
        %v758 = vmul.f32 1.0, %v757
        %v759 = vtanh.pop %v745
        %v760 = vxor.u32 %v746, 2147483648
        %v761 = vmul.f32 %v760, 1.442695
        %v762 = vpow.pop %v761
        %v763 = vadd.f32 %v762, 1.0
        %v764 = vrcp.pop %v763
        %v765 = vmul.f32 1.0, %v764
        %v766 = vmul.f32 %v758, %v584
        %v767 = vmul.f32 %v752, %v759
        %v768 = vadd.f32 %v766, %v767
        %v769 = vtanh.pop %v768
        %v770 = vmul.f32 %v765, %v769
        %s771 = sadd.s32 %s326, %s590
        %v772 = vstv %s771
        %vm773 = vcmp.gt.s32.totalorder %v327, %v772
        %v774 = vsel %vm773, 1, 0
        %775 = vset.pattern.permute.xlu0 0
        %776 = vperm.xlu0 %775, %v774
        %v777 = vpop.permute.xlu0 %776
        %vm778 = vcmp.eq.s32.totalorder %v777, 1
        %v779 = vsel %vm778, %v770, %v583
        %v780 = vsel %vm778, %v768, %v584
        %v781 = vsel %vm778, %v770, 0.0
        %s782 = scalar_lea.vmem %s298, %s591 [#allocation9]
        %783 = vst [vmem:[%s782] sm:$0xff] %v781
        %s784 = smul.u32 %s32, 11
        %s785 = sadd.s32 %s784, 2
        %s786 = smul.u32 %s785, 8
        %s787 = sshra.s32 %s786, 3
        %s788 = sand.u32 %s786, 7
        %s789 = smul.u32 %s787, 4
        %s790 = smul.addr %s789, 8
        %s791 = scalar_lea.vmem %s262, %s790 [#allocation4]
        %v792 = vld [vmem:[%s791] sm:$0xff]
        %v793 = vld [vmem:[%s791 + $0x8] sm:$0xff]
        %v794 = vld [vmem:[%s791 + $0x10] sm:$0xff]
        %v795 = vld [vmem:[%s791 + $0x18] sm:$0xff]
        %796 = vmatprep.subr.mxu0 %v329
        %797 = vmatpush1.msra.mxu0 %v328
        %798 = vmatprep.subr.mxu0 %v333
        %799 = vmatpush1.msra.mxu0 %v332
        %800 = vmatprep.subr.mxu0 %v337
        %801 = vmatpush1.msra.mxu0 %v336
        %802 = vmatprep.subr.mxu0 %v341
        %803 = vmatpush1.msra.mxu0 %v340
        %804 = vmatprep.subr.mxu0 %v345
        %805 = vmatpush1.msra.mxu0 %v344
        %806 = vmatprep.subr.mxu0 %v349
        %807 = vmatpush1.msra.mxu0 %v348
        %808 = vmatprep.subr.mxu0 %v353
        %809 = vmatpush1.msra.mxu0 %v352
        %810 = vmatprep.subr.mxu0 %v357
        %811 = vmatpush1.msra.mxu0 %v356
        %812 = vmatprep.subr.mxu0 %v361
        %813 = vmatpush1.msra.mxu0 %v360
        %814 = vmatprep.subr.mxu0 %v365
        %815 = vmatpush1.msra.mxu0 %v364
        %816 = vmatprep.subr.mxu0 %v369
        %817 = vmatpush1.msra.mxu0 %v368
        %818 = vmatprep.subr.mxu0 %v373
        %819 = vmatpush1.msra.mxu0 %v372
        %820 = vmatprep.subr.mxu0 %v377
        %821 = vmatpush1.msra.mxu0 %v376
        %822 = vmatprep.subr.mxu0 %v381
        %823 = vmatpush1.msra.mxu0 %v380
        %824 = vmatprep.subr.mxu0 %v385
        %825 = vmatpush1.msra.mxu0 %v384
        %826 = vmatprep.subr.mxu0 %v389
        %827 = vmatpush1.msra.mxu0 %v388
        %828 = vmatprep.subr.mxu0 0.0
        %829 = vmatpush1.msra.mxu0 0.0
        %830 = vmatprep.subr.mxu0 0.0
        %831 = vmatpush1.msra.mxu0 0.0
        %832 = vmatprep.subr.mxu0 0.0
        %833 = vmatpush1.msra.mxu0 0.0
        %834 = vmatprep.subr.mxu0 0.0
        %835 = vmatpush1.msra.mxu0 0.0
        %836 = vmatprep.subr.mxu0 0.0
        %837 = vmatpush1.msra.mxu0 0.0
        %838 = vmatprep.subr.mxu0 0.0
        %839 = vmatpush1.msra.mxu0 0.0
        %840 = vmatprep.subr.mxu0 0.0
        %841 = vmatpush1.msra.mxu0 0.0
        %842 = vmatprep.subr.mxu0 0.0
        %843 = vmatpush1.msra.mxu0 0.0
        %844 = vmatprep.subr.mxu0 0.0
        %845 = vmatpush1.msra.mxu0 0.0
        %846 = vmatprep.subr.mxu0 0.0
        %847 = vmatpush1.msra.mxu0 0.0
        %848 = vmatprep.subr.mxu0 0.0
        %849 = vmatpush1.msra.mxu0 0.0
        %850 = vmatprep.subr.mxu0 0.0
        %851 = vmatpush1.msra.mxu0 0.0
        %852 = vmatprep.subr.mxu0 0.0
        %853 = vmatpush1.msra.mxu0 0.0
        %854 = vmatprep.subr.mxu0 0.0
        %855 = vmatpush1.msra.mxu0 0.0
        %856 = vmatprep.subr.mxu0 0.0
        %857 = vmatpush1.msra.mxu0 0.0
        %858 = vmatprep.subr.mxu0 0.0
        %859 = vmatpush1.msra.mxu0 0.0
        %860 = vmatprep.mubr.f32.mxu0 0.0
        %861 = vmatmul.mubr.f32.gmra.mrb[0].mxu0 %v779
        %v862 = vpop.f32.mrb[0].mxu0
        %v863 = vadd.f32 0.0, %v862
        %v864 = vpop.f32.mrb[0].mxu0
        %v865 = vadd.f32 0.0, %v864
        %866 = vdwg.mxu0
        %867 = vmatprep.subr.mxu0 %v331
        %868 = vmatpush1.msra.mxu0 %v330
        %869 = vmatprep.subr.mxu0 %v335
        %870 = vmatpush1.msra.mxu0 %v334
        %871 = vmatprep.subr.mxu0 %v339
        %872 = vmatpush1.msra.mxu0 %v338
        %873 = vmatprep.subr.mxu0 %v343
        %874 = vmatpush1.msra.mxu0 %v342
        %875 = vmatprep.subr.mxu0 %v347
        %876 = vmatpush1.msra.mxu0 %v346
        %877 = vmatprep.subr.mxu0 %v351
        %878 = vmatpush1.msra.mxu0 %v350
        %879 = vmatprep.subr.mxu0 %v355
        %880 = vmatpush1.msra.mxu0 %v354
        %881 = vmatprep.subr.mxu0 %v359
        %882 = vmatpush1.msra.mxu0 %v358
        %883 = vmatprep.subr.mxu0 %v363
        %884 = vmatpush1.msra.mxu0 %v362
        %885 = vmatprep.subr.mxu0 %v367
        %886 = vmatpush1.msra.mxu0 %v366
        %887 = vmatprep.subr.mxu0 %v371
        %888 = vmatpush1.msra.mxu0 %v370
        %889 = vmatprep.subr.mxu0 %v375
        %890 = vmatpush1.msra.mxu0 %v374
        %891 = vmatprep.subr.mxu0 %v379
        %892 = vmatpush1.msra.mxu0 %v378
        %893 = vmatprep.subr.mxu0 %v383
        %894 = vmatpush1.msra.mxu0 %v382
        %895 = vmatprep.subr.mxu0 %v387
        %896 = vmatpush1.msra.mxu0 %v386
        %897 = vmatprep.subr.mxu0 %v391
        %898 = vmatpush1.msra.mxu0 %v390
        %899 = vmatprep.subr.mxu0 0.0
        %900 = vmatpush1.msra.mxu0 0.0
        %901 = vmatprep.subr.mxu0 0.0
        %902 = vmatpush1.msra.mxu0 0.0
        %903 = vmatprep.subr.mxu0 0.0
        %904 = vmatpush1.msra.mxu0 0.0
        %905 = vmatprep.subr.mxu0 0.0
        %906 = vmatpush1.msra.mxu0 0.0
        %907 = vmatprep.subr.mxu0 0.0
        %908 = vmatpush1.msra.mxu0 0.0
        %909 = vmatprep.subr.mxu0 0.0
        %910 = vmatpush1.msra.mxu0 0.0
        %911 = vmatprep.subr.mxu0 0.0
        %912 = vmatpush1.msra.mxu0 0.0
        %913 = vmatprep.subr.mxu0 0.0
        %914 = vmatpush1.msra.mxu0 0.0
        %915 = vmatprep.subr.mxu0 0.0
        %916 = vmatpush1.msra.mxu0 0.0
        %917 = vmatprep.subr.mxu0 0.0
        %918 = vmatpush1.msra.mxu0 0.0
        %919 = vmatprep.subr.mxu0 0.0
        %920 = vmatpush1.msra.mxu0 0.0
        %921 = vmatprep.subr.mxu0 0.0
        %922 = vmatpush1.msra.mxu0 0.0
        %923 = vmatprep.subr.mxu0 0.0
        %924 = vmatpush1.msra.mxu0 0.0
        %925 = vmatprep.subr.mxu0 0.0
        %926 = vmatpush1.msra.mxu0 0.0
        %927 = vmatprep.subr.mxu0 0.0
        %928 = vmatpush1.msra.mxu0 0.0
        %929 = vmatprep.subr.mxu0 0.0
        %930 = vmatpush1.msra.mxu0 0.0
        %931 = vmatprep.mubr.f32.mxu0 0.0
        %932 = vmatmul.mubr.f32.gmra.mrb[0].mxu0 %v779
        %v933 = vpop.f32.mrb[0].mxu0
        %v934 = vadd.f32 0.0, %v933
        %v935 = vpop.f32.mrb[0].mxu0
        %v936 = vadd.f32 0.0, %v935
        %937 = vdwg.mxu0
        %v938 = vadd.f32 %v792, %v863
        %v939 = vadd.f32 %v793, %v865
        %v940 = vadd.f32 %v794, %v934
        %v941 = vadd.f32 %v795, %v936
        %v942 = vxor.u32 %v938, 2147483648
        %v943 = vmul.f32 %v942, 1.442695
        %v944 = vpow.pop %v943
        %v945 = vadd.f32 %v944, 1.0
        %v946 = vrcp.pop %v945
        %v947 = vmul.f32 1.0, %v946
        %v948 = vxor.u32 %v939, 2147483648
        %v949 = vmul.f32 %v948, 1.442695
        %v950 = vpow.pop %v949
        %v951 = vadd.f32 %v950, 1.0
        %v952 = vrcp.pop %v951
        %v953 = vmul.f32 1.0, %v952
        %v954 = vtanh.pop %v940
        %v955 = vxor.u32 %v941, 2147483648
        %v956 = vmul.f32 %v955, 1.442695
        %v957 = vpow.pop %v956
        %v958 = vadd.f32 %v957, 1.0
        %v959 = vrcp.pop %v958
        %v960 = vmul.f32 1.0, %v959
        %v961 = vmul.f32 %v953, %v780
        %v962 = vmul.f32 %v947, %v954
        %v963 = vadd.f32 %v961, %v962
        %v964 = vtanh.pop %v963
        %v965 = vmul.f32 %v960, %v964
        %s966 = sadd.s32 %s326, %s785
        %v967 = vstv %s966
        %vm968 = vcmp.gt.s32.totalorder %v327, %v967
        %v969 = vsel %vm968, 1, 0
        %970 = vset.pattern.permute.xlu0 0
        %971 = vperm.xlu0 %970, %v969
        %v972 = vpop.permute.xlu0 %971
        %vm973 = vcmp.eq.s32.totalorder %v972, 1
        %v974 = vsel %vm973, %v965, %v779
        %v975 = vsel %vm973, %v963, %v780
        %v976 = vsel %vm973, %v965, 0.0
        %s977 = scalar_lea.vmem %s298, %s786 [#allocation9]
        %978 = vst [vmem:[%s977] sm:$0xff] %v976
        %s979 = smul.u32 %s32, 9
        %s980 = sadd.s32 %s979, 3
        %s981 = smul.u32 %s980, 8
        %s982 = sshra.s32 %s981, 3
        %s983 = sand.u32 %s981, 7
        %s984 = smul.u32 %s982, 4
        %s985 = smul.addr %s984, 8
        %s986 = scalar_lea.vmem %s262, %s985 [#allocation4]
        %v987 = vld [vmem:[%s986] sm:$0xff]
        %v988 = vld [vmem:[%s986 + $0x8] sm:$0xff]
        %v989 = vld [vmem:[%s986 + $0x10] sm:$0xff]
        %v990 = vld [vmem:[%s986 + $0x18] sm:$0xff]
        %991 = vmatprep.subr.mxu0 %v329
        %992 = vmatpush1.msra.mxu0 %v328
        %993 = vmatprep.subr.mxu0 %v333
        %994 = vmatpush1.msra.mxu0 %v332
        %995 = vmatprep.subr.mxu0 %v337
        %996 = vmatpush1.msra.mxu0 %v336
        %997 = vmatprep.subr.mxu0 %v341
        %998 = vmatpush1.msra.mxu0 %v340
        %999 = vmatprep.subr.mxu0 %v345
        %1000 = vmatpush1.msra.mxu0 %v344
        %1001 = vmatprep.subr.mxu0 %v349
        %1002 = vmatpush1.msra.mxu0 %v348
        %1003 = vmatprep.subr.mxu0 %v353
        %1004 = vmatpush1.msra.mxu0 %v352
        %1005 = vmatprep.subr.mxu0 %v357
        %1006 = vmatpush1.msra.mxu0 %v356
        %1007 = vmatprep.subr.mxu0 %v361
        %1008 = vmatpush1.msra.mxu0 %v360
        %1009 = vmatprep.subr.mxu0 %v365
        %1010 = vmatpush1.msra.mxu0 %v364
        %1011 = vmatprep.subr.mxu0 %v369
        %1012 = vmatpush1.msra.mxu0 %v368
        %1013 = vmatprep.subr.mxu0 %v373
        %1014 = vmatpush1.msra.mxu0 %v372
        %1015 = vmatprep.subr.mxu0 %v377
        %1016 = vmatpush1.msra.mxu0 %v376
        %1017 = vmatprep.subr.mxu0 %v381
        %1018 = vmatpush1.msra.mxu0 %v380
        %1019 = vmatprep.subr.mxu0 %v385
        %1020 = vmatpush1.msra.mxu0 %v384
        %1021 = vmatprep.subr.mxu0 %v389
        %1022 = vmatpush1.msra.mxu0 %v388
        %1023 = vmatprep.subr.mxu0 0.0
        %1024 = vmatpush1.msra.mxu0 0.0
        %1025 = vmatprep.subr.mxu0 0.0
        %1026 = vmatpush1.msra.mxu0 0.0
        %1027 = vmatprep.subr.mxu0 0.0
        %1028 = vmatpush1.msra.mxu0 0.0
        %1029 = vmatprep.subr.mxu0 0.0
        %1030 = vmatpush1.msra.mxu0 0.0
        %1031 = vmatprep.subr.mxu0 0.0
        %1032 = vmatpush1.msra.mxu0 0.0
        %1033 = vmatprep.subr.mxu0 0.0
        %1034 = vmatpush1.msra.mxu0 0.0
        %1035 = vmatprep.subr.mxu0 0.0
        %1036 = vmatpush1.msra.mxu0 0.0
        %1037 = vmatprep.subr.mxu0 0.0
        %1038 = vmatpush1.msra.mxu0 0.0
        %1039 = vmatprep.subr.mxu0 0.0
        %1040 = vmatpush1.msra.mxu0 0.0
        %1041 = vmatprep.subr.mxu0 0.0
        %1042 = vmatpush1.msra.mxu0 0.0
        %1043 = vmatprep.subr.mxu0 0.0
        %1044 = vmatpush1.msra.mxu0 0.0
        %1045 = vmatprep.subr.mxu0 0.0
        %1046 = vmatpush1.msra.mxu0 0.0
        %1047 = vmatprep.subr.mxu0 0.0
        %1048 = vmatpush1.msra.mxu0 0.0
        %1049 = vmatprep.subr.mxu0 0.0
        %1050 = vmatpush1.msra.mxu0 0.0
        %1051 = vmatprep.subr.mxu0 0.0
        %1052 = vmatpush1.msra.mxu0 0.0
        %1053 = vmatprep.subr.mxu0 0.0
        %1054 = vmatpush1.msra.mxu0 0.0
        %1055 = vmatprep.mubr.f32.mxu0 0.0
        %1056 = vmatmul.mubr.f32.gmra.mrb[0].mxu0 %v974
        %v1057 = vpop.f32.mrb[0].mxu0
        %v1058 = vadd.f32 0.0, %v1057
        %v1059 = vpop.f32.mrb[0].mxu0
        %v1060 = vadd.f32 0.0, %v1059
        %1061 = vdwg.mxu0
        %1062 = vmatprep.subr.mxu0 %v331
        %1063 = vmatpush1.msra.mxu0 %v330
        %1064 = vmatprep.subr.mxu0 %v335
        %1065 = vmatpush1.msra.mxu0 %v334
        %1066 = vmatprep.subr.mxu0 %v339
        %1067 = vmatpush1.msra.mxu0 %v338
        %1068 = vmatprep.subr.mxu0 %v343
        %1069 = vmatpush1.msra.mxu0 %v342
        %1070 = vmatprep.subr.mxu0 %v347
        %1071 = vmatpush1.msra.mxu0 %v346
        %1072 = vmatprep.subr.mxu0 %v351
        %1073 = vmatpush1.msra.mxu0 %v350
        %1074 = vmatprep.subr.mxu0 %v355
        %1075 = vmatpush1.msra.mxu0 %v354
        %1076 = vmatprep.subr.mxu0 %v359
        %1077 = vmatpush1.msra.mxu0 %v358
        %1078 = vmatprep.subr.mxu0 %v363
        %1079 = vmatpush1.msra.mxu0 %v362
        %1080 = vmatprep.subr.mxu0 %v367
        %1081 = vmatpush1.msra.mxu0 %v366
        %1082 = vmatprep.subr.mxu0 %v371
        %1083 = vmatpush1.msra.mxu0 %v370
        %1084 = vmatprep.subr.mxu0 %v375
        %1085 = vmatpush1.msra.mxu0 %v374
        %1086 = vmatprep.subr.mxu0 %v379
        %1087 = vmatpush1.msra.mxu0 %v378
        %1088 = vmatprep.subr.mxu0 %v383
        %1089 = vmatpush1.msra.mxu0 %v382
        %1090 = vmatprep.subr.mxu0 %v387
        %1091 = vmatpush1.msra.mxu0 %v386
        %1092 = vmatprep.subr.mxu0 %v391
        %1093 = vmatpush1.msra.mxu0 %v390
        %1094 = vmatprep.subr.mxu0 0.0
        %1095 = vmatpush1.msra.mxu0 0.0
        %1096 = vmatprep.subr.mxu0 0.0
        %1097 = vmatpush1.msra.mxu0 0.0
        %1098 = vmatprep.subr.mxu0 0.0
        %1099 = vmatpush1.msra.mxu0 0.0
        %1100 = vmatprep.subr.mxu0 0.0
        %1101 = vmatpush1.msra.mxu0 0.0
        %1102 = vmatprep.subr.mxu0 0.0
        %1103 = vmatpush1.msra.mxu0 0.0
        %1104 = vmatprep.subr.mxu0 0.0
        %1105 = vmatpush1.msra.mxu0 0.0
        %1106 = vmatprep.subr.mxu0 0.0
        %1107 = vmatpush1.msra.mxu0 0.0
        %1108 = vmatprep.subr.mxu0 0.0
        %1109 = vmatpush1.msra.mxu0 0.0
        %1110 = vmatprep.subr.mxu0 0.0
        %1111 = vmatpush1.msra.mxu0 0.0
        %1112 = vmatprep.subr.mxu0 0.0
        %1113 = vmatpush1.msra.mxu0 0.0
        %1114 = vmatprep.subr.mxu0 0.0
        %1115 = vmatpush1.msra.mxu0 0.0
        %1116 = vmatprep.subr.mxu0 0.0
        %1117 = vmatpush1.msra.mxu0 0.0
        %1118 = vmatprep.subr.mxu0 0.0
        %1119 = vmatpush1.msra.mxu0 0.0
        %1120 = vmatprep.subr.mxu0 0.0
        %1121 = vmatpush1.msra.mxu0 0.0
        %1122 = vmatprep.subr.mxu0 0.0
        %1123 = vmatpush1.msra.mxu0 0.0
        %1124 = vmatprep.subr.mxu0 0.0
        %1125 = vmatpush1.msra.mxu0 0.0
        %1126 = vmatprep.mubr.f32.mxu0 0.0
        %1127 = vmatmul.mubr.f32.gmra.mrb[0].mxu0 %v974
        %v1128 = vpop.f32.mrb[0].mxu0
        %v1129 = vadd.f32 0.0, %v1128
        %v1130 = vpop.f32.mrb[0].mxu0
        %v1131 = vadd.f32 0.0, %v1130
        %1132 = vdwg.mxu0
        %v1133 = vadd.f32 %v987, %v1058
        %v1134 = vadd.f32 %v988, %v1060
        %v1135 = vadd.f32 %v989, %v1129
        %v1136 = vadd.f32 %v990, %v1131
        %v1137 = vxor.u32 %v1133, 2147483648
        %v1138 = vmul.f32 %v1137, 1.442695
        %v1139 = vpow.pop %v1138
        %v1140 = vadd.f32 %v1139, 1.0
        %v1141 = vrcp.pop %v1140
        %v1142 = vmul.f32 1.0, %v1141
        %v1143 = vxor.u32 %v1134, 2147483648
        %v1144 = vmul.f32 %v1143, 1.442695
        %v1145 = vpow.pop %v1144
        %v1146 = vadd.f32 %v1145, 1.0
        %v1147 = vrcp.pop %v1146
        %v1148 = vmul.f32 1.0, %v1147
        %v1149 = vtanh.pop %v1135
        %v1150 = vxor.u32 %v1136, 2147483648
        %v1151 = vmul.f32 %v1150, 1.442695
        %v1152 = vpow.pop %v1151
        %v1153 = vadd.f32 %v1152, 1.0
        %v1154 = vrcp.pop %v1153
        %v1155 = vmul.f32 1.0, %v1154
        %v1156 = vmul.f32 %v1148, %v975
        %v1157 = vmul.f32 %v1142, %v1149
        %v1158 = vadd.f32 %v1156, %v1157
        %v1159 = vtanh.pop %v1158
        %v1160 = vmul.f32 %v1155, %v1159
        %s1161 = sadd.s32 %s326, %s980
        %v1162 = vstv %s1161
        %vm1163 = vcmp.gt.s32.totalorder %v327, %v1162
        %v1164 = vsel %vm1163, 1, 0
        %1165 = vset.pattern.permute.xlu0 0
        %1166 = vperm.xlu0 %1165, %v1164
        %v1167 = vpop.permute.xlu0 %1166
        %vm1168 = vcmp.eq.s32.totalorder %v1167, 1
        %v1169 = vsel %vm1168, %v1160, %v974
        %v1170 = vsel %vm1168, %v1158, %v975
        %v1171 = vsel %vm1168, %v1160, 0.0
        %s1172 = scalar_lea.vmem %s298, %s981 [#allocation9]
        %1173 = vst [vmem:[%s1172] sm:$0xff] %v1171
        %s1174 = smul.u32 %s32, 7
        %s1175 = sadd.s32 %s1174, 4
        %s1176 = smul.u32 %s1175, 8
        %s1177 = sshra.s32 %s1176, 3
        %s1178 = sand.u32 %s1176, 7
        %s1179 = smul.u32 %s1177, 4
        %s1180 = smul.addr %s1179, 8
        %s1181 = scalar_lea.vmem %s262, %s1180 [#allocation4]
        %v1182 = vld [vmem:[%s1181] sm:$0xff]
        %v1183 = vld [vmem:[%s1181 + $0x8] sm:$0xff]
        %v1184 = vld [vmem:[%s1181 + $0x10] sm:$0xff]
        %v1185 = vld [vmem:[%s1181 + $0x18] sm:$0xff]
        %1186 = vmatprep.subr.mxu0 %v329
        %1187 = vmatpush1.msra.mxu0 %v328
        %1188 = vmatprep.subr.mxu0 %v333
        %1189 = vmatpush1.msra.mxu0 %v332
        %1190 = vmatprep.subr.mxu0 %v337
        %1191 = vmatpush1.msra.mxu0 %v336
        %1192 = vmatprep.subr.mxu0 %v341
        %1193 = vmatpush1.msra.mxu0 %v340
        %1194 = vmatprep.subr.mxu0 %v345
        %1195 = vmatpush1.msra.mxu0 %v344
        %1196 = vmatprep.subr.mxu0 %v349
        %1197 = vmatpush1.msra.mxu0 %v348
        %1198 = vmatprep.subr.mxu0 %v353
        %1199 = vmatpush1.msra.mxu0 %v352
        %1200 = vmatprep.subr.mxu0 %v357
        %1201 = vmatpush1.msra.mxu0 %v356
        %1202 = vmatprep.subr.mxu0 %v361
        %1203 = vmatpush1.msra.mxu0 %v360
        %1204 = vmatprep.subr.mxu0 %v365
        %1205 = vmatpush1.msra.mxu0 %v364
        %1206 = vmatprep.subr.mxu0 %v369
        %1207 = vmatpush1.msra.mxu0 %v368
        %1208 = vmatprep.subr.mxu0 %v373
        %1209 = vmatpush1.msra.mxu0 %v372
        %1210 = vmatprep.subr.mxu0 %v377
        %1211 = vmatpush1.msra.mxu0 %v376
        %1212 = vmatprep.subr.mxu0 %v381
        %1213 = vmatpush1.msra.mxu0 %v380
        %1214 = vmatprep.subr.mxu0 %v385
        %1215 = vmatpush1.msra.mxu0 %v384
        %1216 = vmatprep.subr.mxu0 %v389
        %1217 = vmatpush1.msra.mxu0 %v388
        %1218 = vmatprep.subr.mxu0 0.0
        %1219 = vmatpush1.msra.mxu0 0.0
        %1220 = vmatprep.subr.mxu0 0.0
        %1221 = vmatpush1.msra.mxu0 0.0
        %1222 = vmatprep.subr.mxu0 0.0
        %1223 = vmatpush1.msra.mxu0 0.0
        %1224 = vmatprep.subr.mxu0 0.0
        %1225 = vmatpush1.msra.mxu0 0.0
        %1226 = vmatprep.subr.mxu0 0.0
        %1227 = vmatpush1.msra.mxu0 0.0
        %1228 = vmatprep.subr.mxu0 0.0
        %1229 = vmatpush1.msra.mxu0 0.0
        %1230 = vmatprep.subr.mxu0 0.0
        %1231 = vmatpush1.msra.mxu0 0.0
        %1232 = vmatprep.subr.mxu0 0.0
        %1233 = vmatpush1.msra.mxu0 0.0
        %1234 = vmatprep.subr.mxu0 0.0
        %1235 = vmatpush1.msra.mxu0 0.0
        %1236 = vmatprep.subr.mxu0 0.0
        %1237 = vmatpush1.msra.mxu0 0.0
        %1238 = vmatprep.subr.mxu0 0.0
        %1239 = vmatpush1.msra.mxu0 0.0
        %1240 = vmatprep.subr.mxu0 0.0
        %1241 = vmatpush1.msra.mxu0 0.0
        %1242 = vmatprep.subr.mxu0 0.0
        %1243 = vmatpush1.msra.mxu0 0.0
        %1244 = vmatprep.subr.mxu0 0.0
        %1245 = vmatpush1.msra.mxu0 0.0
        %1246 = vmatprep.subr.mxu0 0.0
        %1247 = vmatpush1.msra.mxu0 0.0
        %1248 = vmatprep.subr.mxu0 0.0
        %1249 = vmatpush1.msra.mxu0 0.0
        %1250 = vmatprep.mubr.f32.mxu0 0.0
        %1251 = vmatmul.mubr.f32.gmra.mrb[0].mxu0 %v1169
        %v1252 = vpop.f32.mrb[0].mxu0
        %v1253 = vadd.f32 0.0, %v1252
        %v1254 = vpop.f32.mrb[0].mxu0
        %v1255 = vadd.f32 0.0, %v1254
        %1256 = vdwg.mxu0
        %1257 = vmatprep.subr.mxu0 %v331
        %1258 = vmatpush1.msra.mxu0 %v330
        %1259 = vmatprep.subr.mxu0 %v335
        %1260 = vmatpush1.msra.mxu0 %v334
        %1261 = vmatprep.subr.mxu0 %v339
        %1262 = vmatpush1.msra.mxu0 %v338
        %1263 = vmatprep.subr.mxu0 %v343
        %1264 = vmatpush1.msra.mxu0 %v342
        %1265 = vmatprep.subr.mxu0 %v347
        %1266 = vmatpush1.msra.mxu0 %v346
        %1267 = vmatprep.subr.mxu0 %v351
        %1268 = vmatpush1.msra.mxu0 %v350
        %1269 = vmatprep.subr.mxu0 %v355
        %1270 = vmatpush1.msra.mxu0 %v354
        %1271 = vmatprep.subr.mxu0 %v359
        %1272 = vmatpush1.msra.mxu0 %v358
        %1273 = vmatprep.subr.mxu0 %v363
        %1274 = vmatpush1.msra.mxu0 %v362
        %1275 = vmatprep.subr.mxu0 %v367
        %1276 = vmatpush1.msra.mxu0 %v366
        %1277 = vmatprep.subr.mxu0 %v371
        %1278 = vmatpush1.msra.mxu0 %v370
        %1279 = vmatprep.subr.mxu0 %v375
        %1280 = vmatpush1.msra.mxu0 %v374
        %1281 = vmatprep.subr.mxu0 %v379
        %1282 = vmatpush1.msra.mxu0 %v378
        %1283 = vmatprep.subr.mxu0 %v383
        %1284 = vmatpush1.msra.mxu0 %v382
        %1285 = vmatprep.subr.mxu0 %v387
        %1286 = vmatpush1.msra.mxu0 %v386
        %1287 = vmatprep.subr.mxu0 %v391
        %1288 = vmatpush1.msra.mxu0 %v390
        %1289 = vmatprep.subr.mxu0 0.0
        %1290 = vmatpush1.msra.mxu0 0.0
        %1291 = vmatprep.subr.mxu0 0.0
        %1292 = vmatpush1.msra.mxu0 0.0
        %1293 = vmatprep.subr.mxu0 0.0
        %1294 = vmatpush1.msra.mxu0 0.0
        %1295 = vmatprep.subr.mxu0 0.0
        %1296 = vmatpush1.msra.mxu0 0.0
        %1297 = vmatprep.subr.mxu0 0.0
        %1298 = vmatpush1.msra.mxu0 0.0
        %1299 = vmatprep.subr.mxu0 0.0
        %1300 = vmatpush1.msra.mxu0 0.0
        %1301 = vmatprep.subr.mxu0 0.0
        %1302 = vmatpush1.msra.mxu0 0.0
        %1303 = vmatprep.subr.mxu0 0.0
        %1304 = vmatpush1.msra.mxu0 0.0
        %1305 = vmatprep.subr.mxu0 0.0
        %1306 = vmatpush1.msra.mxu0 0.0
        %1307 = vmatprep.subr.mxu0 0.0
        %1308 = vmatpush1.msra.mxu0 0.0
        %1309 = vmatprep.subr.mxu0 0.0
        %1310 = vmatpush1.msra.mxu0 0.0
        %1311 = vmatprep.subr.mxu0 0.0
        %1312 = vmatpush1.msra.mxu0 0.0
        %1313 = vmatprep.subr.mxu0 0.0
        %1314 = vmatpush1.msra.mxu0 0.0
        %1315 = vmatprep.subr.mxu0 0.0
        %1316 = vmatpush1.msra.mxu0 0.0
        %1317 = vmatprep.subr.mxu0 0.0
        %1318 = vmatpush1.msra.mxu0 0.0
        %1319 = vmatprep.subr.mxu0 0.0
        %1320 = vmatpush1.msra.mxu0 0.0
        %1321 = vmatprep.mubr.f32.mxu0 0.0
        %1322 = vmatmul.mubr.f32.gmra.mrb[0].mxu0 %v1169
        %v1323 = vpop.f32.mrb[0].mxu0
        %v1324 = vadd.f32 0.0, %v1323
        %v1325 = vpop.f32.mrb[0].mxu0
        %v1326 = vadd.f32 0.0, %v1325
        %1327 = vdwg.mxu0
        %v1328 = vadd.f32 %v1182, %v1253
        %v1329 = vadd.f32 %v1183, %v1255
        %v1330 = vadd.f32 %v1184, %v1324
        %v1331 = vadd.f32 %v1185, %v1326
        %v1332 = vxor.u32 %v1328, 2147483648
        %v1333 = vmul.f32 %v1332, 1.442695
        %v1334 = vpow.pop %v1333
        %v1335 = vadd.f32 %v1334, 1.0
        %v1336 = vrcp.pop %v1335
        %v1337 = vmul.f32 1.0, %v1336
        %v1338 = vxor.u32 %v1329, 2147483648
        %v1339 = vmul.f32 %v1338, 1.442695
        %v1340 = vpow.pop %v1339
        %v1341 = vadd.f32 %v1340, 1.0
        %v1342 = vrcp.pop %v1341
        %v1343 = vmul.f32 1.0, %v1342
        %v1344 = vtanh.pop %v1330
        %v1345 = vxor.u32 %v1331, 2147483648
        %v1346 = vmul.f32 %v1345, 1.442695
        %v1347 = vpow.pop %v1346
        %v1348 = vadd.f32 %v1347, 1.0
        %v1349 = vrcp.pop %v1348
        %v1350 = vmul.f32 1.0, %v1349
        %v1351 = vmul.f32 %v1343, %v1170
        %v1352 = vmul.f32 %v1337, %v1344
        %v1353 = vadd.f32 %v1351, %v1352
        %v1354 = vtanh.pop %v1353
        %v1355 = vmul.f32 %v1350, %v1354
        %s1356 = sadd.s32 %s326, %s1175
        %v1357 = vstv %s1356
        %vm1358 = vcmp.gt.s32.totalorder %v327, %v1357
        %v1359 = vsel %vm1358, 1, 0
        %1360 = vset.pattern.permute.xlu0 0
        %1361 = vperm.xlu0 %1360, %v1359
        %v1362 = vpop.permute.xlu0 %1361
        %vm1363 = vcmp.eq.s32.totalorder %v1362, 1
        %v1364 = vsel %vm1363, %v1355, %v1169
        %v1365 = vsel %vm1363, %v1353, %v1170
        %v1366 = vsel %vm1363, %v1355, 0.0
        %s1367 = scalar_lea.vmem %s298, %s1176 [#allocation9]
        %1368 = vst [vmem:[%s1367] sm:$0xff] %v1366
        %s1369 = smul.u32 %s32, 5
        %s1370 = sadd.s32 %s1369, 5
        %s1371 = smul.u32 %s1370, 8
        %s1372 = sshra.s32 %s1371, 3
        %s1373 = sand.u32 %s1371, 7
        %s1374 = smul.u32 %s1372, 4
        %s1375 = smul.addr %s1374, 8
        %s1376 = scalar_lea.vmem %s262, %s1375 [#allocation4]
        %v1377 = vld [vmem:[%s1376] sm:$0xff]
        %v1378 = vld [vmem:[%s1376 + $0x8] sm:$0xff]
        %v1379 = vld [vmem:[%s1376 + $0x10] sm:$0xff]
        %v1380 = vld [vmem:[%s1376 + $0x18] sm:$0xff]
        %1381 = vmatprep.subr.mxu0 %v329
        %1382 = vmatpush1.msra.mxu0 %v328
        %1383 = vmatprep.subr.mxu0 %v333
        %1384 = vmatpush1.msra.mxu0 %v332
        %1385 = vmatprep.subr.mxu0 %v337
        %1386 = vmatpush1.msra.mxu0 %v336
        %1387 = vmatprep.subr.mxu0 %v341
        %1388 = vmatpush1.msra.mxu0 %v340
        %1389 = vmatprep.subr.mxu0 %v345
        %1390 = vmatpush1.msra.mxu0 %v344
        %1391 = vmatprep.subr.mxu0 %v349
        %1392 = vmatpush1.msra.mxu0 %v348
        %1393 = vmatprep.subr.mxu0 %v353
        %1394 = vmatpush1.msra.mxu0 %v352
        %1395 = vmatprep.subr.mxu0 %v357
        %1396 = vmatpush1.msra.mxu0 %v356
        %1397 = vmatprep.subr.mxu0 %v361
        %1398 = vmatpush1.msra.mxu0 %v360
        %1399 = vmatprep.subr.mxu0 %v365
        %1400 = vmatpush1.msra.mxu0 %v364
        %1401 = vmatprep.subr.mxu0 %v369
        %1402 = vmatpush1.msra.mxu0 %v368
        %1403 = vmatprep.subr.mxu0 %v373
        %1404 = vmatpush1.msra.mxu0 %v372
        %1405 = vmatprep.subr.mxu0 %v377
        %1406 = vmatpush1.msra.mxu0 %v376
        %1407 = vmatprep.subr.mxu0 %v381
        %1408 = vmatpush1.msra.mxu0 %v380
        %1409 = vmatprep.subr.mxu0 %v385
        %1410 = vmatpush1.msra.mxu0 %v384
        %1411 = vmatprep.subr.mxu0 %v389
        %1412 = vmatpush1.msra.mxu0 %v388
        %1413 = vmatprep.subr.mxu0 0.0
        %1414 = vmatpush1.msra.mxu0 0.0
        %1415 = vmatprep.subr.mxu0 0.0
        %1416 = vmatpush1.msra.mxu0 0.0
        %1417 = vmatprep.subr.mxu0 0.0
        %1418 = vmatpush1.msra.mxu0 0.0
        %1419 = vmatprep.subr.mxu0 0.0
        %1420 = vmatpush1.msra.mxu0 0.0
        %1421 = vmatprep.subr.mxu0 0.0
        %1422 = vmatpush1.msra.mxu0 0.0
        %1423 = vmatprep.subr.mxu0 0.0
        %1424 = vmatpush1.msra.mxu0 0.0
        %1425 = vmatprep.subr.mxu0 0.0
        %1426 = vmatpush1.msra.mxu0 0.0
        %1427 = vmatprep.subr.mxu0 0.0
        %1428 = vmatpush1.msra.mxu0 0.0
        %1429 = vmatprep.subr.mxu0 0.0
        %1430 = vmatpush1.msra.mxu0 0.0
        %1431 = vmatprep.subr.mxu0 0.0
        %1432 = vmatpush1.msra.mxu0 0.0
        %1433 = vmatprep.subr.mxu0 0.0
        %1434 = vmatpush1.msra.mxu0 0.0
        %1435 = vmatprep.subr.mxu0 0.0
        %1436 = vmatpush1.msra.mxu0 0.0
        %1437 = vmatprep.subr.mxu0 0.0
        %1438 = vmatpush1.msra.mxu0 0.0
        %1439 = vmatprep.subr.mxu0 0.0
        %1440 = vmatpush1.msra.mxu0 0.0
        %1441 = vmatprep.subr.mxu0 0.0
        %1442 = vmatpush1.msra.mxu0 0.0
        %1443 = vmatprep.subr.mxu0 0.0
        %1444 = vmatpush1.msra.mxu0 0.0
        %1445 = vmatprep.mubr.f32.mxu0 0.0
        %1446 = vmatmul.mubr.f32.gmra.mrb[0].mxu0 %v1364
        %v1447 = vpop.f32.mrb[0].mxu0
        %v1448 = vadd.f32 0.0, %v1447
        %v1449 = vpop.f32.mrb[0].mxu0
        %v1450 = vadd.f32 0.0, %v1449
        %1451 = vdwg.mxu0
        %1452 = vmatprep.subr.mxu0 %v331
        %1453 = vmatpush1.msra.mxu0 %v330
        %1454 = vmatprep.subr.mxu0 %v335
        %1455 = vmatpush1.msra.mxu0 %v334
        %1456 = vmatprep.subr.mxu0 %v339
        %1457 = vmatpush1.msra.mxu0 %v338
        %1458 = vmatprep.subr.mxu0 %v343
        %1459 = vmatpush1.msra.mxu0 %v342
        %1460 = vmatprep.subr.mxu0 %v347
        %1461 = vmatpush1.msra.mxu0 %v346
        %1462 = vmatprep.subr.mxu0 %v351
        %1463 = vmatpush1.msra.mxu0 %v350
        %1464 = vmatprep.subr.mxu0 %v355
        %1465 = vmatpush1.msra.mxu0 %v354
        %1466 = vmatprep.subr.mxu0 %v359
        %1467 = vmatpush1.msra.mxu0 %v358
        %1468 = vmatprep.subr.mxu0 %v363
        %1469 = vmatpush1.msra.mxu0 %v362
        %1470 = vmatprep.subr.mxu0 %v367
        %1471 = vmatpush1.msra.mxu0 %v366
        %1472 = vmatprep.subr.mxu0 %v371
        %1473 = vmatpush1.msra.mxu0 %v370
        %1474 = vmatprep.subr.mxu0 %v375
        %1475 = vmatpush1.msra.mxu0 %v374
        %1476 = vmatprep.subr.mxu0 %v379
        %1477 = vmatpush1.msra.mxu0 %v378
        %1478 = vmatprep.subr.mxu0 %v383
        %1479 = vmatpush1.msra.mxu0 %v382
        %1480 = vmatprep.subr.mxu0 %v387
        %1481 = vmatpush1.msra.mxu0 %v386
        %1482 = vmatprep.subr.mxu0 %v391
        %1483 = vmatpush1.msra.mxu0 %v390
        %1484 = vmatprep.subr.mxu0 0.0
        %1485 = vmatpush1.msra.mxu0 0.0
        %1486 = vmatprep.subr.mxu0 0.0
        %1487 = vmatpush1.msra.mxu0 0.0
        %1488 = vmatprep.subr.mxu0 0.0
        %1489 = vmatpush1.msra.mxu0 0.0
        %1490 = vmatprep.subr.mxu0 0.0
        %1491 = vmatpush1.msra.mxu0 0.0
        %1492 = vmatprep.subr.mxu0 0.0
        %1493 = vmatpush1.msra.mxu0 0.0
        %1494 = vmatprep.subr.mxu0 0.0
        %1495 = vmatpush1.msra.mxu0 0.0
        %1496 = vmatprep.subr.mxu0 0.0
        %1497 = vmatpush1.msra.mxu0 0.0
        %1498 = vmatprep.subr.mxu0 0.0
        %1499 = vmatpush1.msra.mxu0 0.0
        %1500 = vmatprep.subr.mxu0 0.0
        %1501 = vmatpush1.msra.mxu0 0.0
        %1502 = vmatprep.subr.mxu0 0.0
        %1503 = vmatpush1.msra.mxu0 0.0
        %1504 = vmatprep.subr.mxu0 0.0
        %1505 = vmatpush1.msra.mxu0 0.0
        %1506 = vmatprep.subr.mxu0 0.0
        %1507 = vmatpush1.msra.mxu0 0.0
        %1508 = vmatprep.subr.mxu0 0.0
        %1509 = vmatpush1.msra.mxu0 0.0
        %1510 = vmatprep.subr.mxu0 0.0
        %1511 = vmatpush1.msra.mxu0 0.0
        %1512 = vmatprep.subr.mxu0 0.0
        %1513 = vmatpush1.msra.mxu0 0.0
        %1514 = vmatprep.subr.mxu0 0.0
        %1515 = vmatpush1.msra.mxu0 0.0
        %1516 = vmatprep.mubr.f32.mxu0 0.0
        %1517 = vmatmul.mubr.f32.gmra.mrb[0].mxu0 %v1364
        %v1518 = vpop.f32.mrb[0].mxu0
        %v1519 = vadd.f32 0.0, %v1518
        %v1520 = vpop.f32.mrb[0].mxu0
        %v1521 = vadd.f32 0.0, %v1520
        %1522 = vdwg.mxu0
        %v1523 = vadd.f32 %v1377, %v1448
        %v1524 = vadd.f32 %v1378, %v1450
        %v1525 = vadd.f32 %v1379, %v1519
        %v1526 = vadd.f32 %v1380, %v1521
        %v1527 = vxor.u32 %v1523, 2147483648
        %v1528 = vmul.f32 %v1527, 1.442695
        %v1529 = vpow.pop %v1528
        %v1530 = vadd.f32 %v1529, 1.0
        %v1531 = vrcp.pop %v1530
        %v1532 = vmul.f32 1.0, %v1531
        %v1533 = vxor.u32 %v1524, 2147483648
        %v1534 = vmul.f32 %v1533, 1.442695
        %v1535 = vpow.pop %v1534
        %v1536 = vadd.f32 %v1535, 1.0
        %v1537 = vrcp.pop %v1536
        %v1538 = vmul.f32 1.0, %v1537
        %v1539 = vtanh.pop %v1525
        %v1540 = vxor.u32 %v1526, 2147483648
        %v1541 = vmul.f32 %v1540, 1.442695
        %v1542 = vpow.pop %v1541
        %v1543 = vadd.f32 %v1542, 1.0
        %v1544 = vrcp.pop %v1543
        %v1545 = vmul.f32 1.0, %v1544
        %v1546 = vmul.f32 %v1538, %v1365
        %v1547 = vmul.f32 %v1532, %v1539
        %v1548 = vadd.f32 %v1546, %v1547
        %v1549 = vtanh.pop %v1548
        %v1550 = vmul.f32 %v1545, %v1549
        %s1551 = sadd.s32 %s326, %s1370
        %v1552 = vstv %s1551
        %vm1553 = vcmp.gt.s32.totalorder %v327, %v1552
        %v1554 = vsel %vm1553, 1, 0
        %1555 = vset.pattern.permute.xlu0 0
        %1556 = vperm.xlu0 %1555, %v1554
        %v1557 = vpop.permute.xlu0 %1556
        %vm1558 = vcmp.eq.s32.totalorder %v1557, 1
        %v1559 = vsel %vm1558, %v1550, %v1364
        %v1560 = vsel %vm1558, %v1548, %v1365
        %v1561 = vsel %vm1558, %v1550, 0.0
        %s1562 = scalar_lea.vmem %s298, %s1371 [#allocation9]
        %1563 = vst [vmem:[%s1562] sm:$0xff] %v1561
        %s1564 = smul.u32 %s32, 3
        %s1565 = sadd.s32 %s1564, 6
        %s1566 = smul.u32 %s1565, 8
        %s1567 = sshra.s32 %s1566, 3
        %s1568 = sand.u32 %s1566, 7
        %s1569 = smul.u32 %s1567, 4
        %s1570 = smul.addr %s1569, 8
        %s1571 = scalar_lea.vmem %s262, %s1570 [#allocation4]
        %v1572 = vld [vmem:[%s1571] sm:$0xff]
        %v1573 = vld [vmem:[%s1571 + $0x8] sm:$0xff]
        %v1574 = vld [vmem:[%s1571 + $0x10] sm:$0xff]
        %v1575 = vld [vmem:[%s1571 + $0x18] sm:$0xff]
        %1576 = vmatprep.subr.mxu0 %v329
        %1577 = vmatpush1.msra.mxu0 %v328
        %1578 = vmatprep.subr.mxu0 %v333
        %1579 = vmatpush1.msra.mxu0 %v332
        %1580 = vmatprep.subr.mxu0 %v337
        %1581 = vmatpush1.msra.mxu0 %v336
        %1582 = vmatprep.subr.mxu0 %v341
        %1583 = vmatpush1.msra.mxu0 %v340
        %1584 = vmatprep.subr.mxu0 %v345
        %1585 = vmatpush1.msra.mxu0 %v344
        %1586 = vmatprep.subr.mxu0 %v349
        %1587 = vmatpush1.msra.mxu0 %v348
        %1588 = vmatprep.subr.mxu0 %v353
        %1589 = vmatpush1.msra.mxu0 %v352
        %1590 = vmatprep.subr.mxu0 %v357
        %1591 = vmatpush1.msra.mxu0 %v356
        %1592 = vmatprep.subr.mxu0 %v361
        %1593 = vmatpush1.msra.mxu0 %v360
        %1594 = vmatprep.subr.mxu0 %v365
        %1595 = vmatpush1.msra.mxu0 %v364
        %1596 = vmatprep.subr.mxu0 %v369
        %1597 = vmatpush1.msra.mxu0 %v368
        %1598 = vmatprep.subr.mxu0 %v373
        %1599 = vmatpush1.msra.mxu0 %v372
        %1600 = vmatprep.subr.mxu0 %v377
        %1601 = vmatpush1.msra.mxu0 %v376
        %1602 = vmatprep.subr.mxu0 %v381
        %1603 = vmatpush1.msra.mxu0 %v380
        %1604 = vmatprep.subr.mxu0 %v385
        %1605 = vmatpush1.msra.mxu0 %v384
        %1606 = vmatprep.subr.mxu0 %v389
        %1607 = vmatpush1.msra.mxu0 %v388
        %1608 = vmatprep.subr.mxu0 0.0
        %1609 = vmatpush1.msra.mxu0 0.0
        %1610 = vmatprep.subr.mxu0 0.0
        %1611 = vmatpush1.msra.mxu0 0.0
        %1612 = vmatprep.subr.mxu0 0.0
        %1613 = vmatpush1.msra.mxu0 0.0
        %1614 = vmatprep.subr.mxu0 0.0
        %1615 = vmatpush1.msra.mxu0 0.0
        %1616 = vmatprep.subr.mxu0 0.0
        %1617 = vmatpush1.msra.mxu0 0.0
        %1618 = vmatprep.subr.mxu0 0.0
        %1619 = vmatpush1.msra.mxu0 0.0
        %1620 = vmatprep.subr.mxu0 0.0
        %1621 = vmatpush1.msra.mxu0 0.0
        %1622 = vmatprep.subr.mxu0 0.0
        %1623 = vmatpush1.msra.mxu0 0.0
        %1624 = vmatprep.subr.mxu0 0.0
        %1625 = vmatpush1.msra.mxu0 0.0
        %1626 = vmatprep.subr.mxu0 0.0
        %1627 = vmatpush1.msra.mxu0 0.0
        %1628 = vmatprep.subr.mxu0 0.0
        %1629 = vmatpush1.msra.mxu0 0.0
        %1630 = vmatprep.subr.mxu0 0.0
        %1631 = vmatpush1.msra.mxu0 0.0
        %1632 = vmatprep.subr.mxu0 0.0
        %1633 = vmatpush1.msra.mxu0 0.0
        %1634 = vmatprep.subr.mxu0 0.0
        %1635 = vmatpush1.msra.mxu0 0.0
        %1636 = vmatprep.subr.mxu0 0.0
        %1637 = vmatpush1.msra.mxu0 0.0
        %1638 = vmatprep.subr.mxu0 0.0
        %1639 = vmatpush1.msra.mxu0 0.0
        %1640 = vmatprep.mubr.f32.mxu0 0.0
        %1641 = vmatmul.mubr.f32.gmra.mrb[0].mxu0 %v1559
        %v1642 = vpop.f32.mrb[0].mxu0
        %v1643 = vadd.f32 0.0, %v1642
        %v1644 = vpop.f32.mrb[0].mxu0
        %v1645 = vadd.f32 0.0, %v1644
        %1646 = vdwg.mxu0
        %1647 = vmatprep.subr.mxu0 %v331
        %1648 = vmatpush1.msra.mxu0 %v330
        %1649 = vmatprep.subr.mxu0 %v335
        %1650 = vmatpush1.msra.mxu0 %v334
        %1651 = vmatprep.subr.mxu0 %v339
        %1652 = vmatpush1.msra.mxu0 %v338
        %1653 = vmatprep.subr.mxu0 %v343
        %1654 = vmatpush1.msra.mxu0 %v342
        %1655 = vmatprep.subr.mxu0 %v347
        %1656 = vmatpush1.msra.mxu0 %v346
        %1657 = vmatprep.subr.mxu0 %v351
        %1658 = vmatpush1.msra.mxu0 %v350
        %1659 = vmatprep.subr.mxu0 %v355
        %1660 = vmatpush1.msra.mxu0 %v354
        %1661 = vmatprep.subr.mxu0 %v359
        %1662 = vmatpush1.msra.mxu0 %v358
        %1663 = vmatprep.subr.mxu0 %v363
        %1664 = vmatpush1.msra.mxu0 %v362
        %1665 = vmatprep.subr.mxu0 %v367
        %1666 = vmatpush1.msra.mxu0 %v366
        %1667 = vmatprep.subr.mxu0 %v371
        %1668 = vmatpush1.msra.mxu0 %v370
        %1669 = vmatprep.subr.mxu0 %v375
        %1670 = vmatpush1.msra.mxu0 %v374
        %1671 = vmatprep.subr.mxu0 %v379
        %1672 = vmatpush1.msra.mxu0 %v378
        %1673 = vmatprep.subr.mxu0 %v383
        %1674 = vmatpush1.msra.mxu0 %v382
        %1675 = vmatprep.subr.mxu0 %v387
        %1676 = vmatpush1.msra.mxu0 %v386
        %1677 = vmatprep.subr.mxu0 %v391
        %1678 = vmatpush1.msra.mxu0 %v390
        %1679 = vmatprep.subr.mxu0 0.0
        %1680 = vmatpush1.msra.mxu0 0.0
        %1681 = vmatprep.subr.mxu0 0.0
        %1682 = vmatpush1.msra.mxu0 0.0
        %1683 = vmatprep.subr.mxu0 0.0
        %1684 = vmatpush1.msra.mxu0 0.0
        %1685 = vmatprep.subr.mxu0 0.0
        %1686 = vmatpush1.msra.mxu0 0.0
        %1687 = vmatprep.subr.mxu0 0.0
        %1688 = vmatpush1.msra.mxu0 0.0
        %1689 = vmatprep.subr.mxu0 0.0
        %1690 = vmatpush1.msra.mxu0 0.0
        %1691 = vmatprep.subr.mxu0 0.0
        %1692 = vmatpush1.msra.mxu0 0.0
        %1693 = vmatprep.subr.mxu0 0.0
        %1694 = vmatpush1.msra.mxu0 0.0
        %1695 = vmatprep.subr.mxu0 0.0
        %1696 = vmatpush1.msra.mxu0 0.0
        %1697 = vmatprep.subr.mxu0 0.0
        %1698 = vmatpush1.msra.mxu0 0.0
        %1699 = vmatprep.subr.mxu0 0.0
        %1700 = vmatpush1.msra.mxu0 0.0
        %1701 = vmatprep.subr.mxu0 0.0
        %1702 = vmatpush1.msra.mxu0 0.0
        %1703 = vmatprep.subr.mxu0 0.0
        %1704 = vmatpush1.msra.mxu0 0.0
        %1705 = vmatprep.subr.mxu0 0.0
        %1706 = vmatpush1.msra.mxu0 0.0
        %1707 = vmatprep.subr.mxu0 0.0
        %1708 = vmatpush1.msra.mxu0 0.0
        %1709 = vmatprep.subr.mxu0 0.0
        %1710 = vmatpush1.msra.mxu0 0.0
        %1711 = vmatprep.mubr.f32.mxu0 0.0
        %1712 = vmatmul.mubr.f32.gmra.mrb[0].mxu0 %v1559
        %v1713 = vpop.f32.mrb[0].mxu0
        %v1714 = vadd.f32 0.0, %v1713
        %v1715 = vpop.f32.mrb[0].mxu0
        %v1716 = vadd.f32 0.0, %v1715
        %1717 = vdwg.mxu0
        %v1718 = vadd.f32 %v1572, %v1643
        %v1719 = vadd.f32 %v1573, %v1645
        %v1720 = vadd.f32 %v1574, %v1714
        %v1721 = vadd.f32 %v1575, %v1716
        %v1722 = vxor.u32 %v1718, 2147483648
        %v1723 = vmul.f32 %v1722, 1.442695
        %v1724 = vpow.pop %v1723
        %v1725 = vadd.f32 %v1724, 1.0
        %v1726 = vrcp.pop %v1725
        %v1727 = vmul.f32 1.0, %v1726
        %v1728 = vxor.u32 %v1719, 2147483648
        %v1729 = vmul.f32 %v1728, 1.442695
        %v1730 = vpow.pop %v1729
        %v1731 = vadd.f32 %v1730, 1.0
        %v1732 = vrcp.pop %v1731
        %v1733 = vmul.f32 1.0, %v1732
        %v1734 = vtanh.pop %v1720
        %v1735 = vxor.u32 %v1721, 2147483648
        %v1736 = vmul.f32 %v1735, 1.442695
        %v1737 = vpow.pop %v1736
        %v1738 = vadd.f32 %v1737, 1.0
        %v1739 = vrcp.pop %v1738
        %v1740 = vmul.f32 1.0, %v1739
        %v1741 = vmul.f32 %v1733, %v1560
        %v1742 = vmul.f32 %v1727, %v1734
        %v1743 = vadd.f32 %v1741, %v1742
        %v1744 = vtanh.pop %v1743
        %v1745 = vmul.f32 %v1740, %v1744
        %s1746 = sadd.s32 %s326, %s1565
        %v1747 = vstv %s1746
        %vm1748 = vcmp.gt.s32.totalorder %v327, %v1747
        %v1749 = vsel %vm1748, 1, 0
        %1750 = vset.pattern.permute.xlu0 0
        %1751 = vperm.xlu0 %1750, %v1749
        %v1752 = vpop.permute.xlu0 %1751
        %vm1753 = vcmp.eq.s32.totalorder %v1752, 1
        %v1754 = vsel %vm1753, %v1745, %v1559
        %v1755 = vsel %vm1753, %v1743, %v1560
        %v1756 = vsel %vm1753, %v1745, 0.0
        %s1757 = scalar_lea.vmem %s298, %s1566 [#allocation9]
        %1758 = vst [vmem:[%s1757] sm:$0xff] %v1756
        %s1759 = sadd.s32 %s32, 7
        %s1760 = smul.u32 %s1759, 8
        %s1761 = sshra.s32 %s1760, 3
        %s1762 = sand.u32 %s1760, 7
        %s1763 = smul.u32 %s1761, 4
        %s1764 = smul.addr %s1763, 8
        %s1765 = scalar_lea.vmem %s262, %s1764 [#allocation4]
        %v1766 = vld [vmem:[%s1765] sm:$0xff]
        %v1767 = vld [vmem:[%s1765 + $0x8] sm:$0xff]
        %v1768 = vld [vmem:[%s1765 + $0x10] sm:$0xff]
        %v1769 = vld [vmem:[%s1765 + $0x18] sm:$0xff]
        %1770 = vmatprep.subr.mxu0 %v329
        %1771 = vmatpush1.msra.mxu0 %v328
        %1772 = vmatprep.subr.mxu0 %v333
        %1773 = vmatpush1.msra.mxu0 %v332
        %1774 = vmatprep.subr.mxu0 %v337
        %1775 = vmatpush1.msra.mxu0 %v336
        %1776 = vmatprep.subr.mxu0 %v341
        %1777 = vmatpush1.msra.mxu0 %v340
        %1778 = vmatprep.subr.mxu0 %v345
        %1779 = vmatpush1.msra.mxu0 %v344
        %1780 = vmatprep.subr.mxu0 %v349
        %1781 = vmatpush1.msra.mxu0 %v348
        %1782 = vmatprep.subr.mxu0 %v353
        %1783 = vmatpush1.msra.mxu0 %v352
        %1784 = vmatprep.subr.mxu0 %v357
        %1785 = vmatpush1.msra.mxu0 %v356
        %1786 = vmatprep.subr.mxu0 %v361
        %1787 = vmatpush1.msra.mxu0 %v360
        %1788 = vmatprep.subr.mxu0 %v365
        %1789 = vmatpush1.msra.mxu0 %v364
        %1790 = vmatprep.subr.mxu0 %v369
        %1791 = vmatpush1.msra.mxu0 %v368
        %1792 = vmatprep.subr.mxu0 %v373
        %1793 = vmatpush1.msra.mxu0 %v372
        %1794 = vmatprep.subr.mxu0 %v377
        %1795 = vmatpush1.msra.mxu0 %v376
        %1796 = vmatprep.subr.mxu0 %v381
        %1797 = vmatpush1.msra.mxu0 %v380
        %1798 = vmatprep.subr.mxu0 %v385
        %1799 = vmatpush1.msra.mxu0 %v384
        %1800 = vmatprep.subr.mxu0 %v389
        %1801 = vmatpush1.msra.mxu0 %v388
        %1802 = vmatprep.subr.mxu0 0.0
        %1803 = vmatpush1.msra.mxu0 0.0
        %1804 = vmatprep.subr.mxu0 0.0
        %1805 = vmatpush1.msra.mxu0 0.0
        %1806 = vmatprep.subr.mxu0 0.0
        %1807 = vmatpush1.msra.mxu0 0.0
        %1808 = vmatprep.subr.mxu0 0.0
        %1809 = vmatpush1.msra.mxu0 0.0
        %1810 = vmatprep.subr.mxu0 0.0
        %1811 = vmatpush1.msra.mxu0 0.0
        %1812 = vmatprep.subr.mxu0 0.0
        %1813 = vmatpush1.msra.mxu0 0.0
        %1814 = vmatprep.subr.mxu0 0.0
        %1815 = vmatpush1.msra.mxu0 0.0
        %1816 = vmatprep.subr.mxu0 0.0
        %1817 = vmatpush1.msra.mxu0 0.0
        %1818 = vmatprep.subr.mxu0 0.0
        %1819 = vmatpush1.msra.mxu0 0.0
        %1820 = vmatprep.subr.mxu0 0.0
        %1821 = vmatpush1.msra.mxu0 0.0
        %1822 = vmatprep.subr.mxu0 0.0
        %1823 = vmatpush1.msra.mxu0 0.0
        %1824 = vmatprep.subr.mxu0 0.0
        %1825 = vmatpush1.msra.mxu0 0.0
        %1826 = vmatprep.subr.mxu0 0.0
        %1827 = vmatpush1.msra.mxu0 0.0
        %1828 = vmatprep.subr.mxu0 0.0
        %1829 = vmatpush1.msra.mxu0 0.0
        %1830 = vmatprep.subr.mxu0 0.0
        %1831 = vmatpush1.msra.mxu0 0.0
        %1832 = vmatprep.subr.mxu0 0.0
        %1833 = vmatpush1.msra.mxu0 0.0
        %1834 = vmatprep.mubr.f32.mxu0 0.0
        %1835 = vmatmul.mubr.f32.gmra.mrb[0].mxu0 %v1754
        %v1836 = vpop.f32.mrb[0].mxu0
        %v1837 = vadd.f32 0.0, %v1836
        %v1838 = vpop.f32.mrb[0].mxu0
        %v1839 = vadd.f32 0.0, %v1838
        %1840 = vdwg.mxu0
        %1841 = vmatprep.subr.mxu0 %v331
        %1842 = vmatpush1.msra.mxu0 %v330
        %1843 = vmatprep.subr.mxu0 %v335
        %1844 = vmatpush1.msra.mxu0 %v334
        %1845 = vmatprep.subr.mxu0 %v339
        %1846 = vmatpush1.msra.mxu0 %v338
        %1847 = vmatprep.subr.mxu0 %v343
        %1848 = vmatpush1.msra.mxu0 %v342
        %1849 = vmatprep.subr.mxu0 %v347
        %1850 = vmatpush1.msra.mxu0 %v346
        %1851 = vmatprep.subr.mxu0 %v351
        %1852 = vmatpush1.msra.mxu0 %v350
        %1853 = vmatprep.subr.mxu0 %v355
        %1854 = vmatpush1.msra.mxu0 %v354
        %1855 = vmatprep.subr.mxu0 %v359
        %1856 = vmatpush1.msra.mxu0 %v358
        %1857 = vmatprep.subr.mxu0 %v363
        %1858 = vmatpush1.msra.mxu0 %v362
        %1859 = vmatprep.subr.mxu0 %v367
        %1860 = vmatpush1.msra.mxu0 %v366
        %1861 = vmatprep.subr.mxu0 %v371
        %1862 = vmatpush1.msra.mxu0 %v370
        %1863 = vmatprep.subr.mxu0 %v375
        %1864 = vmatpush1.msra.mxu0 %v374
        %1865 = vmatprep.subr.mxu0 %v379
        %1866 = vmatpush1.msra.mxu0 %v378
        %1867 = vmatprep.subr.mxu0 %v383
        %1868 = vmatpush1.msra.mxu0 %v382
        %1869 = vmatprep.subr.mxu0 %v387
        %1870 = vmatpush1.msra.mxu0 %v386
        %1871 = vmatprep.subr.mxu0 %v391
        %1872 = vmatpush1.msra.mxu0 %v390
        %1873 = vmatprep.subr.mxu0 0.0
        %1874 = vmatpush1.msra.mxu0 0.0
        %1875 = vmatprep.subr.mxu0 0.0
        %1876 = vmatpush1.msra.mxu0 0.0
        %1877 = vmatprep.subr.mxu0 0.0
        %1878 = vmatpush1.msra.mxu0 0.0
        %1879 = vmatprep.subr.mxu0 0.0
        %1880 = vmatpush1.msra.mxu0 0.0
        %1881 = vmatprep.subr.mxu0 0.0
        %1882 = vmatpush1.msra.mxu0 0.0
        %1883 = vmatprep.subr.mxu0 0.0
        %1884 = vmatpush1.msra.mxu0 0.0
        %1885 = vmatprep.subr.mxu0 0.0
        %1886 = vmatpush1.msra.mxu0 0.0
        %1887 = vmatprep.subr.mxu0 0.0
        %1888 = vmatpush1.msra.mxu0 0.0
        %1889 = vmatprep.subr.mxu0 0.0
        %1890 = vmatpush1.msra.mxu0 0.0
        %1891 = vmatprep.subr.mxu0 0.0
        %1892 = vmatpush1.msra.mxu0 0.0
        %1893 = vmatprep.subr.mxu0 0.0
        %1894 = vmatpush1.msra.mxu0 0.0
        %1895 = vmatprep.subr.mxu0 0.0
        %1896 = vmatpush1.msra.mxu0 0.0
        %1897 = vmatprep.subr.mxu0 0.0
        %1898 = vmatpush1.msra.mxu0 0.0
        %1899 = vmatprep.subr.mxu0 0.0
        %1900 = vmatpush1.msra.mxu0 0.0
        %1901 = vmatprep.subr.mxu0 0.0
        %1902 = vmatpush1.msra.mxu0 0.0
        %1903 = vmatprep.subr.mxu0 0.0
        %1904 = vmatpush1.msra.mxu0 0.0
        %1905 = vmatprep.mubr.f32.mxu0 0.0
        %1906 = vmatmul.mubr.f32.gmra.mrb[0].mxu0 %v1754
        %v1907 = vpop.f32.mrb[0].mxu0
        %v1908 = vadd.f32 0.0, %v1907
        %v1909 = vpop.f32.mrb[0].mxu0
        %v1910 = vadd.f32 0.0, %v1909
        %1911 = vdwg.mxu0
        %v1912 = vadd.f32 %v1766, %v1837
        %v1913 = vadd.f32 %v1767, %v1839
        %v1914 = vadd.f32 %v1768, %v1908
        %v1915 = vadd.f32 %v1769, %v1910
        %v1916 = vxor.u32 %v1912, 2147483648
        %v1917 = vmul.f32 %v1916, 1.442695
        %v1918 = vpow.pop %v1917
        %v1919 = vadd.f32 %v1918, 1.0
        %v1920 = vrcp.pop %v1919
        %v1921 = vmul.f32 1.0, %v1920
        %v1922 = vxor.u32 %v1913, 2147483648
        %v1923 = vmul.f32 %v1922, 1.442695
        %v1924 = vpow.pop %v1923
        %v1925 = vadd.f32 %v1924, 1.0
        %v1926 = vrcp.pop %v1925
        %v1927 = vmul.f32 1.0, %v1926
        %v1928 = vtanh.pop %v1914
        %v1929 = vxor.u32 %v1915, 2147483648
        %v1930 = vmul.f32 %v1929, 1.442695
        %v1931 = vpow.pop %v1930
        %v1932 = vadd.f32 %v1931, 1.0
        %v1933 = vrcp.pop %v1932
        %v1934 = vmul.f32 1.0, %v1933
        %v1935 = vmul.f32 %v1927, %v1755
        %v1936 = vmul.f32 %v1921, %v1928
        %v1937 = vadd.f32 %v1935, %v1936
        %v1938 = vtanh.pop %v1937
        %v1939 = vmul.f32 %v1934, %v1938
        %s1940 = sadd.s32 %s326, %s1759
        %v1941 = vstv %s1940
        %vm1942 = vcmp.gt.s32.totalorder %v327, %v1941
        %v1943 = vsel %vm1942, 1, 0
        %1944 = vset.pattern.permute.xlu0 0
        %1945 = vperm.xlu0 %1944, %v1943
        %v1946 = vpop.permute.xlu0 %1945
        %vm1947 = vcmp.eq.s32.totalorder %v1946, 1
        %v1948 = vsel %vm1947, %v1939, %v1754
        %v1949 = vsel %vm1947, %v1937, %v1755
        %v1950 = vsel %vm1947, %v1939, 0.0
        %s1951 = scalar_lea.vmem %s298, %s1760 [#allocation9]
        %1952 = vst [vmem:[%s1951] sm:$0xff] %v1950
        %s1953 = ssub.s32 8, %s32
        %s1954 = smul.u32 %s1953, 8
        %s1955 = sshra.s32 %s1954, 3
        %s1956 = sand.u32 %s1954, 7
        %s1957 = smul.u32 %s1955, 4
        %s1958 = smul.addr %s1957, 8
        %s1959 = scalar_lea.vmem %s262, %s1958 [#allocation4]
        %v1960 = vld [vmem:[%s1959] sm:$0xff]
        %v1961 = vld [vmem:[%s1959 + $0x8] sm:$0xff]
        %v1962 = vld [vmem:[%s1959 + $0x10] sm:$0xff]
        %v1963 = vld [vmem:[%s1959 + $0x18] sm:$0xff]
        %1964 = vmatprep.subr.mxu0 %v329
        %1965 = vmatpush1.msra.mxu0 %v328
        %1966 = vmatprep.subr.mxu0 %v333
        %1967 = vmatpush1.msra.mxu0 %v332
        %1968 = vmatprep.subr.mxu0 %v337
        %1969 = vmatpush1.msra.mxu0 %v336
        %1970 = vmatprep.subr.mxu0 %v341
        %1971 = vmatpush1.msra.mxu0 %v340
        %1972 = vmatprep.subr.mxu0 %v345
        %1973 = vmatpush1.msra.mxu0 %v344
        %1974 = vmatprep.subr.mxu0 %v349
        %1975 = vmatpush1.msra.mxu0 %v348
        %1976 = vmatprep.subr.mxu0 %v353
        %1977 = vmatpush1.msra.mxu0 %v352
        %1978 = vmatprep.subr.mxu0 %v357
        %1979 = vmatpush1.msra.mxu0 %v356
        %1980 = vmatprep.subr.mxu0 %v361
        %1981 = vmatpush1.msra.mxu0 %v360
        %1982 = vmatprep.subr.mxu0 %v365
        %1983 = vmatpush1.msra.mxu0 %v364
        %1984 = vmatprep.subr.mxu0 %v369
        %1985 = vmatpush1.msra.mxu0 %v368
        %1986 = vmatprep.subr.mxu0 %v373
        %1987 = vmatpush1.msra.mxu0 %v372
        %1988 = vmatprep.subr.mxu0 %v377
        %1989 = vmatpush1.msra.mxu0 %v376
        %1990 = vmatprep.subr.mxu0 %v381
        %1991 = vmatpush1.msra.mxu0 %v380
        %1992 = vmatprep.subr.mxu0 %v385
        %1993 = vmatpush1.msra.mxu0 %v384
        %1994 = vmatprep.subr.mxu0 %v389
        %1995 = vmatpush1.msra.mxu0 %v388
        %1996 = vmatprep.subr.mxu0 0.0
        %1997 = vmatpush1.msra.mxu0 0.0
        %1998 = vmatprep.subr.mxu0 0.0
        %1999 = vmatpush1.msra.mxu0 0.0
        %2000 = vmatprep.subr.mxu0 0.0
        %2001 = vmatpush1.msra.mxu0 0.0
        %2002 = vmatprep.subr.mxu0 0.0
        %2003 = vmatpush1.msra.mxu0 0.0
        %2004 = vmatprep.subr.mxu0 0.0
        %2005 = vmatpush1.msra.mxu0 0.0
        %2006 = vmatprep.subr.mxu0 0.0
        %2007 = vmatpush1.msra.mxu0 0.0
        %2008 = vmatprep.subr.mxu0 0.0
        %2009 = vmatpush1.msra.mxu0 0.0
        %2010 = vmatprep.subr.mxu0 0.0
        %2011 = vmatpush1.msra.mxu0 0.0
        %2012 = vmatprep.subr.mxu0 0.0
        %2013 = vmatpush1.msra.mxu0 0.0
        %2014 = vmatprep.subr.mxu0 0.0
        %2015 = vmatpush1.msra.mxu0 0.0
        %2016 = vmatprep.subr.mxu0 0.0
        %2017 = vmatpush1.msra.mxu0 0.0
        %2018 = vmatprep.subr.mxu0 0.0
        %2019 = vmatpush1.msra.mxu0 0.0
        %2020 = vmatprep.subr.mxu0 0.0
        %2021 = vmatpush1.msra.mxu0 0.0
        %2022 = vmatprep.subr.mxu0 0.0
        %2023 = vmatpush1.msra.mxu0 0.0
        %2024 = vmatprep.subr.mxu0 0.0
        %2025 = vmatpush1.msra.mxu0 0.0
        %2026 = vmatprep.subr.mxu0 0.0
        %2027 = vmatpush1.msra.mxu0 0.0
        %2028 = vmatprep.mubr.f32.mxu0 0.0
        %2029 = vmatmul.mubr.f32.gmra.mrb[0].mxu0 %v1948
        %v2030 = vpop.f32.mrb[0].mxu0
        %v2031 = vadd.f32 0.0, %v2030
        %v2032 = vpop.f32.mrb[0].mxu0
        %v2033 = vadd.f32 0.0, %v2032
        %2034 = vdwg.mxu0
        %2035 = vmatprep.subr.mxu0 %v331
        %2036 = vmatpush1.msra.mxu0 %v330
        %2037 = vmatprep.subr.mxu0 %v335
        %2038 = vmatpush1.msra.mxu0 %v334
        %2039 = vmatprep.subr.mxu0 %v339
        %2040 = vmatpush1.msra.mxu0 %v338
        %2041 = vmatprep.subr.mxu0 %v343
        %2042 = vmatpush1.msra.mxu0 %v342
        %2043 = vmatprep.subr.mxu0 %v347
        %2044 = vmatpush1.msra.mxu0 %v346
        %2045 = vmatprep.subr.mxu0 %v351
        %2046 = vmatpush1.msra.mxu0 %v350
        %2047 = vmatprep.subr.mxu0 %v355
        %2048 = vmatpush1.msra.mxu0 %v354
        %2049 = vmatprep.subr.mxu0 %v359
        %2050 = vmatpush1.msra.mxu0 %v358
        %2051 = vmatprep.subr.mxu0 %v363
        %2052 = vmatpush1.msra.mxu0 %v362
        %2053 = vmatprep.subr.mxu0 %v367
        %2054 = vmatpush1.msra.mxu0 %v366
        %2055 = vmatprep.subr.mxu0 %v371
        %2056 = vmatpush1.msra.mxu0 %v370
        %2057 = vmatprep.subr.mxu0 %v375
        %2058 = vmatpush1.msra.mxu0 %v374
        %2059 = vmatprep.subr.mxu0 %v379
        %2060 = vmatpush1.msra.mxu0 %v378
        %2061 = vmatprep.subr.mxu0 %v383
        %2062 = vmatpush1.msra.mxu0 %v382
        %2063 = vmatprep.subr.mxu0 %v387
        %2064 = vmatpush1.msra.mxu0 %v386
        %2065 = vmatprep.subr.mxu0 %v391
        %2066 = vmatpush1.msra.mxu0 %v390
        %2067 = vmatprep.subr.mxu0 0.0
        %2068 = vmatpush1.msra.mxu0 0.0
        %2069 = vmatprep.subr.mxu0 0.0
        %2070 = vmatpush1.msra.mxu0 0.0
        %2071 = vmatprep.subr.mxu0 0.0
        %2072 = vmatpush1.msra.mxu0 0.0
        %2073 = vmatprep.subr.mxu0 0.0
        %2074 = vmatpush1.msra.mxu0 0.0
        %2075 = vmatprep.subr.mxu0 0.0
        %2076 = vmatpush1.msra.mxu0 0.0
        %2077 = vmatprep.subr.mxu0 0.0
        %2078 = vmatpush1.msra.mxu0 0.0
        %2079 = vmatprep.subr.mxu0 0.0
        %2080 = vmatpush1.msra.mxu0 0.0
        %2081 = vmatprep.subr.mxu0 0.0
        %2082 = vmatpush1.msra.mxu0 0.0
        %2083 = vmatprep.subr.mxu0 0.0
        %2084 = vmatpush1.msra.mxu0 0.0
        %2085 = vmatprep.subr.mxu0 0.0
        %2086 = vmatpush1.msra.mxu0 0.0
        %2087 = vmatprep.subr.mxu0 0.0
        %2088 = vmatpush1.msra.mxu0 0.0
        %2089 = vmatprep.subr.mxu0 0.0
        %2090 = vmatpush1.msra.mxu0 0.0
        %2091 = vmatprep.subr.mxu0 0.0
        %2092 = vmatpush1.msra.mxu0 0.0
        %2093 = vmatprep.subr.mxu0 0.0
        %2094 = vmatpush1.msra.mxu0 0.0
        %2095 = vmatprep.subr.mxu0 0.0
        %2096 = vmatpush1.msra.mxu0 0.0
        %2097 = vmatprep.subr.mxu0 0.0
        %2098 = vmatpush1.msra.mxu0 0.0
        %2099 = vmatprep.mubr.f32.mxu0 0.0
        %2100 = vmatmul.mubr.f32.gmra.mrb[0].mxu0 %v1948
        %v2101 = vpop.f32.mrb[0].mxu0
        %v2102 = vadd.f32 0.0, %v2101
        %v2103 = vpop.f32.mrb[0].mxu0
        %v2104 = vadd.f32 0.0, %v2103
        %2105 = vdwg.mxu0
        %v2106 = vadd.f32 %v1960, %v2031
        %v2107 = vadd.f32 %v1961, %v2033
        %v2108 = vadd.f32 %v1962, %v2102
        %v2109 = vadd.f32 %v1963, %v2104
        %v2110 = vxor.u32 %v2106, 2147483648
        %v2111 = vmul.f32 %v2110, 1.442695
        %v2112 = vpow.pop %v2111
        %v2113 = vadd.f32 %v2112, 1.0
        %v2114 = vrcp.pop %v2113
        %v2115 = vmul.f32 1.0, %v2114
        %v2116 = vxor.u32 %v2107, 2147483648
        %v2117 = vmul.f32 %v2116, 1.442695
        %v2118 = vpow.pop %v2117
        %v2119 = vadd.f32 %v2118, 1.0
        %v2120 = vrcp.pop %v2119
        %v2121 = vmul.f32 1.0, %v2120
        %v2122 = vtanh.pop %v2108
        %v2123 = vxor.u32 %v2109, 2147483648
        %v2124 = vmul.f32 %v2123, 1.442695
        %v2125 = vpow.pop %v2124
        %v2126 = vadd.f32 %v2125, 1.0
        %v2127 = vrcp.pop %v2126
        %v2128 = vmul.f32 1.0, %v2127
        %v2129 = vmul.f32 %v2121, %v1949
        %v2130 = vmul.f32 %v2115, %v2122
        %v2131 = vadd.f32 %v2129, %v2130
        %v2132 = vtanh.pop %v2131
        %v2133 = vmul.f32 %v2128, %v2132
        %s2134 = sadd.s32 %s326, %s1953
        %v2135 = vstv %s2134
        %vm2136 = vcmp.gt.s32.totalorder %v327, %v2135
        %v2137 = vsel %vm2136, 1, 0
        %2138 = vset.pattern.permute.xlu0 0
        %2139 = vperm.xlu0 %2138, %v2137
        %v2140 = vpop.permute.xlu0 %2139
        %vm2141 = vcmp.eq.s32.totalorder %v2140, 1
        %v2142 = vsel %vm2141, %v2133, %v1948
        %v2143 = vsel %vm2141, %v2131, %v1949
        %v2144 = vsel %vm2141, %v2133, 0.0
        %s2145 = scalar_lea.vmem %s298, %s1954 [#allocation9]
        %2146 = vst [vmem:[%s2145] sm:$0xff] %v2144
        %s2147 = smul.u32 %s32, 4294967293
        %s2148 = sadd.s32 %s2147, 9
        %s2149 = smul.u32 %s2148, 8
        %s2150 = sshra.s32 %s2149, 3
        %s2151 = sand.u32 %s2149, 7
        %s2152 = smul.u32 %s2150, 4
        %s2153 = smul.addr %s2152, 8
        %s2154 = scalar_lea.vmem %s262, %s2153 [#allocation4]
        %v2155 = vld [vmem:[%s2154] sm:$0xff]
        %v2156 = vld [vmem:[%s2154 + $0x8] sm:$0xff]
        %v2157 = vld [vmem:[%s2154 + $0x10] sm:$0xff]
        %v2158 = vld [vmem:[%s2154 + $0x18] sm:$0xff]
        %2159 = vmatprep.subr.mxu0 %v329
        %2160 = vmatpush1.msra.mxu0 %v328
        %2161 = vmatprep.subr.mxu0 %v333
        %2162 = vmatpush1.msra.mxu0 %v332
        %2163 = vmatprep.subr.mxu0 %v337
        %2164 = vmatpush1.msra.mxu0 %v336
        %2165 = vmatprep.subr.mxu0 %v341
        %2166 = vmatpush1.msra.mxu0 %v340
        %2167 = vmatprep.subr.mxu0 %v345
        %2168 = vmatpush1.msra.mxu0 %v344
        %2169 = vmatprep.subr.mxu0 %v349
        %2170 = vmatpush1.msra.mxu0 %v348
        %2171 = vmatprep.subr.mxu0 %v353
        %2172 = vmatpush1.msra.mxu0 %v352
        %2173 = vmatprep.subr.mxu0 %v357
        %2174 = vmatpush1.msra.mxu0 %v356
        %2175 = vmatprep.subr.mxu0 %v361
        %2176 = vmatpush1.msra.mxu0 %v360
        %2177 = vmatprep.subr.mxu0 %v365
        %2178 = vmatpush1.msra.mxu0 %v364
        %2179 = vmatprep.subr.mxu0 %v369
        %2180 = vmatpush1.msra.mxu0 %v368
        %2181 = vmatprep.subr.mxu0 %v373
        %2182 = vmatpush1.msra.mxu0 %v372
        %2183 = vmatprep.subr.mxu0 %v377
        %2184 = vmatpush1.msra.mxu0 %v376
        %2185 = vmatprep.subr.mxu0 %v381
        %2186 = vmatpush1.msra.mxu0 %v380
        %2187 = vmatprep.subr.mxu0 %v385
        %2188 = vmatpush1.msra.mxu0 %v384
        %2189 = vmatprep.subr.mxu0 %v389
        %2190 = vmatpush1.msra.mxu0 %v388
        %2191 = vmatprep.subr.mxu0 0.0
        %2192 = vmatpush1.msra.mxu0 0.0
        %2193 = vmatprep.subr.mxu0 0.0
        %2194 = vmatpush1.msra.mxu0 0.0
        %2195 = vmatprep.subr.mxu0 0.0
        %2196 = vmatpush1.msra.mxu0 0.0
        %2197 = vmatprep.subr.mxu0 0.0
        %2198 = vmatpush1.msra.mxu0 0.0
        %2199 = vmatprep.subr.mxu0 0.0
        %2200 = vmatpush1.msra.mxu0 0.0
        %2201 = vmatprep.subr.mxu0 0.0
        %2202 = vmatpush1.msra.mxu0 0.0
        %2203 = vmatprep.subr.mxu0 0.0
        %2204 = vmatpush1.msra.mxu0 0.0
        %2205 = vmatprep.subr.mxu0 0.0
        %2206 = vmatpush1.msra.mxu0 0.0
        %2207 = vmatprep.subr.mxu0 0.0
        %2208 = vmatpush1.msra.mxu0 0.0
        %2209 = vmatprep.subr.mxu0 0.0
        %2210 = vmatpush1.msra.mxu0 0.0
        %2211 = vmatprep.subr.mxu0 0.0
        %2212 = vmatpush1.msra.mxu0 0.0
        %2213 = vmatprep.subr.mxu0 0.0
        %2214 = vmatpush1.msra.mxu0 0.0
        %2215 = vmatprep.subr.mxu0 0.0
        %2216 = vmatpush1.msra.mxu0 0.0
        %2217 = vmatprep.subr.mxu0 0.0
        %2218 = vmatpush1.msra.mxu0 0.0
        %2219 = vmatprep.subr.mxu0 0.0
        %2220 = vmatpush1.msra.mxu0 0.0
        %2221 = vmatprep.subr.mxu0 0.0
        %2222 = vmatpush1.msra.mxu0 0.0
        %2223 = vmatprep.mubr.f32.mxu0 0.0
        %2224 = vmatmul.mubr.f32.gmra.mrb[0].mxu0 %v2142
        %v2225 = vpop.f32.mrb[0].mxu0
        %v2226 = vadd.f32 0.0, %v2225
        %v2227 = vpop.f32.mrb[0].mxu0
        %v2228 = vadd.f32 0.0, %v2227
        %2229 = vdwg.mxu0
        %2230 = vmatprep.subr.mxu0 %v331
        %2231 = vmatpush1.msra.mxu0 %v330
        %2232 = vmatprep.subr.mxu0 %v335
        %2233 = vmatpush1.msra.mxu0 %v334
        %2234 = vmatprep.subr.mxu0 %v339
        %2235 = vmatpush1.msra.mxu0 %v338
        %2236 = vmatprep.subr.mxu0 %v343
        %2237 = vmatpush1.msra.mxu0 %v342
        %2238 = vmatprep.subr.mxu0 %v347
        %2239 = vmatpush1.msra.mxu0 %v346
        %2240 = vmatprep.subr.mxu0 %v351
        %2241 = vmatpush1.msra.mxu0 %v350
        %2242 = vmatprep.subr.mxu0 %v355
        %2243 = vmatpush1.msra.mxu0 %v354
        %2244 = vmatprep.subr.mxu0 %v359
        %2245 = vmatpush1.msra.mxu0 %v358
        %2246 = vmatprep.subr.mxu0 %v363
        %2247 = vmatpush1.msra.mxu0 %v362
        %2248 = vmatprep.subr.mxu0 %v367
        %2249 = vmatpush1.msra.mxu0 %v366
        %2250 = vmatprep.subr.mxu0 %v371
        %2251 = vmatpush1.msra.mxu0 %v370
        %2252 = vmatprep.subr.mxu0 %v375
        %2253 = vmatpush1.msra.mxu0 %v374
        %2254 = vmatprep.subr.mxu0 %v379
        %2255 = vmatpush1.msra.mxu0 %v378
        %2256 = vmatprep.subr.mxu0 %v383
        %2257 = vmatpush1.msra.mxu0 %v382
        %2258 = vmatprep.subr.mxu0 %v387
        %2259 = vmatpush1.msra.mxu0 %v386
        %2260 = vmatprep.subr.mxu0 %v391
        %2261 = vmatpush1.msra.mxu0 %v390
        %2262 = vmatprep.subr.mxu0 0.0
        %2263 = vmatpush1.msra.mxu0 0.0
        %2264 = vmatprep.subr.mxu0 0.0
        %2265 = vmatpush1.msra.mxu0 0.0
        %2266 = vmatprep.subr.mxu0 0.0
        %2267 = vmatpush1.msra.mxu0 0.0
        %2268 = vmatprep.subr.mxu0 0.0
        %2269 = vmatpush1.msra.mxu0 0.0
        %2270 = vmatprep.subr.mxu0 0.0
        %2271 = vmatpush1.msra.mxu0 0.0
        %2272 = vmatprep.subr.mxu0 0.0
        %2273 = vmatpush1.msra.mxu0 0.0
        %2274 = vmatprep.subr.mxu0 0.0
        %2275 = vmatpush1.msra.mxu0 0.0
        %2276 = vmatprep.subr.mxu0 0.0
        %2277 = vmatpush1.msra.mxu0 0.0
        %2278 = vmatprep.subr.mxu0 0.0
        %2279 = vmatpush1.msra.mxu0 0.0
        %2280 = vmatprep.subr.mxu0 0.0
        %2281 = vmatpush1.msra.mxu0 0.0
        %2282 = vmatprep.subr.mxu0 0.0
        %2283 = vmatpush1.msra.mxu0 0.0
        %2284 = vmatprep.subr.mxu0 0.0
        %2285 = vmatpush1.msra.mxu0 0.0
        %2286 = vmatprep.subr.mxu0 0.0
        %2287 = vmatpush1.msra.mxu0 0.0
        %2288 = vmatprep.subr.mxu0 0.0
        %2289 = vmatpush1.msra.mxu0 0.0
        %2290 = vmatprep.subr.mxu0 0.0
        %2291 = vmatpush1.msra.mxu0 0.0
        %2292 = vmatprep.subr.mxu0 0.0
        %2293 = vmatpush1.msra.mxu0 0.0
        %2294 = vmatprep.mubr.f32.mxu0 0.0
        %2295 = vmatmul.mubr.f32.gmra.mrb[0].mxu0 %v2142
        %v2296 = vpop.f32.mrb[0].mxu0
        %v2297 = vadd.f32 0.0, %v2296
        %v2298 = vpop.f32.mrb[0].mxu0
        %v2299 = vadd.f32 0.0, %v2298
        %2300 = vdwg.mxu0
        %v2301 = vadd.f32 %v2155, %v2226
        %v2302 = vadd.f32 %v2156, %v2228
        %v2303 = vadd.f32 %v2157, %v2297
        %v2304 = vadd.f32 %v2158, %v2299
        %v2305 = vxor.u32 %v2301, 2147483648
        %v2306 = vmul.f32 %v2305, 1.442695
        %v2307 = vpow.pop %v2306
        %v2308 = vadd.f32 %v2307, 1.0
        %v2309 = vrcp.pop %v2308
        %v2310 = vmul.f32 1.0, %v2309
        %v2311 = vxor.u32 %v2302, 2147483648
        %v2312 = vmul.f32 %v2311, 1.442695
        %v2313 = vpow.pop %v2312
        %v2314 = vadd.f32 %v2313, 1.0
        %v2315 = vrcp.pop %v2314
        %v2316 = vmul.f32 1.0, %v2315
        %v2317 = vtanh.pop %v2303
        %v2318 = vxor.u32 %v2304, 2147483648
        %v2319 = vmul.f32 %v2318, 1.442695
        %v2320 = vpow.pop %v2319
        %v2321 = vadd.f32 %v2320, 1.0
        %v2322 = vrcp.pop %v2321
        %v2323 = vmul.f32 1.0, %v2322
        %v2324 = vmul.f32 %v2316, %v2143
        %v2325 = vmul.f32 %v2310, %v2317
        %v2326 = vadd.f32 %v2324, %v2325
        %v2327 = vtanh.pop %v2326
        %v2328 = vmul.f32 %v2323, %v2327
        %s2329 = sadd.s32 %s326, %s2148
        %v2330 = vstv %s2329
        %vm2331 = vcmp.gt.s32.totalorder %v327, %v2330
        %v2332 = vsel %vm2331, 1, 0
        %2333 = vset.pattern.permute.xlu0 0
        %2334 = vperm.xlu0 %2333, %v2332
        %v2335 = vpop.permute.xlu0 %2334
        %vm2336 = vcmp.eq.s32.totalorder %v2335, 1
        %v2337 = vsel %vm2336, %v2328, %v2142
        %v2338 = vsel %vm2336, %v2326, %v2143
        %v2339 = vsel %vm2336, %v2328, 0.0
        %s2340 = scalar_lea.vmem %s298, %s2149 [#allocation9]
        %2341 = vst [vmem:[%s2340] sm:$0xff] %v2339
        %s2342 = smul.u32 %s32, 4294967291
        %s2343 = sadd.s32 %s2342, 10
        %s2344 = smul.u32 %s2343, 8
        %s2345 = sshra.s32 %s2344, 3
        %s2346 = sand.u32 %s2344, 7
        %s2347 = smul.u32 %s2345, 4
        %s2348 = smul.addr %s2347, 8
        %s2349 = scalar_lea.vmem %s262, %s2348 [#allocation4]
        %v2350 = vld [vmem:[%s2349] sm:$0xff]
        %v2351 = vld [vmem:[%s2349 + $0x8] sm:$0xff]
        %v2352 = vld [vmem:[%s2349 + $0x10] sm:$0xff]
        %v2353 = vld [vmem:[%s2349 + $0x18] sm:$0xff]
        %2354 = vmatprep.subr.mxu0 %v329
        %2355 = vmatpush1.msra.mxu0 %v328
        %2356 = vmatprep.subr.mxu0 %v333
        %2357 = vmatpush1.msra.mxu0 %v332
        %2358 = vmatprep.subr.mxu0 %v337
        %2359 = vmatpush1.msra.mxu0 %v336
        %2360 = vmatprep.subr.mxu0 %v341
        %2361 = vmatpush1.msra.mxu0 %v340
        %2362 = vmatprep.subr.mxu0 %v345
        %2363 = vmatpush1.msra.mxu0 %v344
        %2364 = vmatprep.subr.mxu0 %v349
        %2365 = vmatpush1.msra.mxu0 %v348
        %2366 = vmatprep.subr.mxu0 %v353
        %2367 = vmatpush1.msra.mxu0 %v352
        %2368 = vmatprep.subr.mxu0 %v357
        %2369 = vmatpush1.msra.mxu0 %v356
        %2370 = vmatprep.subr.mxu0 %v361
        %2371 = vmatpush1.msra.mxu0 %v360
        %2372 = vmatprep.subr.mxu0 %v365
        %2373 = vmatpush1.msra.mxu0 %v364
        %2374 = vmatprep.subr.mxu0 %v369
        %2375 = vmatpush1.msra.mxu0 %v368
        %2376 = vmatprep.subr.mxu0 %v373
        %2377 = vmatpush1.msra.mxu0 %v372
        %2378 = vmatprep.subr.mxu0 %v377
        %2379 = vmatpush1.msra.mxu0 %v376
        %2380 = vmatprep.subr.mxu0 %v381
        %2381 = vmatpush1.msra.mxu0 %v380
        %2382 = vmatprep.subr.mxu0 %v385
        %2383 = vmatpush1.msra.mxu0 %v384
        %2384 = vmatprep.subr.mxu0 %v389
        %2385 = vmatpush1.msra.mxu0 %v388
        %2386 = vmatprep.subr.mxu0 0.0
        %2387 = vmatpush1.msra.mxu0 0.0
        %2388 = vmatprep.subr.mxu0 0.0
        %2389 = vmatpush1.msra.mxu0 0.0
        %2390 = vmatprep.subr.mxu0 0.0
        %2391 = vmatpush1.msra.mxu0 0.0
        %2392 = vmatprep.subr.mxu0 0.0
        %2393 = vmatpush1.msra.mxu0 0.0
        %2394 = vmatprep.subr.mxu0 0.0
        %2395 = vmatpush1.msra.mxu0 0.0
        %2396 = vmatprep.subr.mxu0 0.0
        %2397 = vmatpush1.msra.mxu0 0.0
        %2398 = vmatprep.subr.mxu0 0.0
        %2399 = vmatpush1.msra.mxu0 0.0
        %2400 = vmatprep.subr.mxu0 0.0
        %2401 = vmatpush1.msra.mxu0 0.0
        %2402 = vmatprep.subr.mxu0 0.0
        %2403 = vmatpush1.msra.mxu0 0.0
        %2404 = vmatprep.subr.mxu0 0.0
        %2405 = vmatpush1.msra.mxu0 0.0
        %2406 = vmatprep.subr.mxu0 0.0
        %2407 = vmatpush1.msra.mxu0 0.0
        %2408 = vmatprep.subr.mxu0 0.0
        %2409 = vmatpush1.msra.mxu0 0.0
        %2410 = vmatprep.subr.mxu0 0.0
        %2411 = vmatpush1.msra.mxu0 0.0
        %2412 = vmatprep.subr.mxu0 0.0
        %2413 = vmatpush1.msra.mxu0 0.0
        %2414 = vmatprep.subr.mxu0 0.0
        %2415 = vmatpush1.msra.mxu0 0.0
        %2416 = vmatprep.subr.mxu0 0.0
        %2417 = vmatpush1.msra.mxu0 0.0
        %2418 = vmatprep.mubr.f32.mxu0 0.0
        %2419 = vmatmul.mubr.f32.gmra.mrb[0].mxu0 %v2337
        %v2420 = vpop.f32.mrb[0].mxu0
        %v2421 = vadd.f32 0.0, %v2420
        %v2422 = vpop.f32.mrb[0].mxu0
        %v2423 = vadd.f32 0.0, %v2422
        %2424 = vdwg.mxu0
        %2425 = vmatprep.subr.mxu0 %v331
        %2426 = vmatpush1.msra.mxu0 %v330
        %2427 = vmatprep.subr.mxu0 %v335
        %2428 = vmatpush1.msra.mxu0 %v334
        %2429 = vmatprep.subr.mxu0 %v339
        %2430 = vmatpush1.msra.mxu0 %v338
        %2431 = vmatprep.subr.mxu0 %v343
        %2432 = vmatpush1.msra.mxu0 %v342
        %2433 = vmatprep.subr.mxu0 %v347
        %2434 = vmatpush1.msra.mxu0 %v346
        %2435 = vmatprep.subr.mxu0 %v351
        %2436 = vmatpush1.msra.mxu0 %v350
        %2437 = vmatprep.subr.mxu0 %v355
        %2438 = vmatpush1.msra.mxu0 %v354
        %2439 = vmatprep.subr.mxu0 %v359
        %2440 = vmatpush1.msra.mxu0 %v358
        %2441 = vmatprep.subr.mxu0 %v363
        %2442 = vmatpush1.msra.mxu0 %v362
        %2443 = vmatprep.subr.mxu0 %v367
        %2444 = vmatpush1.msra.mxu0 %v366
        %2445 = vmatprep.subr.mxu0 %v371
        %2446 = vmatpush1.msra.mxu0 %v370
        %2447 = vmatprep.subr.mxu0 %v375
        %2448 = vmatpush1.msra.mxu0 %v374
        %2449 = vmatprep.subr.mxu0 %v379
        %2450 = vmatpush1.msra.mxu0 %v378
        %2451 = vmatprep.subr.mxu0 %v383
        %2452 = vmatpush1.msra.mxu0 %v382
        %2453 = vmatprep.subr.mxu0 %v387
        %2454 = vmatpush1.msra.mxu0 %v386
        %2455 = vmatprep.subr.mxu0 %v391
        %2456 = vmatpush1.msra.mxu0 %v390
        %2457 = vmatprep.subr.mxu0 0.0
        %2458 = vmatpush1.msra.mxu0 0.0
        %2459 = vmatprep.subr.mxu0 0.0
        %2460 = vmatpush1.msra.mxu0 0.0
        %2461 = vmatprep.subr.mxu0 0.0
        %2462 = vmatpush1.msra.mxu0 0.0
        %2463 = vmatprep.subr.mxu0 0.0
        %2464 = vmatpush1.msra.mxu0 0.0
        %2465 = vmatprep.subr.mxu0 0.0
        %2466 = vmatpush1.msra.mxu0 0.0
        %2467 = vmatprep.subr.mxu0 0.0
        %2468 = vmatpush1.msra.mxu0 0.0
        %2469 = vmatprep.subr.mxu0 0.0
        %2470 = vmatpush1.msra.mxu0 0.0
        %2471 = vmatprep.subr.mxu0 0.0
        %2472 = vmatpush1.msra.mxu0 0.0
        %2473 = vmatprep.subr.mxu0 0.0
        %2474 = vmatpush1.msra.mxu0 0.0
        %2475 = vmatprep.subr.mxu0 0.0
        %2476 = vmatpush1.msra.mxu0 0.0
        %2477 = vmatprep.subr.mxu0 0.0
        %2478 = vmatpush1.msra.mxu0 0.0
        %2479 = vmatprep.subr.mxu0 0.0
        %2480 = vmatpush1.msra.mxu0 0.0
        %2481 = vmatprep.subr.mxu0 0.0
        %2482 = vmatpush1.msra.mxu0 0.0
        %2483 = vmatprep.subr.mxu0 0.0
        %2484 = vmatpush1.msra.mxu0 0.0
        %2485 = vmatprep.subr.mxu0 0.0
        %2486 = vmatpush1.msra.mxu0 0.0
        %2487 = vmatprep.subr.mxu0 0.0
        %2488 = vmatpush1.msra.mxu0 0.0
        %2489 = vmatprep.mubr.f32.mxu0 0.0
        %2490 = vmatmul.mubr.f32.gmra.mrb[0].mxu0 %v2337
        %v2491 = vpop.f32.mrb[0].mxu0
        %v2492 = vadd.f32 0.0, %v2491
        %v2493 = vpop.f32.mrb[0].mxu0
        %v2494 = vadd.f32 0.0, %v2493
        %2495 = vdwg.mxu0
        %v2496 = vadd.f32 %v2350, %v2421
        %v2497 = vadd.f32 %v2351, %v2423
        %v2498 = vadd.f32 %v2352, %v2492
        %v2499 = vadd.f32 %v2353, %v2494
        %v2500 = vxor.u32 %v2496, 2147483648
        %v2501 = vmul.f32 %v2500, 1.442695
        %v2502 = vpow.pop %v2501
        %v2503 = vadd.f32 %v2502, 1.0
        %v2504 = vrcp.pop %v2503
        %v2505 = vmul.f32 1.0, %v2504
        %v2506 = vxor.u32 %v2497, 2147483648
        %v2507 = vmul.f32 %v2506, 1.442695
        %v2508 = vpow.pop %v2507
        %v2509 = vadd.f32 %v2508, 1.0
        %v2510 = vrcp.pop %v2509
        %v2511 = vmul.f32 1.0, %v2510
        %v2512 = vtanh.pop %v2498
        %v2513 = vxor.u32 %v2499, 2147483648
        %v2514 = vmul.f32 %v2513, 1.442695
        %v2515 = vpow.pop %v2514
        %v2516 = vadd.f32 %v2515, 1.0
        %v2517 = vrcp.pop %v2516
        %v2518 = vmul.f32 1.0, %v2517
        %v2519 = vmul.f32 %v2511, %v2338
        %v2520 = vmul.f32 %v2505, %v2512
        %v2521 = vadd.f32 %v2519, %v2520
        %v2522 = vtanh.pop %v2521
        %v2523 = vmul.f32 %v2518, %v2522
        %s2524 = sadd.s32 %s326, %s2343
        %v2525 = vstv %s2524
        %vm2526 = vcmp.gt.s32.totalorder %v327, %v2525
        %v2527 = vsel %vm2526, 1, 0
        %2528 = vset.pattern.permute.xlu0 0
        %2529 = vperm.xlu0 %2528, %v2527
        %v2530 = vpop.permute.xlu0 %2529
        %vm2531 = vcmp.eq.s32.totalorder %v2530, 1
        %v2532 = vsel %vm2531, %v2523, %v2337
        %v2533 = vsel %vm2531, %v2521, %v2338
        %v2534 = vsel %vm2531, %v2523, 0.0
        %s2535 = scalar_lea.vmem %s298, %s2344 [#allocation9]
        %2536 = vst [vmem:[%s2535] sm:$0xff] %v2534
        %s2537 = smul.u32 %s32, 4294967289
        %s2538 = sadd.s32 %s2537, 11
        %s2539 = smul.u32 %s2538, 8
        %s2540 = sshra.s32 %s2539, 3
        %s2541 = sand.u32 %s2539, 7
        %s2542 = smul.u32 %s2540, 4
        %s2543 = smul.addr %s2542, 8
        %s2544 = scalar_lea.vmem %s262, %s2543 [#allocation4]
        %v2545 = vld [vmem:[%s2544] sm:$0xff]
        %v2546 = vld [vmem:[%s2544 + $0x8] sm:$0xff]
        %v2547 = vld [vmem:[%s2544 + $0x10] sm:$0xff]
        %v2548 = vld [vmem:[%s2544 + $0x18] sm:$0xff]
        %2549 = vmatprep.subr.mxu0 %v329
        %2550 = vmatpush1.msra.mxu0 %v328
        %2551 = vmatprep.subr.mxu0 %v333
        %2552 = vmatpush1.msra.mxu0 %v332
        %2553 = vmatprep.subr.mxu0 %v337
        %2554 = vmatpush1.msra.mxu0 %v336
        %2555 = vmatprep.subr.mxu0 %v341
        %2556 = vmatpush1.msra.mxu0 %v340
        %2557 = vmatprep.subr.mxu0 %v345
        %2558 = vmatpush1.msra.mxu0 %v344
        %2559 = vmatprep.subr.mxu0 %v349
        %2560 = vmatpush1.msra.mxu0 %v348
        %2561 = vmatprep.subr.mxu0 %v353
        %2562 = vmatpush1.msra.mxu0 %v352
        %2563 = vmatprep.subr.mxu0 %v357
        %2564 = vmatpush1.msra.mxu0 %v356
        %2565 = vmatprep.subr.mxu0 %v361
        %2566 = vmatpush1.msra.mxu0 %v360
        %2567 = vmatprep.subr.mxu0 %v365
        %2568 = vmatpush1.msra.mxu0 %v364
        %2569 = vmatprep.subr.mxu0 %v369
        %2570 = vmatpush1.msra.mxu0 %v368
        %2571 = vmatprep.subr.mxu0 %v373
        %2572 = vmatpush1.msra.mxu0 %v372
        %2573 = vmatprep.subr.mxu0 %v377
        %2574 = vmatpush1.msra.mxu0 %v376
        %2575 = vmatprep.subr.mxu0 %v381
        %2576 = vmatpush1.msra.mxu0 %v380
        %2577 = vmatprep.subr.mxu0 %v385
        %2578 = vmatpush1.msra.mxu0 %v384
        %2579 = vmatprep.subr.mxu0 %v389
        %2580 = vmatpush1.msra.mxu0 %v388
        %2581 = vmatprep.subr.mxu0 0.0
        %2582 = vmatpush1.msra.mxu0 0.0
        %2583 = vmatprep.subr.mxu0 0.0
        %2584 = vmatpush1.msra.mxu0 0.0
        %2585 = vmatprep.subr.mxu0 0.0
        %2586 = vmatpush1.msra.mxu0 0.0
        %2587 = vmatprep.subr.mxu0 0.0
        %2588 = vmatpush1.msra.mxu0 0.0
        %2589 = vmatprep.subr.mxu0 0.0
        %2590 = vmatpush1.msra.mxu0 0.0
        %2591 = vmatprep.subr.mxu0 0.0
        %2592 = vmatpush1.msra.mxu0 0.0
        %2593 = vmatprep.subr.mxu0 0.0
        %2594 = vmatpush1.msra.mxu0 0.0
        %2595 = vmatprep.subr.mxu0 0.0
        %2596 = vmatpush1.msra.mxu0 0.0
        %2597 = vmatprep.subr.mxu0 0.0
        %2598 = vmatpush1.msra.mxu0 0.0
        %2599 = vmatprep.subr.mxu0 0.0
        %2600 = vmatpush1.msra.mxu0 0.0
        %2601 = vmatprep.subr.mxu0 0.0
        %2602 = vmatpush1.msra.mxu0 0.0
        %2603 = vmatprep.subr.mxu0 0.0
        %2604 = vmatpush1.msra.mxu0 0.0
        %2605 = vmatprep.subr.mxu0 0.0
        %2606 = vmatpush1.msra.mxu0 0.0
        %2607 = vmatprep.subr.mxu0 0.0
        %2608 = vmatpush1.msra.mxu0 0.0
        %2609 = vmatprep.subr.mxu0 0.0
        %2610 = vmatpush1.msra.mxu0 0.0
        %2611 = vmatprep.subr.mxu0 0.0
        %2612 = vmatpush1.msra.mxu0 0.0
        %2613 = vmatprep.mubr.f32.mxu0 0.0
        %2614 = vmatmul.mubr.f32.gmra.mrb[0].mxu0 %v2532
        %v2615 = vpop.f32.mrb[0].mxu0
        %v2616 = vadd.f32 0.0, %v2615
        %v2617 = vpop.f32.mrb[0].mxu0
        %v2618 = vadd.f32 0.0, %v2617
        %2619 = vdwg.mxu0
        %2620 = vmatprep.subr.mxu0 %v331
        %2621 = vmatpush1.msra.mxu0 %v330
        %2622 = vmatprep.subr.mxu0 %v335
        %2623 = vmatpush1.msra.mxu0 %v334
        %2624 = vmatprep.subr.mxu0 %v339
        %2625 = vmatpush1.msra.mxu0 %v338
        %2626 = vmatprep.subr.mxu0 %v343
        %2627 = vmatpush1.msra.mxu0 %v342
        %2628 = vmatprep.subr.mxu0 %v347
        %2629 = vmatpush1.msra.mxu0 %v346
        %2630 = vmatprep.subr.mxu0 %v351
        %2631 = vmatpush1.msra.mxu0 %v350
        %2632 = vmatprep.subr.mxu0 %v355
        %2633 = vmatpush1.msra.mxu0 %v354
        %2634 = vmatprep.subr.mxu0 %v359
        %2635 = vmatpush1.msra.mxu0 %v358
        %2636 = vmatprep.subr.mxu0 %v363
        %2637 = vmatpush1.msra.mxu0 %v362
        %2638 = vmatprep.subr.mxu0 %v367
        %2639 = vmatpush1.msra.mxu0 %v366
        %2640 = vmatprep.subr.mxu0 %v371
        %2641 = vmatpush1.msra.mxu0 %v370
        %2642 = vmatprep.subr.mxu0 %v375
        %2643 = vmatpush1.msra.mxu0 %v374
        %2644 = vmatprep.subr.mxu0 %v379
        %2645 = vmatpush1.msra.mxu0 %v378
        %2646 = vmatprep.subr.mxu0 %v383
        %2647 = vmatpush1.msra.mxu0 %v382
        %2648 = vmatprep.subr.mxu0 %v387
        %2649 = vmatpush1.msra.mxu0 %v386
        %2650 = vmatprep.subr.mxu0 %v391
        %2651 = vmatpush1.msra.mxu0 %v390
        %2652 = vmatprep.subr.mxu0 0.0
        %2653 = vmatpush1.msra.mxu0 0.0
        %2654 = vmatprep.subr.mxu0 0.0
        %2655 = vmatpush1.msra.mxu0 0.0
        %2656 = vmatprep.subr.mxu0 0.0
        %2657 = vmatpush1.msra.mxu0 0.0
        %2658 = vmatprep.subr.mxu0 0.0
        %2659 = vmatpush1.msra.mxu0 0.0
        %2660 = vmatprep.subr.mxu0 0.0
        %2661 = vmatpush1.msra.mxu0 0.0
        %2662 = vmatprep.subr.mxu0 0.0
        %2663 = vmatpush1.msra.mxu0 0.0
        %2664 = vmatprep.subr.mxu0 0.0
        %2665 = vmatpush1.msra.mxu0 0.0
        %2666 = vmatprep.subr.mxu0 0.0
        %2667 = vmatpush1.msra.mxu0 0.0
        %2668 = vmatprep.subr.mxu0 0.0
        %2669 = vmatpush1.msra.mxu0 0.0
        %2670 = vmatprep.subr.mxu0 0.0
        %2671 = vmatpush1.msra.mxu0 0.0
        %2672 = vmatprep.subr.mxu0 0.0
        %2673 = vmatpush1.msra.mxu0 0.0
        %2674 = vmatprep.subr.mxu0 0.0
        %2675 = vmatpush1.msra.mxu0 0.0
        %2676 = vmatprep.subr.mxu0 0.0
        %2677 = vmatpush1.msra.mxu0 0.0
        %2678 = vmatprep.subr.mxu0 0.0
        %2679 = vmatpush1.msra.mxu0 0.0
        %2680 = vmatprep.subr.mxu0 0.0
        %2681 = vmatpush1.msra.mxu0 0.0
        %2682 = vmatprep.subr.mxu0 0.0
        %2683 = vmatpush1.msra.mxu0 0.0
        %2684 = vmatprep.mubr.f32.mxu0 0.0
        %2685 = vmatmul.mubr.f32.gmra.mrb[0].mxu0 %v2532
        %v2686 = vpop.f32.mrb[0].mxu0
        %v2687 = vadd.f32 0.0, %v2686
        %v2688 = vpop.f32.mrb[0].mxu0
        %v2689 = vadd.f32 0.0, %v2688
        %2690 = vdwg.mxu0
        %v2691 = vadd.f32 %v2545, %v2616
        %v2692 = vadd.f32 %v2546, %v2618
        %v2693 = vadd.f32 %v2547, %v2687
        %v2694 = vadd.f32 %v2548, %v2689
        %v2695 = vxor.u32 %v2691, 2147483648
        %v2696 = vmul.f32 %v2695, 1.442695
        %v2697 = vpow.pop %v2696
        %v2698 = vadd.f32 %v2697, 1.0
        %v2699 = vrcp.pop %v2698
        %v2700 = vmul.f32 1.0, %v2699
        %v2701 = vxor.u32 %v2692, 2147483648
        %v2702 = vmul.f32 %v2701, 1.442695
        %v2703 = vpow.pop %v2702
        %v2704 = vadd.f32 %v2703, 1.0
        %v2705 = vrcp.pop %v2704
        %v2706 = vmul.f32 1.0, %v2705
        %v2707 = vtanh.pop %v2693
        %v2708 = vxor.u32 %v2694, 2147483648
        %v2709 = vmul.f32 %v2708, 1.442695
        %v2710 = vpow.pop %v2709
        %v2711 = vadd.f32 %v2710, 1.0
        %v2712 = vrcp.pop %v2711
        %v2713 = vmul.f32 1.0, %v2712
        %v2714 = vmul.f32 %v2706, %v2533
        %v2715 = vmul.f32 %v2700, %v2707
        %v2716 = vadd.f32 %v2714, %v2715
        %v2717 = vtanh.pop %v2716
        %v2718 = vmul.f32 %v2713, %v2717
        %s2719 = sadd.s32 %s326, %s2538
        %v2720 = vstv %s2719
        %vm2721 = vcmp.gt.s32.totalorder %v327, %v2720
        %v2722 = vsel %vm2721, 1, 0
        %2723 = vset.pattern.permute.xlu0 0
        %2724 = vperm.xlu0 %2723, %v2722
        %v2725 = vpop.permute.xlu0 %2724
        %vm2726 = vcmp.eq.s32.totalorder %v2725, 1
        %v2727 = vsel %vm2726, %v2718, %v2532
        %v2728 = vsel %vm2726, %v2716, %v2533
        %v2729 = vsel %vm2726, %v2718, 0.0
        %s2730 = scalar_lea.vmem %s298, %s2539 [#allocation9]
        %2731 = vst [vmem:[%s2730] sm:$0xff] %v2729
        %s2732 = smul.u32 %s32, 4294967287
        %s2733 = sadd.s32 %s2732, 12
        %s2734 = smul.u32 %s2733, 8
        %s2735 = sshra.s32 %s2734, 3
        %s2736 = sand.u32 %s2734, 7
        %s2737 = smul.u32 %s2735, 4
        %s2738 = smul.addr %s2737, 8
        %s2739 = scalar_lea.vmem %s262, %s2738 [#allocation4]
        %v2740 = vld [vmem:[%s2739] sm:$0xff]
        %v2741 = vld [vmem:[%s2739 + $0x8] sm:$0xff]
        %v2742 = vld [vmem:[%s2739 + $0x10] sm:$0xff]
        %v2743 = vld [vmem:[%s2739 + $0x18] sm:$0xff]
        %2744 = vmatprep.subr.mxu0 %v329
        %2745 = vmatpush1.msra.mxu0 %v328
        %2746 = vmatprep.subr.mxu0 %v333
        %2747 = vmatpush1.msra.mxu0 %v332
        %2748 = vmatprep.subr.mxu0 %v337
        %2749 = vmatpush1.msra.mxu0 %v336
        %2750 = vmatprep.subr.mxu0 %v341
        %2751 = vmatpush1.msra.mxu0 %v340
        %2752 = vmatprep.subr.mxu0 %v345
        %2753 = vmatpush1.msra.mxu0 %v344
        %2754 = vmatprep.subr.mxu0 %v349
        %2755 = vmatpush1.msra.mxu0 %v348
        %2756 = vmatprep.subr.mxu0 %v353
        %2757 = vmatpush1.msra.mxu0 %v352
        %2758 = vmatprep.subr.mxu0 %v357
        %2759 = vmatpush1.msra.mxu0 %v356
        %2760 = vmatprep.subr.mxu0 %v361
        %2761 = vmatpush1.msra.mxu0 %v360
        %2762 = vmatprep.subr.mxu0 %v365
        %2763 = vmatpush1.msra.mxu0 %v364
        %2764 = vmatprep.subr.mxu0 %v369
        %2765 = vmatpush1.msra.mxu0 %v368
        %2766 = vmatprep.subr.mxu0 %v373
        %2767 = vmatpush1.msra.mxu0 %v372
        %2768 = vmatprep.subr.mxu0 %v377
        %2769 = vmatpush1.msra.mxu0 %v376
        %2770 = vmatprep.subr.mxu0 %v381
        %2771 = vmatpush1.msra.mxu0 %v380
        %2772 = vmatprep.subr.mxu0 %v385
        %2773 = vmatpush1.msra.mxu0 %v384
        %2774 = vmatprep.subr.mxu0 %v389
        %2775 = vmatpush1.msra.mxu0 %v388
        %2776 = vmatprep.subr.mxu0 0.0
        %2777 = vmatpush1.msra.mxu0 0.0
        %2778 = vmatprep.subr.mxu0 0.0
        %2779 = vmatpush1.msra.mxu0 0.0
        %2780 = vmatprep.subr.mxu0 0.0
        %2781 = vmatpush1.msra.mxu0 0.0
        %2782 = vmatprep.subr.mxu0 0.0
        %2783 = vmatpush1.msra.mxu0 0.0
        %2784 = vmatprep.subr.mxu0 0.0
        %2785 = vmatpush1.msra.mxu0 0.0
        %2786 = vmatprep.subr.mxu0 0.0
        %2787 = vmatpush1.msra.mxu0 0.0
        %2788 = vmatprep.subr.mxu0 0.0
        %2789 = vmatpush1.msra.mxu0 0.0
        %2790 = vmatprep.subr.mxu0 0.0
        %2791 = vmatpush1.msra.mxu0 0.0
        %2792 = vmatprep.subr.mxu0 0.0
        %2793 = vmatpush1.msra.mxu0 0.0
        %2794 = vmatprep.subr.mxu0 0.0
        %2795 = vmatpush1.msra.mxu0 0.0
        %2796 = vmatprep.subr.mxu0 0.0
        %2797 = vmatpush1.msra.mxu0 0.0
        %2798 = vmatprep.subr.mxu0 0.0
        %2799 = vmatpush1.msra.mxu0 0.0
        %2800 = vmatprep.subr.mxu0 0.0
        %2801 = vmatpush1.msra.mxu0 0.0
        %2802 = vmatprep.subr.mxu0 0.0
        %2803 = vmatpush1.msra.mxu0 0.0
        %2804 = vmatprep.subr.mxu0 0.0
        %2805 = vmatpush1.msra.mxu0 0.0
        %2806 = vmatprep.subr.mxu0 0.0
        %2807 = vmatpush1.msra.mxu0 0.0
        %2808 = vmatprep.mubr.f32.mxu0 0.0
        %2809 = vmatmul.mubr.f32.gmra.mrb[0].mxu0 %v2727
        %v2810 = vpop.f32.mrb[0].mxu0
        %v2811 = vadd.f32 0.0, %v2810
        %v2812 = vpop.f32.mrb[0].mxu0
        %v2813 = vadd.f32 0.0, %v2812
        %2814 = vdwg.mxu0
        %2815 = vmatprep.subr.mxu0 %v331
        %2816 = vmatpush1.msra.mxu0 %v330
        %2817 = vmatprep.subr.mxu0 %v335
        %2818 = vmatpush1.msra.mxu0 %v334
        %2819 = vmatprep.subr.mxu0 %v339
        %2820 = vmatpush1.msra.mxu0 %v338
        %2821 = vmatprep.subr.mxu0 %v343
        %2822 = vmatpush1.msra.mxu0 %v342
        %2823 = vmatprep.subr.mxu0 %v347
        %2824 = vmatpush1.msra.mxu0 %v346
        %2825 = vmatprep.subr.mxu0 %v351
        %2826 = vmatpush1.msra.mxu0 %v350
        %2827 = vmatprep.subr.mxu0 %v355
        %2828 = vmatpush1.msra.mxu0 %v354
        %2829 = vmatprep.subr.mxu0 %v359
        %2830 = vmatpush1.msra.mxu0 %v358
        %2831 = vmatprep.subr.mxu0 %v363
        %2832 = vmatpush1.msra.mxu0 %v362
        %2833 = vmatprep.subr.mxu0 %v367
        %2834 = vmatpush1.msra.mxu0 %v366
        %2835 = vmatprep.subr.mxu0 %v371
        %2836 = vmatpush1.msra.mxu0 %v370
        %2837 = vmatprep.subr.mxu0 %v375
        %2838 = vmatpush1.msra.mxu0 %v374
        %2839 = vmatprep.subr.mxu0 %v379
        %2840 = vmatpush1.msra.mxu0 %v378
        %2841 = vmatprep.subr.mxu0 %v383
        %2842 = vmatpush1.msra.mxu0 %v382
        %2843 = vmatprep.subr.mxu0 %v387
        %2844 = vmatpush1.msra.mxu0 %v386
        %2845 = vmatprep.subr.mxu0 %v391
        %2846 = vmatpush1.msra.mxu0 %v390
        %2847 = vmatprep.subr.mxu0 0.0
        %2848 = vmatpush1.msra.mxu0 0.0
        %2849 = vmatprep.subr.mxu0 0.0
        %2850 = vmatpush1.msra.mxu0 0.0
        %2851 = vmatprep.subr.mxu0 0.0
        %2852 = vmatpush1.msra.mxu0 0.0
        %2853 = vmatprep.subr.mxu0 0.0
        %2854 = vmatpush1.msra.mxu0 0.0
        %2855 = vmatprep.subr.mxu0 0.0
        %2856 = vmatpush1.msra.mxu0 0.0
        %2857 = vmatprep.subr.mxu0 0.0
        %2858 = vmatpush1.msra.mxu0 0.0
        %2859 = vmatprep.subr.mxu0 0.0
        %2860 = vmatpush1.msra.mxu0 0.0
        %2861 = vmatprep.subr.mxu0 0.0
        %2862 = vmatpush1.msra.mxu0 0.0
        %2863 = vmatprep.subr.mxu0 0.0
        %2864 = vmatpush1.msra.mxu0 0.0
        %2865 = vmatprep.subr.mxu0 0.0
        %2866 = vmatpush1.msra.mxu0 0.0
        %2867 = vmatprep.subr.mxu0 0.0
        %2868 = vmatpush1.msra.mxu0 0.0
        %2869 = vmatprep.subr.mxu0 0.0
        %2870 = vmatpush1.msra.mxu0 0.0
        %2871 = vmatprep.subr.mxu0 0.0
        %2872 = vmatpush1.msra.mxu0 0.0
        %2873 = vmatprep.subr.mxu0 0.0
        %2874 = vmatpush1.msra.mxu0 0.0
        %2875 = vmatprep.subr.mxu0 0.0
        %2876 = vmatpush1.msra.mxu0 0.0
        %2877 = vmatprep.subr.mxu0 0.0
        %2878 = vmatpush1.msra.mxu0 0.0
        %2879 = vmatprep.mubr.f32.mxu0 0.0
        %2880 = vmatmul.mubr.f32.gmra.mrb[0].mxu0 %v2727
        %v2881 = vpop.f32.mrb[0].mxu0
        %v2882 = vadd.f32 0.0, %v2881
        %v2883 = vpop.f32.mrb[0].mxu0
        %v2884 = vadd.f32 0.0, %v2883
        %2885 = vdwg.mxu0
        %v2886 = vadd.f32 %v2740, %v2811
        %v2887 = vadd.f32 %v2741, %v2813
        %v2888 = vadd.f32 %v2742, %v2882
        %v2889 = vadd.f32 %v2743, %v2884
        %v2890 = vxor.u32 %v2886, 2147483648
        %v2891 = vmul.f32 %v2890, 1.442695
        %v2892 = vpow.pop %v2891
        %v2893 = vadd.f32 %v2892, 1.0
        %v2894 = vrcp.pop %v2893
        %v2895 = vmul.f32 1.0, %v2894
        %v2896 = vxor.u32 %v2887, 2147483648
        %v2897 = vmul.f32 %v2896, 1.442695
        %v2898 = vpow.pop %v2897
        %v2899 = vadd.f32 %v2898, 1.0
        %v2900 = vrcp.pop %v2899
        %v2901 = vmul.f32 1.0, %v2900
        %v2902 = vtanh.pop %v2888
        %v2903 = vxor.u32 %v2889, 2147483648
        %v2904 = vmul.f32 %v2903, 1.442695
        %v2905 = vpow.pop %v2904
        %v2906 = vadd.f32 %v2905, 1.0
        %v2907 = vrcp.pop %v2906
        %v2908 = vmul.f32 1.0, %v2907
        %v2909 = vmul.f32 %v2901, %v2728
        %v2910 = vmul.f32 %v2895, %v2902
        %v2911 = vadd.f32 %v2909, %v2910
        %v2912 = vtanh.pop %v2911
        %v2913 = vmul.f32 %v2908, %v2912
        %s2914 = sadd.s32 %s326, %s2733
        %v2915 = vstv %s2914
        %vm2916 = vcmp.gt.s32.totalorder %v327, %v2915
        %v2917 = vsel %vm2916, 1, 0
        %2918 = vset.pattern.permute.xlu0 0
        %2919 = vperm.xlu0 %2918, %v2917
        %v2920 = vpop.permute.xlu0 %2919
        %vm2921 = vcmp.eq.s32.totalorder %v2920, 1
        %v2922 = vsel %vm2921, %v2913, %v2727
        %v2923 = vsel %vm2921, %v2911, %v2728
        %v2924 = vsel %vm2921, %v2913, 0.0
        %s2925 = scalar_lea.vmem %s298, %s2734 [#allocation9]
        %2926 = vst [vmem:[%s2925] sm:$0xff] %v2924
        %s2927 = smul.u32 %s32, 4294967285
        %s2928 = sadd.s32 %s2927, 13
        %s2929 = smul.u32 %s2928, 8
        %s2930 = sshra.s32 %s2929, 3
        %s2931 = sand.u32 %s2929, 7
        %s2932 = smul.u32 %s2930, 4
        %s2933 = smul.addr %s2932, 8
        %s2934 = scalar_lea.vmem %s262, %s2933 [#allocation4]
        %v2935 = vld [vmem:[%s2934] sm:$0xff]
        %v2936 = vld [vmem:[%s2934 + $0x8] sm:$0xff]
        %v2937 = vld [vmem:[%s2934 + $0x10] sm:$0xff]
        %v2938 = vld [vmem:[%s2934 + $0x18] sm:$0xff]
        %2939 = vmatprep.subr.mxu0 %v329
        %2940 = vmatpush1.msra.mxu0 %v328
        %2941 = vmatprep.subr.mxu0 %v333
        %2942 = vmatpush1.msra.mxu0 %v332
        %2943 = vmatprep.subr.mxu0 %v337
        %2944 = vmatpush1.msra.mxu0 %v336
        %2945 = vmatprep.subr.mxu0 %v341
        %2946 = vmatpush1.msra.mxu0 %v340
        %2947 = vmatprep.subr.mxu0 %v345
        %2948 = vmatpush1.msra.mxu0 %v344
        %2949 = vmatprep.subr.mxu0 %v349
        %2950 = vmatpush1.msra.mxu0 %v348
        %2951 = vmatprep.subr.mxu0 %v353
        %2952 = vmatpush1.msra.mxu0 %v352
        %2953 = vmatprep.subr.mxu0 %v357
        %2954 = vmatpush1.msra.mxu0 %v356
        %2955 = vmatprep.subr.mxu0 %v361
        %2956 = vmatpush1.msra.mxu0 %v360
        %2957 = vmatprep.subr.mxu0 %v365
        %2958 = vmatpush1.msra.mxu0 %v364
        %2959 = vmatprep.subr.mxu0 %v369
        %2960 = vmatpush1.msra.mxu0 %v368
        %2961 = vmatprep.subr.mxu0 %v373
        %2962 = vmatpush1.msra.mxu0 %v372
        %2963 = vmatprep.subr.mxu0 %v377
        %2964 = vmatpush1.msra.mxu0 %v376
        %2965 = vmatprep.subr.mxu0 %v381
        %2966 = vmatpush1.msra.mxu0 %v380
        %2967 = vmatprep.subr.mxu0 %v385
        %2968 = vmatpush1.msra.mxu0 %v384
        %2969 = vmatprep.subr.mxu0 %v389
        %2970 = vmatpush1.msra.mxu0 %v388
        %2971 = vmatprep.subr.mxu0 0.0
        %2972 = vmatpush1.msra.mxu0 0.0
        %2973 = vmatprep.subr.mxu0 0.0
        %2974 = vmatpush1.msra.mxu0 0.0
        %2975 = vmatprep.subr.mxu0 0.0
        %2976 = vmatpush1.msra.mxu0 0.0
        %2977 = vmatprep.subr.mxu0 0.0
        %2978 = vmatpush1.msra.mxu0 0.0
        %2979 = vmatprep.subr.mxu0 0.0
        %2980 = vmatpush1.msra.mxu0 0.0
        %2981 = vmatprep.subr.mxu0 0.0
        %2982 = vmatpush1.msra.mxu0 0.0
        %2983 = vmatprep.subr.mxu0 0.0
        %2984 = vmatpush1.msra.mxu0 0.0
        %2985 = vmatprep.subr.mxu0 0.0
        %2986 = vmatpush1.msra.mxu0 0.0
        %2987 = vmatprep.subr.mxu0 0.0
        %2988 = vmatpush1.msra.mxu0 0.0
        %2989 = vmatprep.subr.mxu0 0.0
        %2990 = vmatpush1.msra.mxu0 0.0
        %2991 = vmatprep.subr.mxu0 0.0
        %2992 = vmatpush1.msra.mxu0 0.0
        %2993 = vmatprep.subr.mxu0 0.0
        %2994 = vmatpush1.msra.mxu0 0.0
        %2995 = vmatprep.subr.mxu0 0.0
        %2996 = vmatpush1.msra.mxu0 0.0
        %2997 = vmatprep.subr.mxu0 0.0
        %2998 = vmatpush1.msra.mxu0 0.0
        %2999 = vmatprep.subr.mxu0 0.0
        %3000 = vmatpush1.msra.mxu0 0.0
        %3001 = vmatprep.subr.mxu0 0.0
        %3002 = vmatpush1.msra.mxu0 0.0
        %3003 = vmatprep.mubr.f32.mxu0 0.0
        %3004 = vmatmul.mubr.f32.gmra.mrb[0].mxu0 %v2922
        %v3005 = vpop.f32.mrb[0].mxu0
        %v3006 = vadd.f32 0.0, %v3005
        %v3007 = vpop.f32.mrb[0].mxu0
        %v3008 = vadd.f32 0.0, %v3007
        %3009 = vdwg.mxu0
        %3010 = vmatprep.subr.mxu0 %v331
        %3011 = vmatpush1.msra.mxu0 %v330
        %3012 = vmatprep.subr.mxu0 %v335
        %3013 = vmatpush1.msra.mxu0 %v334
        %3014 = vmatprep.subr.mxu0 %v339
        %3015 = vmatpush1.msra.mxu0 %v338
        %3016 = vmatprep.subr.mxu0 %v343
        %3017 = vmatpush1.msra.mxu0 %v342
        %3018 = vmatprep.subr.mxu0 %v347
        %3019 = vmatpush1.msra.mxu0 %v346
        %3020 = vmatprep.subr.mxu0 %v351
        %3021 = vmatpush1.msra.mxu0 %v350
        %3022 = vmatprep.subr.mxu0 %v355
        %3023 = vmatpush1.msra.mxu0 %v354
        %3024 = vmatprep.subr.mxu0 %v359
        %3025 = vmatpush1.msra.mxu0 %v358
        %3026 = vmatprep.subr.mxu0 %v363
        %3027 = vmatpush1.msra.mxu0 %v362
        %3028 = vmatprep.subr.mxu0 %v367
        %3029 = vmatpush1.msra.mxu0 %v366
        %3030 = vmatprep.subr.mxu0 %v371
        %3031 = vmatpush1.msra.mxu0 %v370
        %3032 = vmatprep.subr.mxu0 %v375
        %3033 = vmatpush1.msra.mxu0 %v374
        %3034 = vmatprep.subr.mxu0 %v379
        %3035 = vmatpush1.msra.mxu0 %v378
        %3036 = vmatprep.subr.mxu0 %v383
        %3037 = vmatpush1.msra.mxu0 %v382
        %3038 = vmatprep.subr.mxu0 %v387
        %3039 = vmatpush1.msra.mxu0 %v386
        %3040 = vmatprep.subr.mxu0 %v391
        %3041 = vmatpush1.msra.mxu0 %v390
        %3042 = vmatprep.subr.mxu0 0.0
        %3043 = vmatpush1.msra.mxu0 0.0
        %3044 = vmatprep.subr.mxu0 0.0
        %3045 = vmatpush1.msra.mxu0 0.0
        %3046 = vmatprep.subr.mxu0 0.0
        %3047 = vmatpush1.msra.mxu0 0.0
        %3048 = vmatprep.subr.mxu0 0.0
        %3049 = vmatpush1.msra.mxu0 0.0
        %3050 = vmatprep.subr.mxu0 0.0
        %3051 = vmatpush1.msra.mxu0 0.0
        %3052 = vmatprep.subr.mxu0 0.0
        %3053 = vmatpush1.msra.mxu0 0.0
        %3054 = vmatprep.subr.mxu0 0.0
        %3055 = vmatpush1.msra.mxu0 0.0
        %3056 = vmatprep.subr.mxu0 0.0
        %3057 = vmatpush1.msra.mxu0 0.0
        %3058 = vmatprep.subr.mxu0 0.0
        %3059 = vmatpush1.msra.mxu0 0.0
        %3060 = vmatprep.subr.mxu0 0.0
        %3061 = vmatpush1.msra.mxu0 0.0
        %3062 = vmatprep.subr.mxu0 0.0
        %3063 = vmatpush1.msra.mxu0 0.0
        %3064 = vmatprep.subr.mxu0 0.0
        %3065 = vmatpush1.msra.mxu0 0.0
        %3066 = vmatprep.subr.mxu0 0.0
        %3067 = vmatpush1.msra.mxu0 0.0
        %3068 = vmatprep.subr.mxu0 0.0
        %3069 = vmatpush1.msra.mxu0 0.0
        %3070 = vmatprep.subr.mxu0 0.0
        %3071 = vmatpush1.msra.mxu0 0.0
        %3072 = vmatprep.subr.mxu0 0.0
        %3073 = vmatpush1.msra.mxu0 0.0
        %3074 = vmatprep.mubr.f32.mxu0 0.0
        %3075 = vmatmul.mubr.f32.gmra.mrb[0].mxu0 %v2922
        %v3076 = vpop.f32.mrb[0].mxu0
        %v3077 = vadd.f32 0.0, %v3076
        %v3078 = vpop.f32.mrb[0].mxu0
        %v3079 = vadd.f32 0.0, %v3078
        %3080 = vdwg.mxu0
        %v3081 = vadd.f32 %v2935, %v3006
        %v3082 = vadd.f32 %v2936, %v3008
        %v3083 = vadd.f32 %v2937, %v3077
        %v3084 = vadd.f32 %v2938, %v3079
        %v3085 = vxor.u32 %v3081, 2147483648
        %v3086 = vmul.f32 %v3085, 1.442695
        %v3087 = vpow.pop %v3086
        %v3088 = vadd.f32 %v3087, 1.0
        %v3089 = vrcp.pop %v3088
        %v3090 = vmul.f32 1.0, %v3089
        %v3091 = vxor.u32 %v3082, 2147483648
        %v3092 = vmul.f32 %v3091, 1.442695
        %v3093 = vpow.pop %v3092
        %v3094 = vadd.f32 %v3093, 1.0
        %v3095 = vrcp.pop %v3094
        %v3096 = vmul.f32 1.0, %v3095
        %v3097 = vtanh.pop %v3083
        %v3098 = vxor.u32 %v3084, 2147483648
        %v3099 = vmul.f32 %v3098, 1.442695
        %v3100 = vpow.pop %v3099
        %v3101 = vadd.f32 %v3100, 1.0
        %v3102 = vrcp.pop %v3101
        %v3103 = vmul.f32 1.0, %v3102
        %v3104 = vmul.f32 %v3096, %v2923
        %v3105 = vmul.f32 %v3090, %v3097
        %v3106 = vadd.f32 %v3104, %v3105
        %v3107 = vtanh.pop %v3106
        %v3108 = vmul.f32 %v3103, %v3107
        %s3109 = sadd.s32 %s326, %s2928
        %v3110 = vstv %s3109
        %vm3111 = vcmp.gt.s32.totalorder %v327, %v3110
        %v3112 = vsel %vm3111, 1, 0
        %3113 = vset.pattern.permute.xlu0 0
        %3114 = vperm.xlu0 %3113, %v3112
        %v3115 = vpop.permute.xlu0 %3114
        %vm3116 = vcmp.eq.s32.totalorder %v3115, 1
        %v3117 = vsel %vm3116, %v3108, %v2922
        %v3118 = vsel %vm3116, %v3106, %v2923
        %v3119 = vsel %vm3116, %v3108, 0.0
        %s3120 = scalar_lea.vmem %s298, %s2929 [#allocation9]
        %3121 = vst [vmem:[%s3120] sm:$0xff] %v3119
        %s3122 = smul.u32 %s32, 4294967283
        %s3123 = sadd.s32 %s3122, 14
        %s3124 = smul.u32 %s3123, 8
        %s3125 = sshra.s32 %s3124, 3
        %s3126 = sand.u32 %s3124, 7
        %s3127 = smul.u32 %s3125, 4
        %s3128 = smul.addr %s3127, 8
        %s3129 = scalar_lea.vmem %s262, %s3128 [#allocation4]
        %v3130 = vld [vmem:[%s3129] sm:$0xff]
        %v3131 = vld [vmem:[%s3129 + $0x8] sm:$0xff]
        %v3132 = vld [vmem:[%s3129 + $0x10] sm:$0xff]
        %v3133 = vld [vmem:[%s3129 + $0x18] sm:$0xff]
        %3134 = vmatprep.subr.mxu0 %v329
        %3135 = vmatpush1.msra.mxu0 %v328
        %3136 = vmatprep.subr.mxu0 %v333
        %3137 = vmatpush1.msra.mxu0 %v332
        %3138 = vmatprep.subr.mxu0 %v337
        %3139 = vmatpush1.msra.mxu0 %v336
        %3140 = vmatprep.subr.mxu0 %v341
        %3141 = vmatpush1.msra.mxu0 %v340
        %3142 = vmatprep.subr.mxu0 %v345
        %3143 = vmatpush1.msra.mxu0 %v344
        %3144 = vmatprep.subr.mxu0 %v349
        %3145 = vmatpush1.msra.mxu0 %v348
        %3146 = vmatprep.subr.mxu0 %v353
        %3147 = vmatpush1.msra.mxu0 %v352
        %3148 = vmatprep.subr.mxu0 %v357
        %3149 = vmatpush1.msra.mxu0 %v356
        %3150 = vmatprep.subr.mxu0 %v361
        %3151 = vmatpush1.msra.mxu0 %v360
        %3152 = vmatprep.subr.mxu0 %v365
        %3153 = vmatpush1.msra.mxu0 %v364
        %3154 = vmatprep.subr.mxu0 %v369
        %3155 = vmatpush1.msra.mxu0 %v368
        %3156 = vmatprep.subr.mxu0 %v373
        %3157 = vmatpush1.msra.mxu0 %v372
        %3158 = vmatprep.subr.mxu0 %v377
        %3159 = vmatpush1.msra.mxu0 %v376
        %3160 = vmatprep.subr.mxu0 %v381
        %3161 = vmatpush1.msra.mxu0 %v380
        %3162 = vmatprep.subr.mxu0 %v385
        %3163 = vmatpush1.msra.mxu0 %v384
        %3164 = vmatprep.subr.mxu0 %v389
        %3165 = vmatpush1.msra.mxu0 %v388
        %3166 = vmatprep.subr.mxu0 0.0
        %3167 = vmatpush1.msra.mxu0 0.0
        %3168 = vmatprep.subr.mxu0 0.0
        %3169 = vmatpush1.msra.mxu0 0.0
        %3170 = vmatprep.subr.mxu0 0.0
        %3171 = vmatpush1.msra.mxu0 0.0
        %3172 = vmatprep.subr.mxu0 0.0
        %3173 = vmatpush1.msra.mxu0 0.0
        %3174 = vmatprep.subr.mxu0 0.0
        %3175 = vmatpush1.msra.mxu0 0.0
        %3176 = vmatprep.subr.mxu0 0.0
        %3177 = vmatpush1.msra.mxu0 0.0
        %3178 = vmatprep.subr.mxu0 0.0
        %3179 = vmatpush1.msra.mxu0 0.0
        %3180 = vmatprep.subr.mxu0 0.0
        %3181 = vmatpush1.msra.mxu0 0.0
        %3182 = vmatprep.subr.mxu0 0.0
        %3183 = vmatpush1.msra.mxu0 0.0
        %3184 = vmatprep.subr.mxu0 0.0
        %3185 = vmatpush1.msra.mxu0 0.0
        %3186 = vmatprep.subr.mxu0 0.0
        %3187 = vmatpush1.msra.mxu0 0.0
        %3188 = vmatprep.subr.mxu0 0.0
        %3189 = vmatpush1.msra.mxu0 0.0
        %3190 = vmatprep.subr.mxu0 0.0
        %3191 = vmatpush1.msra.mxu0 0.0
        %3192 = vmatprep.subr.mxu0 0.0
        %3193 = vmatpush1.msra.mxu0 0.0
        %3194 = vmatprep.subr.mxu0 0.0
        %3195 = vmatpush1.msra.mxu0 0.0
        %3196 = vmatprep.subr.mxu0 0.0
        %3197 = vmatpush1.msra.mxu0 0.0
        %3198 = vmatprep.mubr.f32.mxu0 0.0
        %3199 = vmatmul.mubr.f32.gmra.mrb[0].mxu0 %v3117
        %v3200 = vpop.f32.mrb[0].mxu0
        %v3201 = vadd.f32 0.0, %v3200
        %v3202 = vpop.f32.mrb[0].mxu0
        %v3203 = vadd.f32 0.0, %v3202
        %3204 = vdwg.mxu0
        %3205 = vmatprep.subr.mxu0 %v331
        %3206 = vmatpush1.msra.mxu0 %v330
        %3207 = vmatprep.subr.mxu0 %v335
        %3208 = vmatpush1.msra.mxu0 %v334
        %3209 = vmatprep.subr.mxu0 %v339
        %3210 = vmatpush1.msra.mxu0 %v338
        %3211 = vmatprep.subr.mxu0 %v343
        %3212 = vmatpush1.msra.mxu0 %v342
        %3213 = vmatprep.subr.mxu0 %v347
        %3214 = vmatpush1.msra.mxu0 %v346
        %3215 = vmatprep.subr.mxu0 %v351
        %3216 = vmatpush1.msra.mxu0 %v350
        %3217 = vmatprep.subr.mxu0 %v355
        %3218 = vmatpush1.msra.mxu0 %v354
        %3219 = vmatprep.subr.mxu0 %v359
        %3220 = vmatpush1.msra.mxu0 %v358
        %3221 = vmatprep.subr.mxu0 %v363
        %3222 = vmatpush1.msra.mxu0 %v362
        %3223 = vmatprep.subr.mxu0 %v367
        %3224 = vmatpush1.msra.mxu0 %v366
        %3225 = vmatprep.subr.mxu0 %v371
        %3226 = vmatpush1.msra.mxu0 %v370
        %3227 = vmatprep.subr.mxu0 %v375
        %3228 = vmatpush1.msra.mxu0 %v374
        %3229 = vmatprep.subr.mxu0 %v379
        %3230 = vmatpush1.msra.mxu0 %v378
        %3231 = vmatprep.subr.mxu0 %v383
        %3232 = vmatpush1.msra.mxu0 %v382
        %3233 = vmatprep.subr.mxu0 %v387
        %3234 = vmatpush1.msra.mxu0 %v386
        %3235 = vmatprep.subr.mxu0 %v391
        %3236 = vmatpush1.msra.mxu0 %v390
        %3237 = vmatprep.subr.mxu0 0.0
        %3238 = vmatpush1.msra.mxu0 0.0
        %3239 = vmatprep.subr.mxu0 0.0
        %3240 = vmatpush1.msra.mxu0 0.0
        %3241 = vmatprep.subr.mxu0 0.0
        %3242 = vmatpush1.msra.mxu0 0.0
        %3243 = vmatprep.subr.mxu0 0.0
        %3244 = vmatpush1.msra.mxu0 0.0
        %3245 = vmatprep.subr.mxu0 0.0
        %3246 = vmatpush1.msra.mxu0 0.0
        %3247 = vmatprep.subr.mxu0 0.0
        %3248 = vmatpush1.msra.mxu0 0.0
        %3249 = vmatprep.subr.mxu0 0.0
        %3250 = vmatpush1.msra.mxu0 0.0
        %3251 = vmatprep.subr.mxu0 0.0
        %3252 = vmatpush1.msra.mxu0 0.0
        %3253 = vmatprep.subr.mxu0 0.0
        %3254 = vmatpush1.msra.mxu0 0.0
        %3255 = vmatprep.subr.mxu0 0.0
        %3256 = vmatpush1.msra.mxu0 0.0
        %3257 = vmatprep.subr.mxu0 0.0
        %3258 = vmatpush1.msra.mxu0 0.0
        %3259 = vmatprep.subr.mxu0 0.0
        %3260 = vmatpush1.msra.mxu0 0.0
        %3261 = vmatprep.subr.mxu0 0.0
        %3262 = vmatpush1.msra.mxu0 0.0
        %3263 = vmatprep.subr.mxu0 0.0
        %3264 = vmatpush1.msra.mxu0 0.0
        %3265 = vmatprep.subr.mxu0 0.0
        %3266 = vmatpush1.msra.mxu0 0.0
        %3267 = vmatprep.subr.mxu0 0.0
        %3268 = vmatpush1.msra.mxu0 0.0
        %3269 = vmatprep.mubr.f32.mxu0 0.0
        %3270 = vmatmul.mubr.f32.gmra.mrb[0].mxu0 %v3117
        %v3271 = vpop.f32.mrb[0].mxu0
        %v3272 = vadd.f32 0.0, %v3271
        %v3273 = vpop.f32.mrb[0].mxu0
        %v3274 = vadd.f32 0.0, %v3273
        %3275 = vdwg.mxu0
        %v3276 = vadd.f32 %v3130, %v3201
        %v3277 = vadd.f32 %v3131, %v3203
        %v3278 = vadd.f32 %v3132, %v3272
        %v3279 = vadd.f32 %v3133, %v3274
        %v3280 = vxor.u32 %v3276, 2147483648
        %v3281 = vmul.f32 %v3280, 1.442695
        %v3282 = vpow.pop %v3281
        %v3283 = vadd.f32 %v3282, 1.0
        %v3284 = vrcp.pop %v3283
        %v3285 = vmul.f32 1.0, %v3284
        %v3286 = vxor.u32 %v3277, 2147483648
        %v3287 = vmul.f32 %v3286, 1.442695
        %v3288 = vpow.pop %v3287
        %v3289 = vadd.f32 %v3288, 1.0
        %v3290 = vrcp.pop %v3289
        %v3291 = vmul.f32 1.0, %v3290
        %v3292 = vtanh.pop %v3278
        %v3293 = vxor.u32 %v3279, 2147483648
        %v3294 = vmul.f32 %v3293, 1.442695
        %v3295 = vpow.pop %v3294
        %v3296 = vadd.f32 %v3295, 1.0
        %v3297 = vrcp.pop %v3296
        %v3298 = vmul.f32 1.0, %v3297
        %v3299 = vmul.f32 %v3291, %v3118
        %v3300 = vmul.f32 %v3285, %v3292
        %v3301 = vadd.f32 %v3299, %v3300
        %v3302 = vtanh.pop %v3301
        %v3303 = vmul.f32 %v3298, %v3302
        %s3304 = sadd.s32 %s326, %s3123
        %v3305 = vstv %s3304
        %vm3306 = vcmp.gt.s32.totalorder %v327, %v3305
        %v3307 = vsel %vm3306, 1, 0
        %3308 = vset.pattern.permute.xlu0 0
        %3309 = vperm.xlu0 %3308, %v3307
        %v3310 = vpop.permute.xlu0 %3309
        %vm3311 = vcmp.eq.s32.totalorder %v3310, 1
        %v3312 = vsel %vm3311, %v3303, %v3117
        %v3313 = vsel %vm3311, %v3301, %v3118
        %v3314 = vsel %vm3311, %v3303, 0.0
        %s3315 = scalar_lea.vmem %s298, %s3124 [#allocation9]
        %3316 = vst [vmem:[%s3315] sm:$0xff] %v3314
        %s3317 = smul.u32 %s32, 4294967281
        %s3318 = sadd.s32 %s3317, 15
        %s3319 = smul.u32 %s3318, 8
        %s3320 = sshra.s32 %s3319, 3
        %s3321 = sand.u32 %s3319, 7
        %s3322 = smul.u32 %s3320, 4
        %s3323 = smul.addr %s3322, 8
        %s3324 = scalar_lea.vmem %s262, %s3323 [#allocation4]
        %v3325 = vld [vmem:[%s3324] sm:$0xff]
        %v3326 = vld [vmem:[%s3324 + $0x8] sm:$0xff]
        %v3327 = vld [vmem:[%s3324 + $0x10] sm:$0xff]
        %v3328 = vld [vmem:[%s3324 + $0x18] sm:$0xff]
        %3329 = vmatprep.subr.mxu0 %v329
        %3330 = vmatpush1.msra.mxu0 %v328
        %3331 = vmatprep.subr.mxu0 %v333
        %3332 = vmatpush1.msra.mxu0 %v332
        %3333 = vmatprep.subr.mxu0 %v337
        %3334 = vmatpush1.msra.mxu0 %v336
        %3335 = vmatprep.subr.mxu0 %v341
        %3336 = vmatpush1.msra.mxu0 %v340
        %3337 = vmatprep.subr.mxu0 %v345
        %3338 = vmatpush1.msra.mxu0 %v344
        %3339 = vmatprep.subr.mxu0 %v349
        %3340 = vmatpush1.msra.mxu0 %v348
        %3341 = vmatprep.subr.mxu0 %v353
        %3342 = vmatpush1.msra.mxu0 %v352
        %3343 = vmatprep.subr.mxu0 %v357
        %3344 = vmatpush1.msra.mxu0 %v356
        %3345 = vmatprep.subr.mxu0 %v361
        %3346 = vmatpush1.msra.mxu0 %v360
        %3347 = vmatprep.subr.mxu0 %v365
        %3348 = vmatpush1.msra.mxu0 %v364
        %3349 = vmatprep.subr.mxu0 %v369
        %3350 = vmatpush1.msra.mxu0 %v368
        %3351 = vmatprep.subr.mxu0 %v373
        %3352 = vmatpush1.msra.mxu0 %v372
        %3353 = vmatprep.subr.mxu0 %v377
        %3354 = vmatpush1.msra.mxu0 %v376
        %3355 = vmatprep.subr.mxu0 %v381
        %3356 = vmatpush1.msra.mxu0 %v380
        %3357 = vmatprep.subr.mxu0 %v385
        %3358 = vmatpush1.msra.mxu0 %v384
        %3359 = vmatprep.subr.mxu0 %v389
        %3360 = vmatpush1.msra.mxu0 %v388
        %3361 = vmatprep.subr.mxu0 0.0
        %3362 = vmatpush1.msra.mxu0 0.0
        %3363 = vmatprep.subr.mxu0 0.0
        %3364 = vmatpush1.msra.mxu0 0.0
        %3365 = vmatprep.subr.mxu0 0.0
        %3366 = vmatpush1.msra.mxu0 0.0
        %3367 = vmatprep.subr.mxu0 0.0
        %3368 = vmatpush1.msra.mxu0 0.0
        %3369 = vmatprep.subr.mxu0 0.0
        %3370 = vmatpush1.msra.mxu0 0.0
        %3371 = vmatprep.subr.mxu0 0.0
        %3372 = vmatpush1.msra.mxu0 0.0
        %3373 = vmatprep.subr.mxu0 0.0
        %3374 = vmatpush1.msra.mxu0 0.0
        %3375 = vmatprep.subr.mxu0 0.0
        %3376 = vmatpush1.msra.mxu0 0.0
        %3377 = vmatprep.subr.mxu0 0.0
        %3378 = vmatpush1.msra.mxu0 0.0
        %3379 = vmatprep.subr.mxu0 0.0
        %3380 = vmatpush1.msra.mxu0 0.0
        %3381 = vmatprep.subr.mxu0 0.0
        %3382 = vmatpush1.msra.mxu0 0.0
        %3383 = vmatprep.subr.mxu0 0.0
        %3384 = vmatpush1.msra.mxu0 0.0
        %3385 = vmatprep.subr.mxu0 0.0
        %3386 = vmatpush1.msra.mxu0 0.0
        %3387 = vmatprep.subr.mxu0 0.0
        %3388 = vmatpush1.msra.mxu0 0.0
        %3389 = vmatprep.subr.mxu0 0.0
        %3390 = vmatpush1.msra.mxu0 0.0
        %3391 = vmatprep.subr.mxu0 0.0
        %3392 = vmatpush1.msra.mxu0 0.0
        %3393 = vmatprep.mubr.f32.mxu0 0.0
        %3394 = vmatmul.mubr.f32.gmra.mrb[0].mxu0 %v3312
        %v3395 = vpop.f32.mrb[0].mxu0
        %v3396 = vadd.f32 0.0, %v3395
        %v3397 = vpop.f32.mrb[0].mxu0
        %v3398 = vadd.f32 0.0, %v3397
        %3399 = vdwg.mxu0
        %3400 = vmatprep.subr.mxu0 %v331
        %3401 = vmatpush1.msra.mxu0 %v330
        %3402 = vmatprep.subr.mxu0 %v335
        %3403 = vmatpush1.msra.mxu0 %v334
        %3404 = vmatprep.subr.mxu0 %v339
        %3405 = vmatpush1.msra.mxu0 %v338
        %3406 = vmatprep.subr.mxu0 %v343
        %3407 = vmatpush1.msra.mxu0 %v342
        %3408 = vmatprep.subr.mxu0 %v347
        %3409 = vmatpush1.msra.mxu0 %v346
        %3410 = vmatprep.subr.mxu0 %v351
        %3411 = vmatpush1.msra.mxu0 %v350
        %3412 = vmatprep.subr.mxu0 %v355
        %3413 = vmatpush1.msra.mxu0 %v354
        %3414 = vmatprep.subr.mxu0 %v359
        %3415 = vmatpush1.msra.mxu0 %v358
        %3416 = vmatprep.subr.mxu0 %v363
        %3417 = vmatpush1.msra.mxu0 %v362
        %3418 = vmatprep.subr.mxu0 %v367
        %3419 = vmatpush1.msra.mxu0 %v366
        %3420 = vmatprep.subr.mxu0 %v371
        %3421 = vmatpush1.msra.mxu0 %v370
        %3422 = vmatprep.subr.mxu0 %v375
        %3423 = vmatpush1.msra.mxu0 %v374
        %3424 = vmatprep.subr.mxu0 %v379
        %3425 = vmatpush1.msra.mxu0 %v378
        %3426 = vmatprep.subr.mxu0 %v383
        %3427 = vmatpush1.msra.mxu0 %v382
        %3428 = vmatprep.subr.mxu0 %v387
        %3429 = vmatpush1.msra.mxu0 %v386
        %3430 = vmatprep.subr.mxu0 %v391
        %3431 = vmatpush1.msra.mxu0 %v390
        %3432 = vmatprep.subr.mxu0 0.0
        %3433 = vmatpush1.msra.mxu0 0.0
        %3434 = vmatprep.subr.mxu0 0.0
        %3435 = vmatpush1.msra.mxu0 0.0
        %3436 = vmatprep.subr.mxu0 0.0
        %3437 = vmatpush1.msra.mxu0 0.0
        %3438 = vmatprep.subr.mxu0 0.0
        %3439 = vmatpush1.msra.mxu0 0.0
        %3440 = vmatprep.subr.mxu0 0.0
        %3441 = vmatpush1.msra.mxu0 0.0
        %3442 = vmatprep.subr.mxu0 0.0
        %3443 = vmatpush1.msra.mxu0 0.0
        %3444 = vmatprep.subr.mxu0 0.0
        %3445 = vmatpush1.msra.mxu0 0.0
        %3446 = vmatprep.subr.mxu0 0.0
        %3447 = vmatpush1.msra.mxu0 0.0
        %3448 = vmatprep.subr.mxu0 0.0
        %3449 = vmatpush1.msra.mxu0 0.0
        %3450 = vmatprep.subr.mxu0 0.0
        %3451 = vmatpush1.msra.mxu0 0.0
        %3452 = vmatprep.subr.mxu0 0.0
        %3453 = vmatpush1.msra.mxu0 0.0
        %3454 = vmatprep.subr.mxu0 0.0
        %3455 = vmatpush1.msra.mxu0 0.0
        %3456 = vmatprep.subr.mxu0 0.0
        %3457 = vmatpush1.msra.mxu0 0.0
        %3458 = vmatprep.subr.mxu0 0.0
        %3459 = vmatpush1.msra.mxu0 0.0
        %3460 = vmatprep.subr.mxu0 0.0
        %3461 = vmatpush1.msra.mxu0 0.0
        %3462 = vmatprep.subr.mxu0 0.0
        %3463 = vmatpush1.msra.mxu0 0.0
        %3464 = vmatprep.mubr.f32.mxu0 0.0
        %3465 = vmatmul.mubr.f32.gmra.mrb[0].mxu0 %v3312
        %v3466 = vpop.f32.mrb[0].mxu0
        %v3467 = vadd.f32 0.0, %v3466
        %v3468 = vpop.f32.mrb[0].mxu0
        %v3469 = vadd.f32 0.0, %v3468
        %3470 = vdwg.mxu0
        %v3471 = vadd.f32 %v3325, %v3396
        %v3472 = vadd.f32 %v3326, %v3398
        %v3473 = vadd.f32 %v3327, %v3467
        %v3474 = vadd.f32 %v3328, %v3469
        %v3475 = vxor.u32 %v3471, 2147483648
        %v3476 = vmul.f32 %v3475, 1.442695
        %v3477 = vpow.pop %v3476
        %v3478 = vadd.f32 %v3477, 1.0
        %v3479 = vrcp.pop %v3478
        %v3480 = vmul.f32 1.0, %v3479
        %v3481 = vxor.u32 %v3472, 2147483648
        %v3482 = vmul.f32 %v3481, 1.442695
        %v3483 = vpow.pop %v3482
        %v3484 = vadd.f32 %v3483, 1.0
        %v3485 = vrcp.pop %v3484
        %v3486 = vmul.f32 1.0, %v3485
        %v3487 = vtanh.pop %v3473
        %v3488 = vxor.u32 %v3474, 2147483648
        %v3489 = vmul.f32 %v3488, 1.442695
        %v3490 = vpow.pop %v3489
        %v3491 = vadd.f32 %v3490, 1.0
        %v3492 = vrcp.pop %v3491
        %v3493 = vmul.f32 1.0, %v3492
        %v3494 = vmul.f32 %v3486, %v3313
        %v3495 = vmul.f32 %v3480, %v3487
        %v3496 = vadd.f32 %v3494, %v3495
        %v3497 = vtanh.pop %v3496
        %v3498 = vmul.f32 %v3493, %v3497
        %s3499 = sadd.s32 %s326, %s3318
        %v3500 = vstv %s3499
        %vm3501 = vcmp.gt.s32.totalorder %v327, %v3500
        %v3502 = vsel %vm3501, 1, 0
        %3503 = vset.pattern.permute.xlu0 0
        %3504 = vperm.xlu0 %3503, %v3502
        %v3505 = vpop.permute.xlu0 %3504
        %vm3506 = vcmp.eq.s32.totalorder %v3505, 1
        %v3507 = vsel %vm3506, %v3498, %v3312
        %v3508 = vsel %vm3506, %v3496, %v3313
        %v3509 = vsel %vm3506, %v3498, 0.0
        %s3510 = scalar_lea.vmem %s298, %s3319 [#allocation9]
        %3511 = vst [vmem:[%s3510] sm:$0xff] %v3509
        %3512 = vst [vmem:[#allocation2] sm:$0xff] %v3507
        %3513 = vst [vmem:[#allocation3] sm:$0xff] %v3508
        // Predicated region
        $region45: #{tpu_custom_call.1} parent=31 // pred_check
          %p3514 = pneg %p316
        $region46: #{tpu_custom_call.1} parent=31 // pred_check_branch
          %3516 = sbr.rel (%p3514) target = $region48
        $region47: #{tpu_custom_call.1} parent=31 // pred_region
          %3517 = vst [vmem:[%s305] sm:$0xff] %v3507
        $region48: #{tpu_custom_call.1} parent=31 // pred_fallthru
          _
        %s3518 = sand.u32 %s141, 1
        %s3519 = scalar_lea.sflag [#allocation6], %s3518
        %s3520 = sand.u32 %s141, 1
        %s3521 = smul.addr %s3520, 128
        %s3522 = scalar_lea.vmem [#allocation9], %s3521
        %s3523 = sand.u32 %s167, 1
        %s3524 = scalar_lea.sflag [#allocation11], %s3523
        %s3525 = sand.u32 %s167, 1
        %s3526 = smul.addr %s3525, 8
        %s3527 = scalar_lea.vmem [#allocation10], %s3526
        // Predicated region
        $region49: #{tpu_custom_call.1} parent=31 // pred_check
          %p3528 = pneg %p151
        $region50: #{tpu_custom_call.1} parent=31 // pred_check_branch
          %3530 = sbr.rel (%p3528) target = $region52
        $region51: #{tpu_custom_call.1} parent=31 // pred_region
          %s3531 = smul.u32 %s33, 2
          %s3532 = ssub.s32 0, %s3531
          %s3533 = smul.u32 %s32, %s3532
          %s3534 = sadd.s32 %s33, %s3533
          %s3535 = smul.u32 16, %s3534
          %s3537 = ssub.s32 2048, 2048
          %3538 = vsyncadd %s3519, %s3537
          %s3539 = smul.addr %s3535, 2
          %s3540 = sadd.s32 %s32, %s3539
          %s3541 = smul.addr %s3540, 128
          %s3542 = scalar_lea.hbm %s3, %s3541
          %s3543 = sshll.u32 %s3522, 4
          %s3544 = int_to_ptr.vmem [resolvable:$true] %s3543
          %3549 = dma.vmem_to_hbm [thread:$0]  %s3544, 2048, %s3542, %s3519, 128, 256, 8
        $region52: #{tpu_custom_call.1} parent=31 // pred_fallthru
          _
        // Predicated region
        $region53: #{tpu_custom_call.1} parent=31 // pred_check
          %p3550 = pneg %p177
        $region54: #{tpu_custom_call.1} parent=31 // pred_check_branch
          %3552 = sbr.rel (%p3550) target = $region56
        $region55: #{tpu_custom_call.1} parent=31 // pred_region
          %s3554 = ssub.s32 128, 128
          %3555 = vsyncadd %s3524, %s3554
          %s3556 = smul.addr %s32, 128
          %s3557 = scalar_lea.hbm %s4, %s3556
          %s3559 = sshll.u32 %s3527, 4
          %s3560 = int_to_ptr.vmem [resolvable:$true] %s3559
          %3562 = dma.vmem_to_hbm [thread:$0]  %s3560, 128, %s3557, %s3524
        $region56: #{tpu_custom_call.1} parent=31 // pred_fallthru
          _
      $region32: #{tpu_custom_call.1} parent=5 // pred_fallthru
        _
      %p3563 = scmp.le.s32.totalorder 2, %s23
      // Predicated region
      $region57: #{tpu_custom_call.1} parent=5 // pred_check
        %p3564 = pneg %p3563
      $region58: #{tpu_custom_call.1} parent=5 // pred_check_branch
        %3566 = sbr.rel (%p3564) target = $region60
      $region59: #{tpu_custom_call.1} parent=5 // pred_region
        %s3567 = ssub.s32 %s23, 2
        // Predicated region
        $region61: #{tpu_custom_call.1} parent=59 // pred_check
          %p3568 = pneg %p157
        $region62: #{tpu_custom_call.1} parent=59 // pred_check_branch
          %3570 = sbr.rel (%p3568) target = $region64
        $region63: #{tpu_custom_call.1} parent=59 // pred_region
          %s3571 = sand.u32 %s142, 1
          %s3572 = scalar_lea.sflag [#allocation6], %s3571
          %s3573 = sand.u32 %s142, 1
          %s3574 = smul.addr %s3573, 128
          %s3575 = scalar_lea.vmem [#allocation9], %s3574
          %3576 = dma.done %s3572, 2048
        $region64: #{tpu_custom_call.1} parent=59 // pred_fallthru
          _
        // Predicated region
        $region65: #{tpu_custom_call.1} parent=59 // pred_check
          %p3577 = pneg %p183
        $region66: #{tpu_custom_call.1} parent=59 // pred_check_branch
          %3579 = sbr.rel (%p3577) target = $region68
        $region67: #{tpu_custom_call.1} parent=59 // pred_region
          %s3580 = sand.u32 %s168, 1
          %s3581 = scalar_lea.sflag [#allocation11], %s3580
          %s3582 = sand.u32 %s168, 1
          %s3583 = smul.addr %s3582, 8
          %s3584 = scalar_lea.vmem [#allocation10], %s3583
          %3585 = dma.done %s3581, 128
        $region68: #{tpu_custom_call.1} parent=59 // pred_fallthru
          _
      $region60: #{tpu_custom_call.1} parent=5 // pred_fallthru
        _
    $region6: #{tpu_custom_call.1} parent=1 // loop_footer
      %s27 = sadd.s32 1, %s23
    $region7: #{tpu_custom_call.1} parent=1 // loop_footer_branch
      %22 = sbr.rel target = $region3
    $region8: #{tpu_custom_call.1} parent=1 // loop_exit
      _
    %3586 = vsyncpa [#allocation5], 1
    %s3587 = scalar_lea.sflag [#allocation5], 1
    %3588 = vsyncpa %s3587, 1
    %3589 = vsyncpa [#allocation8], 1
    %s3590 = scalar_lea.sflag [#allocation8], 1
    %3591 = vsyncpa %s3590, 1
    %3592 = vsyncpa [#allocation6], 1
    %s3593 = scalar_lea.sflag [#allocation6], 1
    %3594 = vsyncpa %s3593, 1
    %3595 = vsyncpa [#allocation11], 1
    %s3596 = scalar_lea.sflag [#allocation11], 1
    %3597 = vsyncpa %s3596, 1

</llo_original>
